<compile_context>
chip_gen: v7x
topology: tpu7x:2x2x1
jax: 0.10.0
libtpu: 0.0.40
codegen_flags: <defaults>
</compile_context>

<pallas_src>
import functools

import jax
import jax.numpy as jnp
from jax.experimental import pallas as pl
from jax.experimental.pallas import tpu as pltpu


def _gelu_tanh(x):
    c = 0.7978845608028654  # sqrt(2/pi)
    return 0.5 * x * (1.0 + jnp.tanh(c * (x + 0.044715 * x * x * x)))


def _sm_ladaformer_kernel(
    x_ref, sc1_ref, sh1_ref, sc2_ref, sh2_ref,
    wq_w, wq_b, wk_w, wk_b, wv_w, wv_b,
    qa_w, qa_b, wo_w, wo_b,
    m1_w, m1_b, m2_w, m2_b, expand_ref,
    out_ref, attn_ref,
    *, depth, eps,
):
    f32 = jnp.float32
    bf16 = jnp.bfloat16
    Bblk, N, D = x_ref.shape
    M = Bblk * N
    Hpad = attn_ref.shape[-1]

    x = x_ref[...].astype(f32)                          # (Bblk, N, D)

    def layer_norm(t):
        mu = jnp.mean(t, axis=-1, keepdims=True)
        var = jnp.mean((t - mu) * (t - mu), axis=-1, keepdims=True)
        return (t - mu) * jax.lax.rsqrt(var + eps)

    def lin(t_bf, w_ref, b_ref):                        # bf16 operands, f32 accumulate
        return jnp.dot(t_bf, w_ref[...], preferred_element_type=f32) + b_ref[...]

    # ---------------- norm1 (scale/shift precomputed in wrapper, (Bblk,1,D)) ---
    x1 = layer_norm(x) * sc1_ref[...] + sh1_ref[...]    # (Bblk, N, D) f32
    x1_bf = x1.reshape(M, D).astype(bf16)

    # ---------------- additive attention: full-lane (M, 128) matmuls ----------
    q = lin(x1_bf, wq_w, wq_b)                          # (M, D) f32
    k = lin(x1_bf, wk_w, wk_b)
    v = lin(x1_bf, wv_w, wv_b)

    logits = lin(q.astype(bf16), qa_w, qa_b) * (1.0 / (depth ** 0.5))  # (M, Hpad)
    lg = logits.reshape(Bblk, N, Hpad)
    mmax = jnp.max(lg, axis=1, keepdims=True)           # softmax over N, per batch
    e = jnp.exp(lg - mmax)
    a = e * pl.reciprocal(jnp.sum(e, axis=1, keepdims=True), approx=True)

    # Broadcast head probs across each head's `depth` lanes with one MXU matmul
    # against a constant 0/1 expansion matrix (avoids per-head lane slicing).
    a_exp = jnp.dot(a.reshape(M, Hpad).astype(bf16), expand_ref[...],
                    preferred_element_type=f32).reshape(Bblk, N, D)
    gq = jnp.sum(a_exp * q.reshape(Bblk, N, D), axis=1, keepdims=True)  # (Bblk,1,D)
    r = gq * k.reshape(Bblk, N, D) * v.reshape(Bblk, N, D)              # (Bblk,N,D)

    attn_out = lin(r.reshape(M, D).astype(bf16), wo_w, wo_b)            # (M, D)
    y = x + attn_out.reshape(Bblk, N, D)                                # residual

    # ---------------- norm2 + MLP ---------------------------------------------
    x2 = layer_norm(y) * sc2_ref[...] + sh2_ref[...]
    hid = _gelu_tanh(lin(x2.reshape(M, D).astype(bf16), m1_w, m1_b))    # (M, mlp)
    mlp_out = lin(hid.astype(bf16), m2_w, m2_b)                         # (M, D)

    out_ref[...] = (y + mlp_out.reshape(Bblk, N, D)).astype(out_ref.dtype)
    attn_ref[...] = a.astype(attn_ref.dtype)             # (Bblk, N, Hpad) lane-dense


def sm_ladaformer(inputs, z, params, *, n_heads, eps=1e-6):
    """inputs: (B, N, D); z: (B, Z). Returns (output (B,N,D), attn_maps (B,H,N))."""
    B, N, D = inputs.shape
    assert D % n_heads == 0
    depth = D // n_heads
    f32, bf16 = jnp.float32, jnp.bfloat16
    hp = jax.lax.Precision.HIGHEST

    # ---- hoist the tiny z-conditioned modulation matmuls out of the kernel ----
    def affine(u, w, b):
        return jnp.dot(u, w, precision=hp) + b

    h1 = jax.nn.relu(affine(z, params["h1_w"], params["h1_b"]))
    scale1 = affine(h1, params["g1_w"], params["g1_b"]).reshape(B, 1, D)
    shift1 = affine(h1, params["b1_w"], params["b1_b"]).reshape(B, 1, D)
    h2 = jax.nn.relu(affine(z, params["h2_w"], params["h2_b"]))
    scale2 = affine(h2, params["g2_w"], params["g2_b"]).reshape(B, 1, D)
    shift2 = affine(h2, params["b2_w"], params["b2_b"]).reshape(B, 1, D)

    # ---- lane-dense padded head dim + head->lane expansion matrix -------------
    Hpad = max(128, ((n_heads + 127) // 128) * 128)
    qa_w = jnp.zeros((D, Hpad), f32).at[:, :n_heads].set(params["qa_w"]).astype(bf16)
    qa_b = jnp.zeros((1, Hpad), f32).at[:, :n_heads].set(params["qa_b"])
    expand = (jnp.arange(Hpad)[:, None] == (jnp.arange(D)[None, :] // depth)
              ).astype(bf16)                              # (Hpad, D), 0/1 block rows

    weights = [
        params["wq_w"].astype(bf16), params["wq_b"],
        params["wk_w"].astype(bf16), params["wk_b"],
        params["wv_w"].astype(bf16), params["wv_b"],
        qa_w, qa_b,
        params["wo_w"].astype(bf16), params["wo_b"],
        params["m1_w"].astype(bf16), params["m1_b"],
        params["m2_w"].astype(bf16), params["m2_b"],
        expand,
    ]

    # Batch-block: feed the MXU with Bblk*N >= ~256 rows per step when possible
    # (demo shapes: Bblk = B = 2 -> grid collapses to a single step, M = 128).
    target = max(1, -(-256 // N))
    Bblk = 1
    for d in range(min(B, target), 0, -1):
        if B % d == 0:
            Bblk = d
            break
    grid = (B // Bblk,)

    def batched(shape3):
        return pl.BlockSpec(shape3, lambda b: (b, 0, 0))

    in_specs = [
        batched((Bblk, N, D)),
        batched((Bblk, 1, D)), batched((Bblk, 1, D)),
        batched((Bblk, 1, D)), batched((Bblk, 1, D)),
    ] + [
        # Weights: full block, constant index -> stay resident in VMEM.
        pl.BlockSpec(w.shape, lambda b: (0, 0)) for w in weights
    ]
    out_specs = (
        batched((Bblk, N, D)),
        batched((Bblk, N, Hpad)),
    )

    kernel = functools.partial(_sm_ladaformer_kernel, depth=depth, eps=eps)
    out, attn_pad = pl.pallas_call(
        kernel,
        out_shape=(
            jax.ShapeDtypeStruct((B, N, D), inputs.dtype),
            jax.ShapeDtypeStruct((B, N, Hpad), jnp.float32),
        ),
        grid_spec=pltpu.PrefetchScalarGridSpec(
            num_scalar_prefetch=0,
            grid=grid,
            in_specs=in_specs,
            out_specs=out_specs,
        ),
        compiler_params=pltpu.CompilerParams(
            dimension_semantics=("parallel",),
        ),
    )(inputs, scale1, shift1, scale2, shift2, *weights)

    attn_maps = jnp.transpose(attn_pad[..., :n_heads], (0, 2, 1))   # (B, H, N)
    return out, attn_maps


# ---------------------------------------------------------------------------
# Plain-JAX reference (mirrors the PyTorch module; weights are (in, out)).
# ---------------------------------------------------------------------------
def _mm(a, b):
    return jnp.matmul(a, b, precision=jax.lax.Precision.HIGHEST)


def sm_ladaformer_ref(inputs, z, p, *, n_heads, eps=1e-6):
    B, N, D = inputs.shape
    depth = D // n_heads

    def ln(x):
        mu = jnp.mean(x, axis=-1, keepdims=True)
        var = jnp.mean((x - mu) ** 2, axis=-1, keepdims=True)
        return (x - mu) / jnp.sqrt(var + eps)

    def sm_norm(x, hw, hb, gw, gb, bw, bb):
        h = jnp.maximum(_mm(z, hw) + hb, 0.0)
        scale = (_mm(h, gw) + gb)[:, None, :]
        shift = (_mm(h, bw) + bb)[:, None, :]
        return ln(x) * scale + shift

    x1 = sm_norm(inputs, p["h1_w"], p["h1_b"], p["g1_w"], p["g1_b"],
                 p["b1_w"], p["b1_b"])
    q = _mm(x1, p["wq_w"]) + p["wq_b"]
    k = _mm(x1, p["wk_w"]) + p["wk_b"]
    v = _mm(x1, p["wv_w"]) + p["wv_b"]

    attn = jnp.transpose(_mm(q, p["qa_w"]) + p["qa_b"], (0, 2, 1)) / depth ** 0.5
    attn = jax.nn.softmax(attn, axis=-1)                     # (B, H, N)

    def split(t):
        return jnp.transpose(t.reshape(B, N, n_heads, depth), (0, 2, 1, 3))

    qh, kh, vh = split(q), split(k), split(v)
    gq = jnp.einsum("bhn,bhnd->bhd", attn, qh,
                    precision=jax.lax.Precision.HIGHEST)[:, :, None, :]
    r = (gq * kh) * vh
    r = jnp.transpose(r, (0, 2, 1, 3)).reshape(B, N, D)
    attn_out = _mm(r, p["wo_w"]) + p["wo_b"]
    y = inputs + attn_out

    x2 = sm_norm(y, p["h2_w"], p["h2_b"], p["g2_w"], p["g2_b"],
                 p["b2_w"], p["b2_b"])
    mlp = _mm(_gelu_tanh(_mm(x2, p["m1_w"]) + p["m1_b"]), p["m2_w"]) + p["m2_b"]
    return y + mlp, attn


def init_params(key, model_dim, latent_feature, n_heads, mlp_dim):
    shapes = [
        ("h1", latent_feature, model_dim),
        ("g1", model_dim, model_dim),
        ("b1", model_dim, model_dim),
        ("wq", model_dim, model_dim),
        ("wk", model_dim, model_dim),
        ("wv", model_dim, model_dim),
        ("qa", model_dim, n_heads),
        ("wo", model_dim, model_dim),
        ("h2", latent_feature, model_dim),
        ("g2", model_dim, model_dim),
        ("b2", model_dim, model_dim),
        ("m1", model_dim, mlp_dim),
        ("m2", mlp_dim, model_dim),
    ]
    params = {}
    keys = jax.random.split(key, len(shapes))
    for kk, (name, din, dout) in zip(keys, shapes):
        kw, kb = jax.random.split(kk)
        params[name + "_w"] = jax.random.normal(kw, (din, dout), jnp.float32) * 0.05
        params[name + "_b"] = jax.random.normal(kb, (1, dout), jnp.float32) * 0.05
    return params


if __name__ == "__main__":
    # Small shapes consistent with the module: (batch, seq, model_dim) + latent z.
    B, N, MODEL_DIM, N_HEADS, MLP_DIM, LATENT = 2, 64, 128, 2, 256, 32

    key = jax.random.PRNGKey(0)
    k_in, k_z, k_p = jax.random.split(key, 3)
    inputs = jax.random.normal(k_in, (B, N, MODEL_DIM), dtype=jnp.float32)
    z = jax.random.normal(k_z, (B, LATENT), dtype=jnp.float32)
    params = init_params(k_p, MODEL_DIM, LATENT, N_HEADS, MLP_DIM)

    out, attn_maps = sm_ladaformer(inputs, z, params, n_heads=N_HEADS)
    out = jax.block_until_ready(out)
    attn_maps = jax.block_until_ready(attn_maps)

    ref_out, ref_attn = sm_ladaformer_ref(inputs, z, params, n_heads=N_HEADS)

    assert out.shape == (B, N, MODEL_DIM)
    assert attn_maps.shape == (B, N_HEADS, N)
    err_out = float(jnp.max(jnp.abs(out - ref_out)))
    err_attn = float(jnp.max(jnp.abs(attn_maps - ref_attn)))
    # Tolerance accounts for bf16 MXU operands (f32 accumulation) + approx recip.
    assert err_out < 1e-2, f"output max abs err {err_out}"
    assert err_attn < 2e-3, f"attn max abs err {err_attn}"

    print("KERNEL_OK")
</pallas_src>

<mosaic_0001>
module attributes {stable_mosaic.version = 11 : i64} {
  func.func @_sm_ladaformer_kernel(%arg0: i32, %arg1: memref<2x64x128xf32, #tpu.memory_space<vmem>>, %arg2: memref<2x1x128xf32, #tpu.memory_space<vmem>>, %arg3: memref<2x1x128xf32, #tpu.memory_space<vmem>>, %arg4: memref<2x1x128xf32, #tpu.memory_space<vmem>>, %arg5: memref<2x1x128xf32, #tpu.memory_space<vmem>>, %arg6: memref<128x128xbf16, #tpu.memory_space<vmem>>, %arg7: memref<1x128xf32, #tpu.memory_space<vmem>>, %arg8: memref<128x128xbf16, #tpu.memory_space<vmem>>, %arg9: memref<1x128xf32, #tpu.memory_space<vmem>>, %arg10: memref<128x128xbf16, #tpu.memory_space<vmem>>, %arg11: memref<1x128xf32, #tpu.memory_space<vmem>>, %arg12: memref<128x128xbf16, #tpu.memory_space<vmem>>, %arg13: memref<1x128xf32, #tpu.memory_space<vmem>>, %arg14: memref<128x128xbf16, #tpu.memory_space<vmem>>, %arg15: memref<1x128xf32, #tpu.memory_space<vmem>>, %arg16: memref<128x256xbf16, #tpu.memory_space<vmem>>, %arg17: memref<1x256xf32, #tpu.memory_space<vmem>>, %arg18: memref<256x128xbf16, #tpu.memory_space<vmem>>, %arg19: memref<1x128xf32, #tpu.memory_space<vmem>>, %arg20: memref<128x128xbf16, #tpu.memory_space<vmem>>, %arg21: memref<2x64x128xf32, #tpu.memory_space<vmem>>, %arg22: memref<2x64x128xf32, #tpu.memory_space<vmem>>) attributes {dimension_semantics = [#tpu.dimension_semantics<parallel>], iteration_bounds = array<i64: 1>, scalar_prefetch = 0 : i64, scratch_operands = 0 : i64, tpu.core_type = #tpu.core_type<tc>, window_params = [{transform_indices = @transform_0, window_bounds = array<i64: 2, 64, 128>}, {transform_indices = @transform_1, window_bounds = array<i64: 2, 1, 128>}, {transform_indices = @transform_2, window_bounds = array<i64: 2, 1, 128>}, {transform_indices = @transform_3, window_bounds = array<i64: 2, 1, 128>}, {transform_indices = @transform_4, window_bounds = array<i64: 2, 1, 128>}, {pipeline_mode = #tpu.pipeline_mode<synchronous>, transform_indices = @transform_5, window_bounds = array<i64: 128, 128>}, {pipeline_mode = #tpu.pipeline_mode<synchronous>, transform_indices = @transform_6, window_bounds = array<i64: 1, 128>}, {pipeline_mode = #tpu.pipeline_mode<synchronous>, transform_indices = @transform_7, window_bounds = array<i64: 128, 128>}, {pipeline_mode = #tpu.pipeline_mode<synchronous>, transform_indices = @transform_8, window_bounds = array<i64: 1, 128>}, {pipeline_mode = #tpu.pipeline_mode<synchronous>, transform_indices = @transform_9, window_bounds = array<i64: 128, 128>}, {pipeline_mode = #tpu.pipeline_mode<synchronous>, transform_indices = @transform_10, window_bounds = array<i64: 1, 128>}, {pipeline_mode = #tpu.pipeline_mode<synchronous>, transform_indices = @transform_11, window_bounds = array<i64: 128, 128>}, {pipeline_mode = #tpu.pipeline_mode<synchronous>, transform_indices = @transform_12, window_bounds = array<i64: 1, 128>}, {pipeline_mode = #tpu.pipeline_mode<synchronous>, transform_indices = @transform_13, window_bounds = array<i64: 128, 128>}, {pipeline_mode = #tpu.pipeline_mode<synchronous>, transform_indices = @transform_14, window_bounds = array<i64: 1, 128>}, {pipeline_mode = #tpu.pipeline_mode<synchronous>, transform_indices = @transform_15, window_bounds = array<i64: 128, 256>}, {pipeline_mode = #tpu.pipeline_mode<synchronous>, transform_indices = @transform_16, window_bounds = array<i64: 1, 256>}, {pipeline_mode = #tpu.pipeline_mode<synchronous>, transform_indices = @transform_17, window_bounds = array<i64: 256, 128>}, {pipeline_mode = #tpu.pipeline_mode<synchronous>, transform_indices = @transform_18, window_bounds = array<i64: 1, 128>}, {pipeline_mode = #tpu.pipeline_mode<synchronous>, transform_indices = @transform_19, window_bounds = array<i64: 128, 128>}, {transform_indices = @transform_20, window_bounds = array<i64: 2, 64, 128>}, {transform_indices = @transform_21, window_bounds = array<i64: 2, 64, 128>}]} {
    %c0 = arith.constant 0 : index
    %c0_0 = arith.constant 0 : index
    %c0_1 = arith.constant 0 : index
    %0 = vector.load %arg1[%c0, %c0_0, %c0_1] : memref<2x64x128xf32, #tpu.memory_space<vmem>>, vector<2x64x128xf32>
    %cst = arith.constant dense<0.000000e+00> : vector<2x64xf32>
    %1 = vector.multi_reduction <add>, %0, %cst [2] : vector<2x64x128xf32> to vector<2x64xf32>
    %2 = vector.shape_cast %1 : vector<2x64xf32> to vector<2x64x1xf32>
    %cst_2 = arith.constant 1.280000e+02 : f32
    %3 = vector.broadcast %cst_2 : f32 to vector<2x64x1xf32>
    %4 = arith.divf %2, %3 : vector<2x64x1xf32>
    %5 = vector.broadcast %4 : vector<2x64x1xf32> to vector<2x64x128xf32>
    %6 = arith.subf %0, %5 : vector<2x64x128xf32>
    %7 = vector.broadcast %4 : vector<2x64x1xf32> to vector<2x64x128xf32>
    %8 = arith.subf %0, %7 : vector<2x64x128xf32>
    %9 = arith.mulf %6, %8 : vector<2x64x128xf32>
    %cst_3 = arith.constant dense<0.000000e+00> : vector<2x64xf32>
    %10 = vector.multi_reduction <add>, %9, %cst_3 [2] : vector<2x64x128xf32> to vector<2x64xf32>
    %11 = vector.shape_cast %10 : vector<2x64xf32> to vector<2x64x1xf32>
    %cst_4 = arith.constant 1.280000e+02 : f32
    %12 = vector.broadcast %cst_4 : f32 to vector<2x64x1xf32>
    %13 = arith.divf %11, %12 : vector<2x64x1xf32>
    %14 = vector.broadcast %4 : vector<2x64x1xf32> to vector<2x64x128xf32>
    %15 = arith.subf %0, %14 : vector<2x64x128xf32>
    %cst_5 = arith.constant 9.99999997E-7 : f32
    %16 = vector.broadcast %cst_5 : f32 to vector<2x64x1xf32>
    %17 = arith.addf %13, %16 : vector<2x64x1xf32>
    %18 = math.rsqrt %17 : vector<2x64x1xf32>
    %19 = vector.broadcast %18 : vector<2x64x1xf32> to vector<2x64x128xf32>
    %20 = arith.mulf %15, %19 : vector<2x64x128xf32>
    %c0_6 = arith.constant 0 : index
    %c0_7 = arith.constant 0 : index
    %c0_8 = arith.constant 0 : index
    %21 = vector.load %arg2[%c0_6, %c0_7, %c0_8] : memref<2x1x128xf32, #tpu.memory_space<vmem>>, vector<2x1x128xf32>
    %22 = vector.broadcast %21 : vector<2x1x128xf32> to vector<2x64x128xf32>
    %23 = arith.mulf %20, %22 : vector<2x64x128xf32>
    %c0_9 = arith.constant 0 : index
    %c0_10 = arith.constant 0 : index
    %c0_11 = arith.constant 0 : index
    %24 = vector.load %arg3[%c0_9, %c0_10, %c0_11] : memref<2x1x128xf32, #tpu.memory_space<vmem>>, vector<2x1x128xf32>
    %25 = vector.broadcast %24 : vector<2x1x128xf32> to vector<2x64x128xf32>
    %26 = arith.addf %23, %25 : vector<2x64x128xf32>
    %27 = vector.shape_cast %26 : vector<2x64x128xf32> to vector<128x128xf32>
    %28 = arith.truncf %27 : vector<128x128xf32> to vector<128x128xbf16>
    %c0_12 = arith.constant 0 : index
    %c0_13 = arith.constant 0 : index
    %29 = vector.load %arg6[%c0_12, %c0_13] : memref<128x128xbf16, #tpu.memory_space<vmem>>, vector<128x128xbf16>
    %cst_14 = arith.constant dense<0.000000e+00> : vector<128x128xf32>
    %30 = tpu.matmul %28, %29, %cst_14 {dimension_numbers = #tpu.dot_dimension_numbers<[1], [0], [0], [1], [0, 0, 1, 1], [], []>} : vector<128x128xbf16>, vector<128x128xbf16>, vector<128x128xf32> -> vector<128x128xf32>
    %c0_15 = arith.constant 0 : index
    %c0_16 = arith.constant 0 : index
    %31 = vector.load %arg7[%c0_15, %c0_16] : memref<1x128xf32, #tpu.memory_space<vmem>>, vector<1x128xf32>
    %32 = vector.broadcast %31 : vector<1x128xf32> to vector<128x128xf32>
    %33 = arith.addf %30, %32 : vector<128x128xf32>
    %c0_17 = arith.constant 0 : index
    %c0_18 = arith.constant 0 : index
    %34 = vector.load %arg8[%c0_17, %c0_18] : memref<128x128xbf16, #tpu.memory_space<vmem>>, vector<128x128xbf16>
    %cst_19 = arith.constant dense<0.000000e+00> : vector<128x128xf32>
    %35 = tpu.matmul %28, %34, %cst_19 {dimension_numbers = #tpu.dot_dimension_numbers<[1], [0], [0], [1], [0, 0, 1, 1], [], []>} : vector<128x128xbf16>, vector<128x128xbf16>, vector<128x128xf32> -> vector<128x128xf32>
    %c0_20 = arith.constant 0 : index
    %c0_21 = arith.constant 0 : index
    %36 = vector.load %arg9[%c0_20, %c0_21] : memref<1x128xf32, #tpu.memory_space<vmem>>, vector<1x128xf32>
    %37 = vector.broadcast %36 : vector<1x128xf32> to vector<128x128xf32>
    %38 = arith.addf %35, %37 : vector<128x128xf32>
    %c0_22 = arith.constant 0 : index
    %c0_23 = arith.constant 0 : index
    %39 = vector.load %arg10[%c0_22, %c0_23] : memref<128x128xbf16, #tpu.memory_space<vmem>>, vector<128x128xbf16>
    %cst_24 = arith.constant dense<0.000000e+00> : vector<128x128xf32>
    %40 = tpu.matmul %28, %39, %cst_24 {dimension_numbers = #tpu.dot_dimension_numbers<[1], [0], [0], [1], [0, 0, 1, 1], [], []>} : vector<128x128xbf16>, vector<128x128xbf16>, vector<128x128xf32> -> vector<128x128xf32>
    %c0_25 = arith.constant 0 : index
    %c0_26 = arith.constant 0 : index
    %41 = vector.load %arg11[%c0_25, %c0_26] : memref<1x128xf32, #tpu.memory_space<vmem>>, vector<1x128xf32>
    %42 = vector.broadcast %41 : vector<1x128xf32> to vector<128x128xf32>
    %43 = arith.addf %40, %42 : vector<128x128xf32>
    %44 = arith.truncf %33 : vector<128x128xf32> to vector<128x128xbf16>
    %c0_27 = arith.constant 0 : index
    %c0_28 = arith.constant 0 : index
    %45 = vector.load %arg12[%c0_27, %c0_28] : memref<128x128xbf16, #tpu.memory_space<vmem>>, vector<128x128xbf16>
    %cst_29 = arith.constant dense<0.000000e+00> : vector<128x128xf32>
    %46 = tpu.matmul %44, %45, %cst_29 {dimension_numbers = #tpu.dot_dimension_numbers<[1], [0], [0], [1], [0, 0, 1, 1], [], []>} : vector<128x128xbf16>, vector<128x128xbf16>, vector<128x128xf32> -> vector<128x128xf32>
    %c0_30 = arith.constant 0 : index
    %c0_31 = arith.constant 0 : index
    %47 = vector.load %arg13[%c0_30, %c0_31] : memref<1x128xf32, #tpu.memory_space<vmem>>, vector<1x128xf32>
    %48 = vector.broadcast %47 : vector<1x128xf32> to vector<128x128xf32>
    %49 = arith.addf %46, %48 : vector<128x128xf32>
    %cst_32 = arith.constant 1.250000e-01 : f32
    %50 = vector.broadcast %cst_32 : f32 to vector<128x128xf32>
    %51 = arith.mulf %49, %50 : vector<128x128xf32>
    %52 = vector.shape_cast %51 : vector<128x128xf32> to vector<2x64x128xf32>
    %cst_33 = arith.constant dense<0xFF800000> : vector<2x128xf32>
    %53 = vector.multi_reduction <maximumf>, %52, %cst_33 [1] : vector<2x64x128xf32> to vector<2x128xf32>
    %54 = vector.shape_cast %53 : vector<2x128xf32> to vector<2x1x128xf32>
    %55 = vector.broadcast %54 : vector<2x1x128xf32> to vector<2x64x128xf32>
    %56 = arith.subf %52, %55 : vector<2x64x128xf32>
    %57 = math.exp %56 : vector<2x64x128xf32>
    %cst_34 = arith.constant dense<0.000000e+00> : vector<2x128xf32>
    %58 = vector.multi_reduction <add>, %57, %cst_34 [1] : vector<2x64x128xf32> to vector<2x128xf32>
    %59 = vector.shape_cast %58 : vector<2x128xf32> to vector<2x1x128xf32>
    %60 = tpu.reciprocal %59 {approx = true} : vector<2x1x128xf32> -> vector<2x1x128xf32>
    %61 = vector.broadcast %60 : vector<2x1x128xf32> to vector<2x64x128xf32>
    %62 = arith.mulf %57, %61 : vector<2x64x128xf32>
    %63 = vector.shape_cast %62 : vector<2x64x128xf32> to vector<128x128xf32>
    %64 = arith.truncf %63 : vector<128x128xf32> to vector<128x128xbf16>
    %c0_35 = arith.constant 0 : index
    %c0_36 = arith.constant 0 : index
    %65 = vector.load %arg20[%c0_35, %c0_36] : memref<128x128xbf16, #tpu.memory_space<vmem>>, vector<128x128xbf16>
    %cst_37 = arith.constant dense<0.000000e+00> : vector<128x128xf32>
    %66 = tpu.matmul %64, %65, %cst_37 {dimension_numbers = #tpu.dot_dimension_numbers<[1], [0], [0], [1], [0, 0, 1, 1], [], []>} : vector<128x128xbf16>, vector<128x128xbf16>, vector<128x128xf32> -> vector<128x128xf32>
    %67 = vector.shape_cast %66 : vector<128x128xf32> to vector<2x64x128xf32>
    %68 = vector.shape_cast %33 : vector<128x128xf32> to vector<2x64x128xf32>
    %69 = arith.mulf %67, %68 : vector<2x64x128xf32>
    %cst_38 = arith.constant dense<0.000000e+00> : vector<2x128xf32>
    %70 = vector.multi_reduction <add>, %69, %cst_38 [1] : vector<2x64x128xf32> to vector<2x128xf32>
    %71 = vector.shape_cast %70 : vector<2x128xf32> to vector<2x1x128xf32>
    %72 = vector.shape_cast %38 : vector<128x128xf32> to vector<2x64x128xf32>
    %73 = vector.broadcast %71 : vector<2x1x128xf32> to vector<2x64x128xf32>
    %74 = arith.mulf %73, %72 : vector<2x64x128xf32>
    %75 = vector.shape_cast %43 : vector<128x128xf32> to vector<2x64x128xf32>
    %76 = arith.mulf %74, %75 : vector<2x64x128xf32>
    %77 = vector.shape_cast %76 : vector<2x64x128xf32> to vector<128x128xf32>
    %78 = arith.truncf %77 : vector<128x128xf32> to vector<128x128xbf16>
    %c0_39 = arith.constant 0 : index
    %c0_40 = arith.constant 0 : index
    %79 = vector.load %arg14[%c0_39, %c0_40] : memref<128x128xbf16, #tpu.memory_space<vmem>>, vector<128x128xbf16>
    %cst_41 = arith.constant dense<0.000000e+00> : vector<128x128xf32>
    %80 = tpu.matmul %78, %79, %cst_41 {dimension_numbers = #tpu.dot_dimension_numbers<[1], [0], [0], [1], [0, 0, 1, 1], [], []>} : vector<128x128xbf16>, vector<128x128xbf16>, vector<128x128xf32> -> vector<128x128xf32>
    %c0_42 = arith.constant 0 : index
    %c0_43 = arith.constant 0 : index
    %81 = vector.load %arg15[%c0_42, %c0_43] : memref<1x128xf32, #tpu.memory_space<vmem>>, vector<1x128xf32>
    %82 = vector.broadcast %81 : vector<1x128xf32> to vector<128x128xf32>
    %83 = arith.addf %80, %82 : vector<128x128xf32>
    %84 = vector.shape_cast %83 : vector<128x128xf32> to vector<2x64x128xf32>
    %85 = arith.addf %0, %84 : vector<2x64x128xf32>
    %cst_44 = arith.constant dense<0.000000e+00> : vector<2x64xf32>
    %86 = vector.multi_reduction <add>, %85, %cst_44 [2] : vector<2x64x128xf32> to vector<2x64xf32>
    %87 = vector.shape_cast %86 : vector<2x64xf32> to vector<2x64x1xf32>
    %cst_45 = arith.constant 1.280000e+02 : f32
    %88 = vector.broadcast %cst_45 : f32 to vector<2x64x1xf32>
    %89 = arith.divf %87, %88 : vector<2x64x1xf32>
    %90 = vector.broadcast %89 : vector<2x64x1xf32> to vector<2x64x128xf32>
    %91 = arith.subf %85, %90 : vector<2x64x128xf32>
    %92 = vector.broadcast %89 : vector<2x64x1xf32> to vector<2x64x128xf32>
    %93 = arith.subf %85, %92 : vector<2x64x128xf32>
    %94 = arith.mulf %91, %93 : vector<2x64x128xf32>
    %cst_46 = arith.constant dense<0.000000e+00> : vector<2x64xf32>
    %95 = vector.multi_reduction <add>, %94, %cst_46 [2] : vector<2x64x128xf32> to vector<2x64xf32>
    %96 = vector.shape_cast %95 : vector<2x64xf32> to vector<2x64x1xf32>
    %cst_47 = arith.constant 1.280000e+02 : f32
    %97 = vector.broadcast %cst_47 : f32 to vector<2x64x1xf32>
    %98 = arith.divf %96, %97 : vector<2x64x1xf32>
    %99 = vector.broadcast %89 : vector<2x64x1xf32> to vector<2x64x128xf32>
    %100 = arith.subf %85, %99 : vector<2x64x128xf32>
    %cst_48 = arith.constant 9.99999997E-7 : f32
    %101 = vector.broadcast %cst_48 : f32 to vector<2x64x1xf32>
    %102 = arith.addf %98, %101 : vector<2x64x1xf32>
    %103 = math.rsqrt %102 : vector<2x64x1xf32>
    %104 = vector.broadcast %103 : vector<2x64x1xf32> to vector<2x64x128xf32>
    %105 = arith.mulf %100, %104 : vector<2x64x128xf32>
    %c0_49 = arith.constant 0 : index
    %c0_50 = arith.constant 0 : index
    %c0_51 = arith.constant 0 : index
    %106 = vector.load %arg4[%c0_49, %c0_50, %c0_51] : memref<2x1x128xf32, #tpu.memory_space<vmem>>, vector<2x1x128xf32>
    %107 = vector.broadcast %106 : vector<2x1x128xf32> to vector<2x64x128xf32>
    %108 = arith.mulf %105, %107 : vector<2x64x128xf32>
    %c0_52 = arith.constant 0 : index
    %c0_53 = arith.constant 0 : index
    %c0_54 = arith.constant 0 : index
    %109 = vector.load %arg5[%c0_52, %c0_53, %c0_54] : memref<2x1x128xf32, #tpu.memory_space<vmem>>, vector<2x1x128xf32>
    %110 = vector.broadcast %109 : vector<2x1x128xf32> to vector<2x64x128xf32>
    %111 = arith.addf %108, %110 : vector<2x64x128xf32>
    %112 = vector.shape_cast %111 : vector<2x64x128xf32> to vector<128x128xf32>
    %113 = arith.truncf %112 : vector<128x128xf32> to vector<128x128xbf16>
    %c0_55 = arith.constant 0 : index
    %c0_56 = arith.constant 0 : index
    %114 = vector.load %arg16[%c0_55, %c0_56] : memref<128x256xbf16, #tpu.memory_space<vmem>>, vector<128x256xbf16>
    %cst_57 = arith.constant dense<0.000000e+00> : vector<128x256xf32>
    %115 = tpu.matmul %113, %114, %cst_57 {dimension_numbers = #tpu.dot_dimension_numbers<[1], [0], [0], [1], [0, 0, 1, 1], [], []>} : vector<128x128xbf16>, vector<128x256xbf16>, vector<128x256xf32> -> vector<128x256xf32>
    %c0_58 = arith.constant 0 : index
    %c0_59 = arith.constant 0 : index
    %116 = vector.load %arg17[%c0_58, %c0_59] : memref<1x256xf32, #tpu.memory_space<vmem>>, vector<1x256xf32>
    %117 = vector.broadcast %116 : vector<1x256xf32> to vector<128x256xf32>
    %118 = arith.addf %115, %117 : vector<128x256xf32>
    %cst_60 = arith.constant 5.000000e-01 : f32
    %119 = vector.broadcast %cst_60 : f32 to vector<128x256xf32>
    %120 = arith.mulf %119, %118 : vector<128x256xf32>
    %cst_61 = arith.constant 4.471500e-02 : f32
    %121 = vector.broadcast %cst_61 : f32 to vector<128x256xf32>
    %122 = arith.mulf %121, %118 : vector<128x256xf32>
    %123 = arith.mulf %122, %118 : vector<128x256xf32>
    %124 = arith.mulf %123, %118 : vector<128x256xf32>
    %125 = arith.addf %118, %124 : vector<128x256xf32>
    %cst_62 = arith.constant 0.797884583 : f32
    %126 = vector.broadcast %cst_62 : f32 to vector<128x256xf32>
    %127 = arith.mulf %126, %125 : vector<128x256xf32>
    %128 = math.tanh %127 : vector<128x256xf32>
    %cst_63 = arith.constant 1.000000e+00 : f32
    %129 = vector.broadcast %cst_63 : f32 to vector<128x256xf32>
    %130 = arith.addf %129, %128 : vector<128x256xf32>
    %131 = arith.mulf %120, %130 : vector<128x256xf32>
    %132 = arith.truncf %131 : vector<128x256xf32> to vector<128x256xbf16>
    %c0_64 = arith.constant 0 : index
    %c0_65 = arith.constant 0 : index
    %133 = vector.load %arg18[%c0_64, %c0_65] : memref<256x128xbf16, #tpu.memory_space<vmem>>, vector<256x128xbf16>
    %cst_66 = arith.constant dense<0.000000e+00> : vector<128x128xf32>
    %134 = tpu.matmul %132, %133, %cst_66 {dimension_numbers = #tpu.dot_dimension_numbers<[1], [0], [0], [1], [0, 0, 1, 1], [], []>} : vector<128x256xbf16>, vector<256x128xbf16>, vector<128x128xf32> -> vector<128x128xf32>
    %c0_67 = arith.constant 0 : index
    %c0_68 = arith.constant 0 : index
    %135 = vector.load %arg19[%c0_67, %c0_68] : memref<1x128xf32, #tpu.memory_space<vmem>>, vector<1x128xf32>
    %136 = vector.broadcast %135 : vector<1x128xf32> to vector<128x128xf32>
    %137 = arith.addf %134, %136 : vector<128x128xf32>
    %138 = vector.shape_cast %137 : vector<128x128xf32> to vector<2x64x128xf32>
    %139 = arith.addf %85, %138 : vector<2x64x128xf32>
    %c0_69 = arith.constant 0 : index
    %c0_70 = arith.constant 0 : index
    %c0_71 = arith.constant 0 : index
    %140 = vector.load %arg21[%c0_69, %c0_70, %c0_71] : memref<2x64x128xf32, #tpu.memory_space<vmem>>, vector<2x64x128xf32>
    tpu.vector_store %arg21[%c0_69, %c0_70, %c0_71], %139 {strides = array<i32>} : memref<2x64x128xf32, #tpu.memory_space<vmem>>, vector<2x64x128xf32>,
    %c0_72 = arith.constant 0 : index
    %c0_73 = arith.constant 0 : index
    %c0_74 = arith.constant 0 : index
    %141 = vector.load %arg22[%c0_72, %c0_73, %c0_74] : memref<2x64x128xf32, #tpu.memory_space<vmem>>, vector<2x64x128xf32>
    tpu.vector_store %arg22[%c0_72, %c0_73, %c0_74], %62 {strides = array<i32>} : memref<2x64x128xf32, #tpu.memory_space<vmem>>, vector<2x64x128xf32>,
    return
  }
  func.func @transform_0(%arg0: i32) -> (i32, i32, i32) {
    %c0_i32 = arith.constant 0 : i32
    %c0_i32_0 = arith.constant 0 : i32
    %c0_i32_1 = arith.constant 0 : i32
    return %arg0, %c0_i32, %c0_i32_0 : i32, i32, i32
  }
  func.func @transform_1(%arg0: i32) -> (i32, i32, i32) {
    %c0_i32 = arith.constant 0 : i32
    %c0_i32_0 = arith.constant 0 : i32
    %c0_i32_1 = arith.constant 0 : i32
    return %arg0, %c0_i32, %c0_i32_0 : i32, i32, i32
  }
  func.func @transform_2(%arg0: i32) -> (i32, i32, i32) {
    %c0_i32 = arith.constant 0 : i32
    %c0_i32_0 = arith.constant 0 : i32
    %c0_i32_1 = arith.constant 0 : i32
    return %arg0, %c0_i32, %c0_i32_0 : i32, i32, i32
  }
  func.func @transform_3(%arg0: i32) -> (i32, i32, i32) {
    %c0_i32 = arith.constant 0 : i32
    %c0_i32_0 = arith.constant 0 : i32
    %c0_i32_1 = arith.constant 0 : i32
    return %arg0, %c0_i32, %c0_i32_0 : i32, i32, i32
  }
  func.func @transform_4(%arg0: i32) -> (i32, i32, i32) {
    %c0_i32 = arith.constant 0 : i32
    %c0_i32_0 = arith.constant 0 : i32
    %c0_i32_1 = arith.constant 0 : i32
    return %arg0, %c0_i32, %c0_i32_0 : i32, i32, i32
  }
  func.func @transform_5(%arg0: i32) -> (i32, i32) {
    %c0_i32 = arith.constant 0 : i32
    %c0_i32_0 = arith.constant 0 : i32
    %c0_i32_1 = arith.constant 0 : i32
    return %c0_i32, %c0_i32_0 : i32, i32
  }
  func.func @transform_6(%arg0: i32) -> (i32, i32) {
    %c0_i32 = arith.constant 0 : i32
    %c0_i32_0 = arith.constant 0 : i32
    %c0_i32_1 = arith.constant 0 : i32
    return %c0_i32, %c0_i32_0 : i32, i32
  }
  func.func @transform_7(%arg0: i32) -> (i32, i32) {
    %c0_i32 = arith.constant 0 : i32
    %c0_i32_0 = arith.constant 0 : i32
    %c0_i32_1 = arith.constant 0 : i32
    return %c0_i32, %c0_i32_0 : i32, i32
  }
  func.func @transform_8(%arg0: i32) -> (i32, i32) {
    %c0_i32 = arith.constant 0 : i32
    %c0_i32_0 = arith.constant 0 : i32
    %c0_i32_1 = arith.constant 0 : i32
    return %c0_i32, %c0_i32_0 : i32, i32
  }
  func.func @transform_9(%arg0: i32) -> (i32, i32) {
    %c0_i32 = arith.constant 0 : i32
    %c0_i32_0 = arith.constant 0 : i32
    %c0_i32_1 = arith.constant 0 : i32
    return %c0_i32, %c0_i32_0 : i32, i32
  }
  func.func @transform_10(%arg0: i32) -> (i32, i32) {
    %c0_i32 = arith.constant 0 : i32
    %c0_i32_0 = arith.constant 0 : i32
    %c0_i32_1 = arith.constant 0 : i32
    return %c0_i32, %c0_i32_0 : i32, i32
  }
  func.func @transform_11(%arg0: i32) -> (i32, i32) {
    %c0_i32 = arith.constant 0 : i32
    %c0_i32_0 = arith.constant 0 : i32
    %c0_i32_1 = arith.constant 0 : i32
    return %c0_i32, %c0_i32_0 : i32, i32
  }
  func.func @transform_12(%arg0: i32) -> (i32, i32) {
    %c0_i32 = arith.constant 0 : i32
    %c0_i32_0 = arith.constant 0 : i32
    %c0_i32_1 = arith.constant 0 : i32
    return %c0_i32, %c0_i32_0 : i32, i32
  }
  func.func @transform_13(%arg0: i32) -> (i32, i32) {
    %c0_i32 = arith.constant 0 : i32
    %c0_i32_0 = arith.constant 0 : i32
    %c0_i32_1 = arith.constant 0 : i32
    return %c0_i32, %c0_i32_0 : i32, i32
  }
  func.func @transform_14(%arg0: i32) -> (i32, i32) {
    %c0_i32 = arith.constant 0 : i32
    %c0_i32_0 = arith.constant 0 : i32
    %c0_i32_1 = arith.constant 0 : i32
    return %c0_i32, %c0_i32_0 : i32, i32
  }
  func.func @transform_15(%arg0: i32) -> (i32, i32) {
    %c0_i32 = arith.constant 0 : i32
    %c0_i32_0 = arith.constant 0 : i32
    %c0_i32_1 = arith.constant 0 : i32
    return %c0_i32, %c0_i32_0 : i32, i32
  }
  func.func @transform_16(%arg0: i32) -> (i32, i32) {
    %c0_i32 = arith.constant 0 : i32
    %c0_i32_0 = arith.constant 0 : i32
    %c0_i32_1 = arith.constant 0 : i32
    return %c0_i32, %c0_i32_0 : i32, i32
  }
  func.func @transform_17(%arg0: i32) -> (i32, i32) {
    %c0_i32 = arith.constant 0 : i32
    %c0_i32_0 = arith.constant 0 : i32
    %c0_i32_1 = arith.constant 0 : i32
    return %c0_i32, %c0_i32_0 : i32, i32
  }
  func.func @transform_18(%arg0: i32) -> (i32, i32) {
    %c0_i32 = arith.constant 0 : i32
    %c0_i32_0 = arith.constant 0 : i32
    %c0_i32_1 = arith.constant 0 : i32
    return %c0_i32, %c0_i32_0 : i32, i32
  }
  func.func @transform_19(%arg0: i32) -> (i32, i32) {
    %c0_i32 = arith.constant 0 : i32
    %c0_i32_0 = arith.constant 0 : i32
    %c0_i32_1 = arith.constant 0 : i32
    return %c0_i32, %c0_i32_0 : i32, i32
  }
  func.func @transform_20(%arg0: i32) -> (i32, i32, i32) {
    %c0_i32 = arith.constant 0 : i32
    %c0_i32_0 = arith.constant 0 : i32
    %c0_i32_1 = arith.constant 0 : i32
    return %arg0, %c0_i32, %c0_i32_0 : i32, i32, i32
  }
  func.func @transform_21(%arg0: i32) -> (i32, i32, i32) {
    %c0_i32 = arith.constant 0 : i32
    %c0_i32_0 = arith.constant 0 : i32
    %c0_i32_1 = arith.constant 0 : i32
    return %arg0, %c0_i32, %c0_i32_0 : i32, i32, i32
  }
}

</mosaic_0001>

<llo_original>
// kernel: tpu_custom_call.1
$region0: #{tpu_custom_call.1}
  #allocation0 [shape = 'u32[]', space=smem, size = 0x4, offset = 0x4, fixed_abs, tag = 'smem constant byte address 0x4 - core index']
  #allocation1 [shape = 'u32[144,128]{1,0:T(1,128)}', space=vmem, size = 0x12000, scoped, tag = 'internal scratch']
  %s0 = inlined_call_operand.hbm [shape: f32[2,64,128], index: 0, kind: input, shape index: {}]
  %s1 = inlined_call_operand.vmem [shape: f32[2,1,128], index: 1, kind: input, shape index: {}]
  %s2 = inlined_call_operand.vmem [shape: f32[2,1,128], index: 2, kind: input, shape index: {}]
  %s3 = inlined_call_operand.vmem [shape: f32[2,1,128], index: 3, kind: input, shape index: {}]
  %s4 = inlined_call_operand.hbm [shape: f32[2,1,128], index: 4, kind: input, shape index: {}]
  %s5 = inlined_call_operand.hbm [shape: bf16[128,128], index: 5, kind: input, shape index: {}]
  %s6 = inlined_call_operand.vmem [shape: f32[1,128], index: 6, kind: input, shape index: {}]
  %s7 = inlined_call_operand.hbm [shape: bf16[128,128], index: 7, kind: input, shape index: {}]
  %s8 = inlined_call_operand.hbm [shape: f32[1,128], index: 8, kind: input, shape index: {}]
  %s9 = inlined_call_operand.hbm [shape: bf16[128,128], index: 9, kind: input, shape index: {}]
  %s10 = inlined_call_operand.hbm [shape: f32[1,128], index: 10, kind: input, shape index: {}]
  %s11 = inlined_call_operand.hbm [shape: bf16[128,128], index: 11, kind: input, shape index: {}]
  %s12 = inlined_call_operand.hbm [shape: f32[1,128], index: 12, kind: input, shape index: {}]
  %s13 = inlined_call_operand.hbm [shape: bf16[128,128], index: 13, kind: input, shape index: {}]
  %s14 = inlined_call_operand.hbm [shape: f32[1,128], index: 14, kind: input, shape index: {}]
  %s15 = inlined_call_operand.hbm [shape: bf16[128,256], index: 15, kind: input, shape index: {}]
  %s16 = inlined_call_operand.hbm [shape: f32[1,256], index: 16, kind: input, shape index: {}]
  %s17 = inlined_call_operand.hbm [shape: bf16[256,128], index: 17, kind: input, shape index: {}]
  %s18 = inlined_call_operand.hbm [shape: f32[1,128], index: 18, kind: input, shape index: {}]
  %s19 = inlined_call_operand.vmem [shape: bf16[128,128], index: 19, kind: input, shape index: {}]
  %s20 = inlined_call_operand.hbm [shape: f32[2,64,128], index: 20, kind: output, shape index: {0}]
  %s21 = inlined_call_operand.hbm [shape: f32[2,64,128], index: 21, kind: output, shape index: {1}]
  %22 = xla_tuple %s20, %s21
  %s23 = sld [smem:[#allocation0]]
  $region158: #{tpu_custom_call.1} parent=0
    _
  %s25 = ssub.s32 1, %s23
  %s26 = scalar_select 0, %s25, %s23
  $region1: #{tpu_custom_call.1} parent=0
    #allocation2 [shape = 'u8[65536]{0}', space=vmem, size = 0x10000, scoped, tag = 'input window, operand 0, single buffered']
    #allocation3 [shape = 's32[1]{0}', space=sflag, size = 0x4, scoped, tag = 'scoped memory for tpu_custom_call.1']
    #allocation4 [shape = 's32[1]{0}', space=sflag, size = 0x4, scoped, tag = 'scoped memory for tpu_custom_call.1']
    #allocation5 [shape = 'u8[1024]{0}', space=vmem, size = 0x400, scoped, tag = 'input window, operand 4, single buffered']
    #allocation6 [shape = 's32[1]{0}', space=sflag, size = 0x4, scoped, tag = 'scoped memory for tpu_custom_call.1']
    #allocation7 [shape = 'u8[32768]{0}', space=vmem, size = 0x8000, scoped, tag = 'input window, operand 5, single buffered']
    #allocation8 [shape = 'u8[32768]{0}', space=vmem, size = 0x8000, scoped, tag = 'input window, operand 7, single buffered']
    #allocation9 [shape = 's32[1]{0}', space=sflag, size = 0x4, scoped, tag = 'scoped memory for tpu_custom_call.1']
    #allocation10 [shape = 'u8[512]{0}', space=vmem, size = 0x400, scoped, tag = 'input window, operand 8, single buffered']
    #allocation11 [shape = 'u8[32768]{0}', space=vmem, size = 0x8000, scoped, tag = 'input window, operand 9, single buffered']
    #allocation12 [shape = 's32[1]{0}', space=sflag, size = 0x4, scoped, tag = 'scoped memory for tpu_custom_call.1']
    #allocation13 [shape = 'u8[512]{0}', space=vmem, size = 0x400, scoped, tag = 'input window, operand 10, single buffered']
    #allocation14 [shape = 'u8[32768]{0}', space=vmem, size = 0x8000, scoped, tag = 'input window, operand 11, single buffered']
    #allocation15 [shape = 's32[1]{0}', space=sflag, size = 0x4, scoped, tag = 'scoped memory for tpu_custom_call.1']
    #allocation16 [shape = 'u8[512]{0}', space=vmem, size = 0x400, scoped, tag = 'input window, operand 12, single buffered']
    #allocation17 [shape = 'u8[32768]{0}', space=vmem, size = 0x8000, scoped, tag = 'input window, operand 13, single buffered']
    #allocation18 [shape = 's32[1]{0}', space=sflag, size = 0x4, scoped, tag = 'scoped memory for tpu_custom_call.1']
    #allocation19 [shape = 'u8[512]{0}', space=vmem, size = 0x400, scoped, tag = 'input window, operand 14, single buffered']
    #allocation20 [shape = 'u8[65536]{0}', space=vmem, size = 0x10000, scoped, tag = 'input window, operand 15, single buffered']
    #allocation21 [shape = 's32[1]{0}', space=sflag, size = 0x4, scoped, tag = 'scoped memory for tpu_custom_call.1']
    #allocation22 [shape = 'u8[1024]{0}', space=vmem, size = 0x400, scoped, tag = 'input window, operand 16, single buffered']
    #allocation23 [shape = 'u8[65536]{0}', space=vmem, size = 0x10000, scoped, tag = 'input window, operand 17, single buffered']
    #allocation24 [shape = 's32[1]{0}', space=sflag, size = 0x4, scoped, tag = 'scoped memory for tpu_custom_call.1']
    #allocation25 [shape = 'u8[512]{0}', space=vmem, size = 0x400, scoped, tag = 'input window, operand 18, single buffered']
    #allocation26 [shape = 'u8[65536]{0}', space=vmem, size = 0x10000, scoped, tag = 'output window, operand 0, single buffered']
    #allocation27 [shape = 'u8[65536]{0}', space=vmem, size = 0x10000, scoped, tag = 'output window, operand 1, single buffered']
    #allocation28 [shape = 's32[1]{0}', space=sflag, size = 0x4, scoped, tag = 'scoped memory for tpu_custom_call.1']
    %27 = vsyncpa [#allocation3], 0
    %28 = vsyncpa [#allocation6], 0
    %29 = vsyncpa [#allocation9], 0
    %30 = vsyncpa [#allocation12], 0
    %31 = vsyncpa [#allocation15], 0
    %32 = vsyncpa [#allocation18], 0
    %33 = vsyncpa [#allocation21], 0
    %34 = vsyncpa [#allocation24], 0
    %35 = vsyncpa [#allocation4], 0
    %36 = vsyncpa [#allocation28], 0
    // Predicated region
    $region2: #{tpu_custom_call.1} parent=1 // pred_check
      _
    $region3: #{tpu_custom_call.1} parent=1 // pred_check_branch
      %38 = sbr.rel (0) target = $region5
    $region4: #{tpu_custom_call.1} parent=1 // pred_region
      %s40 = ssub.s32 2048, 2048
      %41 = vsyncadd [#allocation3], %s40
      %s42 = sshll.u32 [#allocation2], 4
      %s43 = int_to_ptr.vmem [resolvable:$true] %s42
      %48 = dma.hbm_to_vmem [thread:$0]  %s0, 2048, %s43, [#allocation3], 128, 128, 8
    $region5: #{tpu_custom_call.1} parent=1 // pred_fallthru
      _
    // Predicated region
    $region6: #{tpu_custom_call.1} parent=1 // pred_check
      _
    $region7: #{tpu_custom_call.1} parent=1 // pred_check_branch
      %50 = sbr.rel (0) target = $region9
    $region8: #{tpu_custom_call.1} parent=1 // pred_region
      _
    $region9: #{tpu_custom_call.1} parent=1 // pred_fallthru
      _
    // Predicated region
    $region10: #{tpu_custom_call.1} parent=1 // pred_check
      _
    $region11: #{tpu_custom_call.1} parent=1 // pred_check_branch
      %52 = sbr.rel (0) target = $region13
    $region12: #{tpu_custom_call.1} parent=1 // pred_region
      _
    $region13: #{tpu_custom_call.1} parent=1 // pred_fallthru
      _
    // Predicated region
    $region14: #{tpu_custom_call.1} parent=1 // pred_check
      _
    $region15: #{tpu_custom_call.1} parent=1 // pred_check_branch
      %54 = sbr.rel (0) target = $region17
    $region16: #{tpu_custom_call.1} parent=1 // pred_region
      _
    $region17: #{tpu_custom_call.1} parent=1 // pred_fallthru
      _
    // Predicated region
    $region18: #{tpu_custom_call.1} parent=1 // pred_check
      _
    $region19: #{tpu_custom_call.1} parent=1 // pred_check_branch
      %56 = sbr.rel (0) target = $region21
    $region20: #{tpu_custom_call.1} parent=1 // pred_region
      %s58 = ssub.s32 32, 32
      %59 = vsyncadd [#allocation6], %s58
      %s60 = sshll.u32 [#allocation5], 4
      %s61 = int_to_ptr.vmem [resolvable:$true] %s60
      %66 = dma.hbm_to_vmem [thread:$0]  %s4, 32, %s61, [#allocation6], 16, 16, 1
    $region21: #{tpu_custom_call.1} parent=1 // pred_fallthru
      _
    // Predicated region
    $region22: #{tpu_custom_call.1} parent=1 // pred_check
      _
    $region23: #{tpu_custom_call.1} parent=1 // pred_check_branch
      %68 = sbr.rel (0) target = $region25
    $region24: #{tpu_custom_call.1} parent=1 // pred_region
      %s70 = ssub.s32 1024, 1024
      %71 = vsyncadd [#allocation6], %s70
      %s72 = sshll.u32 [#allocation7], 4
      %s73 = int_to_ptr.vmem [resolvable:$true] %s72
      %78 = dma.hbm_to_vmem [thread:$0]  %s5, 1024, %s73, [#allocation6], 64, 64, 4
    $region25: #{tpu_custom_call.1} parent=1 // pred_fallthru
      _
    // Predicated region
    $region26: #{tpu_custom_call.1} parent=1 // pred_check
      _
    $region27: #{tpu_custom_call.1} parent=1 // pred_check_branch
      %80 = sbr.rel (0) target = $region29
    $region28: #{tpu_custom_call.1} parent=1 // pred_region
      _
    $region29: #{tpu_custom_call.1} parent=1 // pred_fallthru
      _
    // Predicated region
    $region30: #{tpu_custom_call.1} parent=1 // pred_check
      _
    $region31: #{tpu_custom_call.1} parent=1 // pred_check_branch
      %82 = sbr.rel (0) target = $region33
    $region32: #{tpu_custom_call.1} parent=1 // pred_region
      %s84 = ssub.s32 1024, 1024
      %85 = vsyncadd [#allocation9], %s84
      %s86 = sshll.u32 [#allocation8], 4
      %s87 = int_to_ptr.vmem [resolvable:$true] %s86
      %92 = dma.hbm_to_vmem [thread:$0]  %s7, 1024, %s87, [#allocation9], 64, 64, 4
    $region33: #{tpu_custom_call.1} parent=1 // pred_fallthru
      _
    // Predicated region
    $region34: #{tpu_custom_call.1} parent=1 // pred_check
      _
    $region35: #{tpu_custom_call.1} parent=1 // pred_check_branch
      %94 = sbr.rel (0) target = $region37
    $region36: #{tpu_custom_call.1} parent=1 // pred_region
      %s96 = ssub.s32 16, 16
      %97 = vsyncadd [#allocation9], %s96
      %s99 = sshll.u32 [#allocation10], 4
      %s100 = int_to_ptr.vmem [resolvable:$true] %s99
      %102 = dma.hbm_to_vmem [thread:$0]  %s8, 16, %s100, [#allocation9]
    $region37: #{tpu_custom_call.1} parent=1 // pred_fallthru
      _
    // Predicated region
    $region38: #{tpu_custom_call.1} parent=1 // pred_check
      _
    $region39: #{tpu_custom_call.1} parent=1 // pred_check_branch
      %104 = sbr.rel (0) target = $region41
    $region40: #{tpu_custom_call.1} parent=1 // pred_region
      %s106 = ssub.s32 1024, 1024
      %107 = vsyncadd [#allocation12], %s106
      %s108 = sshll.u32 [#allocation11], 4
      %s109 = int_to_ptr.vmem [resolvable:$true] %s108
      %114 = dma.hbm_to_vmem [thread:$0]  %s9, 1024, %s109, [#allocation12], 64, 64, 4
    $region41: #{tpu_custom_call.1} parent=1 // pred_fallthru
      _
    // Predicated region
    $region42: #{tpu_custom_call.1} parent=1 // pred_check
      _
    $region43: #{tpu_custom_call.1} parent=1 // pred_check_branch
      %116 = sbr.rel (0) target = $region45
    $region44: #{tpu_custom_call.1} parent=1 // pred_region
      %s118 = ssub.s32 16, 16
      %119 = vsyncadd [#allocation12], %s118
      %s121 = sshll.u32 [#allocation13], 4
      %s122 = int_to_ptr.vmem [resolvable:$true] %s121
      %124 = dma.hbm_to_vmem [thread:$0]  %s10, 16, %s122, [#allocation12]
    $region45: #{tpu_custom_call.1} parent=1 // pred_fallthru
      _
    // Predicated region
    $region46: #{tpu_custom_call.1} parent=1 // pred_check
      _
    $region47: #{tpu_custom_call.1} parent=1 // pred_check_branch
      %126 = sbr.rel (0) target = $region49
    $region48: #{tpu_custom_call.1} parent=1 // pred_region
      %s128 = ssub.s32 1024, 1024
      %129 = vsyncadd [#allocation15], %s128
      %s130 = sshll.u32 [#allocation14], 4
      %s131 = int_to_ptr.vmem [resolvable:$true] %s130
      %136 = dma.hbm_to_vmem [thread:$0]  %s11, 1024, %s131, [#allocation15], 64, 64, 4
    $region49: #{tpu_custom_call.1} parent=1 // pred_fallthru
      _
    // Predicated region
    $region50: #{tpu_custom_call.1} parent=1 // pred_check
      _
    $region51: #{tpu_custom_call.1} parent=1 // pred_check_branch
      %138 = sbr.rel (0) target = $region53
    $region52: #{tpu_custom_call.1} parent=1 // pred_region
      %s140 = ssub.s32 16, 16
      %141 = vsyncadd [#allocation15], %s140
      %s143 = sshll.u32 [#allocation16], 4
      %s144 = int_to_ptr.vmem [resolvable:$true] %s143
      %146 = dma.hbm_to_vmem [thread:$0]  %s12, 16, %s144, [#allocation15]
    $region53: #{tpu_custom_call.1} parent=1 // pred_fallthru
      _
    // Predicated region
    $region54: #{tpu_custom_call.1} parent=1 // pred_check
      _
    $region55: #{tpu_custom_call.1} parent=1 // pred_check_branch
      %148 = sbr.rel (0) target = $region57
    $region56: #{tpu_custom_call.1} parent=1 // pred_region
      %s150 = ssub.s32 1024, 1024
      %151 = vsyncadd [#allocation18], %s150
      %s152 = sshll.u32 [#allocation17], 4
      %s153 = int_to_ptr.vmem [resolvable:$true] %s152
      %158 = dma.hbm_to_vmem [thread:$0]  %s13, 1024, %s153, [#allocation18], 64, 64, 4
    $region57: #{tpu_custom_call.1} parent=1 // pred_fallthru
      _
    // Predicated region
    $region58: #{tpu_custom_call.1} parent=1 // pred_check
      _
    $region59: #{tpu_custom_call.1} parent=1 // pred_check_branch
      %160 = sbr.rel (0) target = $region61
    $region60: #{tpu_custom_call.1} parent=1 // pred_region
      %s162 = ssub.s32 16, 16
      %163 = vsyncadd [#allocation18], %s162
      %s165 = sshll.u32 [#allocation19], 4
      %s166 = int_to_ptr.vmem [resolvable:$true] %s165
      %168 = dma.hbm_to_vmem [thread:$0]  %s14, 16, %s166, [#allocation18]
    $region61: #{tpu_custom_call.1} parent=1 // pred_fallthru
      _
    // Predicated region
    $region62: #{tpu_custom_call.1} parent=1 // pred_check
      _
    $region63: #{tpu_custom_call.1} parent=1 // pred_check_branch
      %170 = sbr.rel (0) target = $region65
    $region64: #{tpu_custom_call.1} parent=1 // pred_region
      %s172 = ssub.s32 2048, 2048
      %173 = vsyncadd [#allocation21], %s172
      %s174 = sshll.u32 [#allocation20], 4
      %s175 = int_to_ptr.vmem [resolvable:$true] %s174
      %180 = dma.hbm_to_vmem [thread:$0]  %s15, 2048, %s175, [#allocation21], 128, 128, 8
    $region65: #{tpu_custom_call.1} parent=1 // pred_fallthru
      _
    // Predicated region
    $region66: #{tpu_custom_call.1} parent=1 // pred_check
      _
    $region67: #{tpu_custom_call.1} parent=1 // pred_check_branch
      %182 = sbr.rel (0) target = $region69
    $region68: #{tpu_custom_call.1} parent=1 // pred_region
      %s184 = ssub.s32 32, 32
      %185 = vsyncadd [#allocation21], %s184
      %s187 = sshll.u32 [#allocation22], 4
      %s188 = int_to_ptr.vmem [resolvable:$true] %s187
      %190 = dma.hbm_to_vmem [thread:$0]  %s16, 32, %s188, [#allocation21]
    $region69: #{tpu_custom_call.1} parent=1 // pred_fallthru
      _
    // Predicated region
    $region70: #{tpu_custom_call.1} parent=1 // pred_check
      _
    $region71: #{tpu_custom_call.1} parent=1 // pred_check_branch
      %192 = sbr.rel (0) target = $region73
    $region72: #{tpu_custom_call.1} parent=1 // pred_region
      %s194 = ssub.s32 2048, 2048
      %195 = vsyncadd [#allocation24], %s194
      %s196 = sshll.u32 [#allocation23], 4
      %s197 = int_to_ptr.vmem [resolvable:$true] %s196
      %202 = dma.hbm_to_vmem [thread:$0]  %s17, 2048, %s197, [#allocation24], 64, 64, 4
    $region73: #{tpu_custom_call.1} parent=1 // pred_fallthru
      _
    // Predicated region
    $region74: #{tpu_custom_call.1} parent=1 // pred_check
      _
    $region75: #{tpu_custom_call.1} parent=1 // pred_check_branch
      %204 = sbr.rel (0) target = $region77
    $region76: #{tpu_custom_call.1} parent=1 // pred_region
      %s206 = ssub.s32 16, 16
      %207 = vsyncadd [#allocation24], %s206
      %s209 = sshll.u32 [#allocation25], 4
      %s210 = int_to_ptr.vmem [resolvable:$true] %s209
      %212 = dma.hbm_to_vmem [thread:$0]  %s18, 16, %s210, [#allocation24]
    $region77: #{tpu_custom_call.1} parent=1 // pred_fallthru
      _
    // Predicated region
    $region78: #{tpu_custom_call.1} parent=1 // pred_check
      _
    $region79: #{tpu_custom_call.1} parent=1 // pred_check_branch
      %214 = sbr.rel (0) target = $region81
    $region80: #{tpu_custom_call.1} parent=1 // pred_region
      _
    $region81: #{tpu_custom_call.1} parent=1 // pred_fallthru
      _
    // Predicated region
    $region82: #{tpu_custom_call.1} parent=1 // pred_check
      _
    $region83: #{tpu_custom_call.1} parent=1 // pred_check_branch
      %216 = sbr.rel (0) target = $region85
    $region84: #{tpu_custom_call.1} parent=1 // pred_region
      %217 = dma.done [#allocation3], 2048
    $region85: #{tpu_custom_call.1} parent=1 // pred_fallthru
      _
    // Predicated region
    $region86: #{tpu_custom_call.1} parent=1 // pred_check
      _
    $region87: #{tpu_custom_call.1} parent=1 // pred_check_branch
      %219 = sbr.rel (0) target = $region89
    $region88: #{tpu_custom_call.1} parent=1 // pred_region
      %220 = dma.done [#allocation6], 32
    $region89: #{tpu_custom_call.1} parent=1 // pred_fallthru
      _
    // Predicated region
    $region90: #{tpu_custom_call.1} parent=1 // pred_check
      _
    $region91: #{tpu_custom_call.1} parent=1 // pred_check_branch
      %222 = sbr.rel (0) target = $region93
    $region92: #{tpu_custom_call.1} parent=1 // pred_region
      %223 = dma.done [#allocation6], 1024
    $region93: #{tpu_custom_call.1} parent=1 // pred_fallthru
      _
    // Predicated region
    $region94: #{tpu_custom_call.1} parent=1 // pred_check
      _
    $region95: #{tpu_custom_call.1} parent=1 // pred_check_branch
      %225 = sbr.rel (0) target = $region97
    $region96: #{tpu_custom_call.1} parent=1 // pred_region
      %226 = dma.done [#allocation9], 1024
    $region97: #{tpu_custom_call.1} parent=1 // pred_fallthru
      _
    // Predicated region
    $region98: #{tpu_custom_call.1} parent=1 // pred_check
      _
    $region99: #{tpu_custom_call.1} parent=1 // pred_check_branch
      %228 = sbr.rel (0) target = $region101
    $region100: #{tpu_custom_call.1} parent=1 // pred_region
      %229 = dma.done [#allocation9], 16
    $region101: #{tpu_custom_call.1} parent=1 // pred_fallthru
      _
    // Predicated region
    $region102: #{tpu_custom_call.1} parent=1 // pred_check
      _
    $region103: #{tpu_custom_call.1} parent=1 // pred_check_branch
      %231 = sbr.rel (0) target = $region105
    $region104: #{tpu_custom_call.1} parent=1 // pred_region
      %232 = dma.done [#allocation12], 1024
    $region105: #{tpu_custom_call.1} parent=1 // pred_fallthru
      _
    // Predicated region
    $region106: #{tpu_custom_call.1} parent=1 // pred_check
      _
    $region107: #{tpu_custom_call.1} parent=1 // pred_check_branch
      %234 = sbr.rel (0) target = $region109
    $region108: #{tpu_custom_call.1} parent=1 // pred_region
      %235 = dma.done [#allocation12], 16
    $region109: #{tpu_custom_call.1} parent=1 // pred_fallthru
      _
    // Predicated region
    $region110: #{tpu_custom_call.1} parent=1 // pred_check
      _
    $region111: #{tpu_custom_call.1} parent=1 // pred_check_branch
      %237 = sbr.rel (0) target = $region113
    $region112: #{tpu_custom_call.1} parent=1 // pred_region
      %238 = dma.done [#allocation15], 1024
    $region113: #{tpu_custom_call.1} parent=1 // pred_fallthru
      _
    // Predicated region
    $region114: #{tpu_custom_call.1} parent=1 // pred_check
      _
    $region115: #{tpu_custom_call.1} parent=1 // pred_check_branch
      %240 = sbr.rel (0) target = $region117
    $region116: #{tpu_custom_call.1} parent=1 // pred_region
      %241 = dma.done [#allocation15], 16
    $region117: #{tpu_custom_call.1} parent=1 // pred_fallthru
      _
    // Predicated region
    $region118: #{tpu_custom_call.1} parent=1 // pred_check
      _
    $region119: #{tpu_custom_call.1} parent=1 // pred_check_branch
      %243 = sbr.rel (0) target = $region121
    $region120: #{tpu_custom_call.1} parent=1 // pred_region
      %244 = dma.done [#allocation18], 1024
    $region121: #{tpu_custom_call.1} parent=1 // pred_fallthru
      _
    // Predicated region
    $region122: #{tpu_custom_call.1} parent=1 // pred_check
      _
    $region123: #{tpu_custom_call.1} parent=1 // pred_check_branch
      %246 = sbr.rel (0) target = $region125
    $region124: #{tpu_custom_call.1} parent=1 // pred_region
      %247 = dma.done [#allocation18], 16
    $region125: #{tpu_custom_call.1} parent=1 // pred_fallthru
      _
    // Predicated region
    $region126: #{tpu_custom_call.1} parent=1 // pred_check
      _
    $region127: #{tpu_custom_call.1} parent=1 // pred_check_branch
      %249 = sbr.rel (0) target = $region129
    $region128: #{tpu_custom_call.1} parent=1 // pred_region
      %250 = dma.done [#allocation21], 2048
    $region129: #{tpu_custom_call.1} parent=1 // pred_fallthru
      _
    // Predicated region
    $region130: #{tpu_custom_call.1} parent=1 // pred_check
      _
    $region131: #{tpu_custom_call.1} parent=1 // pred_check_branch
      %252 = sbr.rel (0) target = $region133
    $region132: #{tpu_custom_call.1} parent=1 // pred_region
      %253 = dma.done [#allocation21], 32
    $region133: #{tpu_custom_call.1} parent=1 // pred_fallthru
      _
    // Predicated region
    $region134: #{tpu_custom_call.1} parent=1 // pred_check
      _
    $region135: #{tpu_custom_call.1} parent=1 // pred_check_branch
      %255 = sbr.rel (0) target = $region137
    $region136: #{tpu_custom_call.1} parent=1 // pred_region
      %256 = dma.done [#allocation24], 2048
    $region137: #{tpu_custom_call.1} parent=1 // pred_fallthru
      _
    // Predicated region
    $region138: #{tpu_custom_call.1} parent=1 // pred_check
      _
    $region139: #{tpu_custom_call.1} parent=1 // pred_check_branch
      %258 = sbr.rel (0) target = $region141
    $region140: #{tpu_custom_call.1} parent=1 // pred_region
      %259 = dma.done [#allocation24], 16
    $region141: #{tpu_custom_call.1} parent=1 // pred_fallthru
      _
    %v261 = vld [vmem:[#allocation2] sm:$0xff]
    %v262 = vld [vmem:[#allocation2 + $0x8] sm:$0xff]
    %v263 = vld [vmem:[#allocation2 + $0x10] sm:$0xff]
    %v264 = vld [vmem:[#allocation2 + $0x18] sm:$0xff]
    %v265 = vld [vmem:[#allocation2 + $0x20] sm:$0xff]
    %v266 = vld [vmem:[#allocation2 + $0x28] sm:$0xff]
    %v267 = vld [vmem:[#allocation2 + $0x30] sm:$0xff]
    %v268 = vld [vmem:[#allocation2 + $0x38] sm:$0xff]
    %v269 = vld [vmem:[#allocation2 + $0x40] sm:$0xff]
    %v270 = vld [vmem:[#allocation2 + $0x48] sm:$0xff]
    %v271 = vld [vmem:[#allocation2 + $0x50] sm:$0xff]
    %v272 = vld [vmem:[#allocation2 + $0x58] sm:$0xff]
    %v273 = vld [vmem:[#allocation2 + $0x60] sm:$0xff]
    %v274 = vld [vmem:[#allocation2 + $0x68] sm:$0xff]
    %v275 = vld [vmem:[#allocation2 + $0x70] sm:$0xff]
    %v276 = vld [vmem:[#allocation2 + $0x78] sm:$0xff]
    %277 = vadd.xlane.f32.xlu0 %v261
    %v278 = vpop.xlane.xlu0 %277
    %279 = vadd.xlane.f32.xlu0 %v262
    %v280 = vpop.xlane.xlu0 %279
    %281 = vadd.xlane.f32.xlu0 %v263
    %v282 = vpop.xlane.xlu0 %281
    %283 = vadd.xlane.f32.xlu0 %v264
    %v284 = vpop.xlane.xlu0 %283
    %285 = vadd.xlane.f32.xlu0 %v265
    %v286 = vpop.xlane.xlu0 %285
    %287 = vadd.xlane.f32.xlu0 %v266
    %v288 = vpop.xlane.xlu0 %287
    %289 = vadd.xlane.f32.xlu0 %v267
    %v290 = vpop.xlane.xlu0 %289
    %291 = vadd.xlane.f32.xlu0 %v268
    %v292 = vpop.xlane.xlu0 %291
    %293 = vadd.xlane.f32.xlu0 %v269
    %v294 = vpop.xlane.xlu0 %293
    %295 = vadd.xlane.f32.xlu0 %v270
    %v296 = vpop.xlane.xlu0 %295
    %297 = vadd.xlane.f32.xlu0 %v271
    %v298 = vpop.xlane.xlu0 %297
    %299 = vadd.xlane.f32.xlu0 %v272
    %v300 = vpop.xlane.xlu0 %299
    %301 = vadd.xlane.f32.xlu0 %v273
    %v302 = vpop.xlane.xlu0 %301
    %303 = vadd.xlane.f32.xlu0 %v274
    %v304 = vpop.xlane.xlu0 %303
    %305 = vadd.xlane.f32.xlu0 %v275
    %v306 = vpop.xlane.xlu0 %305
    %307 = vadd.xlane.f32.xlu0 %v276
    %v308 = vpop.xlane.xlu0 %307
    %v309 = vrcp.pop 128.0
    %v310 = vmul.f32 %v278, %v309
    %v311 = vmul.f32 %v280, %v309
    %v312 = vmul.f32 %v282, %v309
    %v313 = vmul.f32 %v284, %v309
    %v314 = vmul.f32 %v286, %v309
    %v315 = vmul.f32 %v288, %v309
    %v316 = vmul.f32 %v290, %v309
    %v317 = vmul.f32 %v292, %v309
    %v318 = vmul.f32 %v294, %v309
    %v319 = vmul.f32 %v296, %v309
    %v320 = vmul.f32 %v298, %v309
    %v321 = vmul.f32 %v300, %v309
    %v322 = vmul.f32 %v302, %v309
    %v323 = vmul.f32 %v304, %v309
    %v324 = vmul.f32 %v306, %v309
    %v325 = vmul.f32 %v308, %v309
    %v326 = vsub.f32 %v261, %v310
    %v327 = vsub.f32 %v262, %v311
    %v328 = vsub.f32 %v263, %v312
    %v329 = vsub.f32 %v264, %v313
    %v330 = vsub.f32 %v265, %v314
    %v331 = vsub.f32 %v266, %v315
    %v332 = vsub.f32 %v267, %v316
    %v333 = vsub.f32 %v268, %v317
    %v334 = vsub.f32 %v269, %v318
    %v335 = vsub.f32 %v270, %v319
    %v336 = vsub.f32 %v271, %v320
    %v337 = vsub.f32 %v272, %v321
    %v338 = vsub.f32 %v273, %v322
    %v339 = vsub.f32 %v274, %v323
    %v340 = vsub.f32 %v275, %v324
    %v341 = vsub.f32 %v276, %v325
    %v342 = vmul.f32 %v326, %v326
    %v343 = vmul.f32 %v327, %v327
    %v344 = vmul.f32 %v328, %v328
    %v345 = vmul.f32 %v329, %v329
    %v346 = vmul.f32 %v330, %v330
    %v347 = vmul.f32 %v331, %v331
    %v348 = vmul.f32 %v332, %v332
    %v349 = vmul.f32 %v333, %v333
    %v350 = vmul.f32 %v334, %v334
    %v351 = vmul.f32 %v335, %v335
    %v352 = vmul.f32 %v336, %v336
    %v353 = vmul.f32 %v337, %v337
    %v354 = vmul.f32 %v338, %v338
    %v355 = vmul.f32 %v339, %v339
    %v356 = vmul.f32 %v340, %v340
    %v357 = vmul.f32 %v341, %v341
    %358 = vadd.xlane.f32.xlu0 %v342
    %v359 = vpop.xlane.xlu0 %358
    %360 = vadd.xlane.f32.xlu0 %v343
    %v361 = vpop.xlane.xlu0 %360
    %362 = vadd.xlane.f32.xlu0 %v344
    %v363 = vpop.xlane.xlu0 %362
    %364 = vadd.xlane.f32.xlu0 %v345
    %v365 = vpop.xlane.xlu0 %364
    %366 = vadd.xlane.f32.xlu0 %v346
    %v367 = vpop.xlane.xlu0 %366
    %368 = vadd.xlane.f32.xlu0 %v347
    %v369 = vpop.xlane.xlu0 %368
    %370 = vadd.xlane.f32.xlu0 %v348
    %v371 = vpop.xlane.xlu0 %370
    %372 = vadd.xlane.f32.xlu0 %v349
    %v373 = vpop.xlane.xlu0 %372
    %374 = vadd.xlane.f32.xlu0 %v350
    %v375 = vpop.xlane.xlu0 %374
    %376 = vadd.xlane.f32.xlu0 %v351
    %v377 = vpop.xlane.xlu0 %376
    %378 = vadd.xlane.f32.xlu0 %v352
    %v379 = vpop.xlane.xlu0 %378
    %380 = vadd.xlane.f32.xlu0 %v353
    %v381 = vpop.xlane.xlu0 %380
    %382 = vadd.xlane.f32.xlu0 %v354
    %v383 = vpop.xlane.xlu0 %382
    %384 = vadd.xlane.f32.xlu0 %v355
    %v385 = vpop.xlane.xlu0 %384
    %386 = vadd.xlane.f32.xlu0 %v356
    %v387 = vpop.xlane.xlu0 %386
    %388 = vadd.xlane.f32.xlu0 %v357
    %v389 = vpop.xlane.xlu0 %388
    %v390 = vmul.f32 %v359, %v309
    %v391 = vmul.f32 %v361, %v309
    %v392 = vmul.f32 %v363, %v309
    %v393 = vmul.f32 %v365, %v309
    %v394 = vmul.f32 %v367, %v309
    %v395 = vmul.f32 %v369, %v309
    %v396 = vmul.f32 %v371, %v309
    %v397 = vmul.f32 %v373, %v309
    %v398 = vmul.f32 %v375, %v309
    %v399 = vmul.f32 %v377, %v309
    %v400 = vmul.f32 %v379, %v309
    %v401 = vmul.f32 %v381, %v309
    %v402 = vmul.f32 %v383, %v309
    %v403 = vmul.f32 %v385, %v309
    %v404 = vmul.f32 %v387, %v309
    %v405 = vmul.f32 %v389, %v309
    %v406 = vadd.f32 %v390, 1e-06
    %v407 = vadd.f32 %v391, 1e-06
    %v408 = vadd.f32 %v392, 1e-06
    %v409 = vadd.f32 %v393, 1e-06
    %v410 = vadd.f32 %v394, 1e-06
    %v411 = vadd.f32 %v395, 1e-06
    %v412 = vadd.f32 %v396, 1e-06
    %v413 = vadd.f32 %v397, 1e-06
    %v414 = vadd.f32 %v398, 1e-06
    %v415 = vadd.f32 %v399, 1e-06
    %v416 = vadd.f32 %v400, 1e-06
    %v417 = vadd.f32 %v401, 1e-06
    %v418 = vadd.f32 %v402, 1e-06
    %v419 = vadd.f32 %v403, 1e-06
    %v420 = vadd.f32 %v404, 1e-06
    %v421 = vadd.f32 %v405, 1e-06
    %v422 = vrsqrt.pop %v406
    %v423 = vrsqrt.pop %v407
    %v424 = vrsqrt.pop %v408
    %v425 = vrsqrt.pop %v409
    %v426 = vrsqrt.pop %v410
    %v427 = vrsqrt.pop %v411
    %v428 = vrsqrt.pop %v412
    %v429 = vrsqrt.pop %v413
    %v430 = vrsqrt.pop %v414
    %v431 = vrsqrt.pop %v415
    %v432 = vrsqrt.pop %v416
    %v433 = vrsqrt.pop %v417
    %v434 = vrsqrt.pop %v418
    %v435 = vrsqrt.pop %v419
    %v436 = vrsqrt.pop %v420
    %v437 = vrsqrt.pop %v421
    %v438 = vmul.f32 %v326, %v422
    %v439 = vmul.f32 %v327, %v423
    %v440 = vmul.f32 %v328, %v424
    %v441 = vmul.f32 %v329, %v425
    %v442 = vmul.f32 %v330, %v426
    %v443 = vmul.f32 %v331, %v427
    %v444 = vmul.f32 %v332, %v428
    %v445 = vmul.f32 %v333, %v429
    %v446 = vmul.f32 %v334, %v430
    %v447 = vmul.f32 %v335, %v431
    %v448 = vmul.f32 %v336, %v432
    %v449 = vmul.f32 %v337, %v433
    %v450 = vmul.f32 %v338, %v434
    %v451 = vmul.f32 %v339, %v435
    %v452 = vmul.f32 %v340, %v436
    %v453 = vmul.f32 %v341, %v437
    %v454 = vld [vmem:[%s1] sm:$0x1]
    %v455 = vld [vmem:[%s1 + $0x1] sm:$0x1]
    %v458 = vlaneseq
    %v459 = vshrl.u32 %v458, 7
    %v460 = vsub.s32 0, %v459
    %v461 = vrot.slane %v454, %v460
    %v462 = vlaneseq
    %v463 = vshrl.u32 %v462, 7
    %v464 = vsub.s32 0, %v463
    %v465 = vrot.slane %v455, %v464
    %v468 = vmul.f32 %v438, %v461
    %v469 = vmul.f32 %v439, %v461
    %v470 = vmul.f32 %v440, %v461
    %v471 = vmul.f32 %v441, %v461
    %v472 = vmul.f32 %v442, %v461
    %v473 = vmul.f32 %v443, %v461
    %v474 = vmul.f32 %v444, %v461
    %v475 = vmul.f32 %v445, %v461
    %v476 = vmul.f32 %v446, %v465
    %v477 = vmul.f32 %v447, %v465
    %v478 = vmul.f32 %v448, %v465
    %v479 = vmul.f32 %v449, %v465
    %v480 = vmul.f32 %v450, %v465
    %v481 = vmul.f32 %v451, %v465
    %v482 = vmul.f32 %v452, %v465
    %v483 = vmul.f32 %v453, %v465
    %v484 = vld [vmem:[%s2] sm:$0x1]
    %v485 = vld [vmem:[%s2 + $0x1] sm:$0x1]
    %v488 = vlaneseq
    %v489 = vshrl.u32 %v488, 7
    %v490 = vsub.s32 0, %v489
    %v491 = vrot.slane %v484, %v490
    %v492 = vlaneseq
    %v493 = vshrl.u32 %v492, 7
    %v494 = vsub.s32 0, %v493
    %v495 = vrot.slane %v485, %v494
    %v498 = vadd.f32 %v468, %v491
    %v499 = vadd.f32 %v469, %v491
    %v500 = vadd.f32 %v470, %v491
    %v501 = vadd.f32 %v471, %v491
    %v502 = vadd.f32 %v472, %v491
    %v503 = vadd.f32 %v473, %v491
    %v504 = vadd.f32 %v474, %v491
    %v505 = vadd.f32 %v475, %v491
    %v506 = vadd.f32 %v476, %v495
    %v507 = vadd.f32 %v477, %v495
    %v508 = vadd.f32 %v478, %v495
    %v509 = vadd.f32 %v479, %v495
    %v510 = vadd.f32 %v480, %v495
    %v511 = vadd.f32 %v481, %v495
    %v512 = vadd.f32 %v482, %v495
    %v513 = vadd.f32 %v483, %v495
    %v514 = vpack.c.bf16 %v499, %v498
    %v515 = vpack.c.bf16 %v501, %v500
    %v516 = vpack.c.bf16 %v503, %v502
    %v517 = vpack.c.bf16 %v505, %v504
    %v518 = vpack.c.bf16 %v507, %v506
    %v519 = vpack.c.bf16 %v509, %v508
    %v520 = vpack.c.bf16 %v511, %v510
    %v521 = vpack.c.bf16 %v513, %v512
    %v522 = vld [vmem:[#allocation7] sm:$0xf]
    %v523 = vld [vmem:[#allocation7 + $0x4] sm:$0xf]
    %v524 = vld [vmem:[#allocation7 + $0x8] sm:$0xf]
    %v525 = vld [vmem:[#allocation7 + $0xc] sm:$0xf]
    %v526 = vld [vmem:[#allocation7 + $0x10] sm:$0xf]
    %v527 = vld [vmem:[#allocation7 + $0x14] sm:$0xf]
    %v528 = vld [vmem:[#allocation7 + $0x18] sm:$0xf]
    %v529 = vld [vmem:[#allocation7 + $0x1c] sm:$0xf]
    %v530 = vld [vmem:[#allocation7 + $0x20] sm:$0xf]
    %v531 = vld [vmem:[#allocation7 + $0x24] sm:$0xf]
    %v532 = vld [vmem:[#allocation7 + $0x28] sm:$0xf]
    %v533 = vld [vmem:[#allocation7 + $0x2c] sm:$0xf]
    %v534 = vld [vmem:[#allocation7 + $0x30] sm:$0xf]
    %v535 = vld [vmem:[#allocation7 + $0x34] sm:$0xf]
    %v536 = vld [vmem:[#allocation7 + $0x38] sm:$0xf]
    %v537 = vld [vmem:[#allocation7 + $0x3c] sm:$0xf]
    %v538 = vld [vmem:[%s6] sm:$0x1]
    %v540 = vlaneseq
    %v541 = vshrl.u32 %v540, 7
    %v542 = vsub.s32 0, %v541
    %v543 = vrot.slane %v538, %v542
    %v561 = vunpack.c.l.b16 %v522
    %v562 = vunpack.c.l.b16 %v523
    %v563 = vunpack.c.l.b16 %v524
    %v564 = vunpack.c.l.b16 %v525
    %v565 = vunpack.c.l.b16 %v526
    %v566 = vunpack.c.l.b16 %v527
    %v567 = vunpack.c.l.b16 %v528
    %v568 = vunpack.c.l.b16 %v529
    %v569 = vunpack.c.l.b16 %v530
    %v570 = vunpack.c.l.b16 %v531
    %v571 = vunpack.c.l.b16 %v532
    %v572 = vunpack.c.l.b16 %v533
    %v573 = vunpack.c.l.b16 %v534
    %v574 = vunpack.c.l.b16 %v535
    %v575 = vunpack.c.l.b16 %v536
    %v576 = vunpack.c.l.b16 %v537
    %v577 = vpack.c.b16 %v562, %v561
    %v578 = vpack.c.b16 %v564, %v563
    %v579 = vpack.c.b16 %v566, %v565
    %v580 = vpack.c.b16 %v568, %v567
    %v581 = vpack.c.b16 %v570, %v569
    %v582 = vpack.c.b16 %v572, %v571
    %v583 = vpack.c.b16 %v574, %v573
    %v584 = vpack.c.b16 %v576, %v575
    %593 = vmatprep.subr.bf16.mxu0 0
    %594 = vmatpush1.bf16.msra.mxu0 %v577
    %595 = vmatprep.subr.bf16.mxu0 0
    %596 = vmatpush1.bf16.msra.mxu0 %v578
    %597 = vmatprep.subr.bf16.mxu0 0
    %598 = vmatpush1.bf16.msra.mxu0 %v579
    %599 = vmatprep.subr.bf16.mxu0 0
    %600 = vmatpush1.bf16.msra.mxu0 %v580
    %601 = vmatprep.subr.bf16.mxu0 0
    %602 = vmatpush1.bf16.msra.mxu0 %v581
    %603 = vmatprep.subr.bf16.mxu0 0
    %604 = vmatpush1.bf16.msra.mxu0 %v582
    %605 = vmatprep.subr.bf16.mxu0 0
    %606 = vmatpush1.bf16.msra.mxu0 %v583
    %607 = vmatprep.subr.bf16.mxu0 0
    %608 = vmatpush1.bf16.msra.mxu0 %v584
    %609 = vmatprep.subr.bf16.mxu0 0
    %610 = vmatpush1.bf16.msra.mxu0 0
    %611 = vmatprep.subr.bf16.mxu0 0
    %612 = vmatpush1.bf16.msra.mxu0 0
    %613 = vmatprep.subr.bf16.mxu0 0
    %614 = vmatpush1.bf16.msra.mxu0 0
    %615 = vmatprep.subr.bf16.mxu0 0
    %616 = vmatpush1.bf16.msra.mxu0 0
    %617 = vmatprep.subr.bf16.mxu0 0
    %618 = vmatpush1.bf16.msra.mxu0 0
    %619 = vmatprep.subr.bf16.mxu0 0
    %620 = vmatpush1.bf16.msra.mxu0 0
    %621 = vmatprep.subr.bf16.mxu0 0
    %622 = vmatpush1.bf16.msra.mxu0 0
    %623 = vmatprep.subr.bf16.mxu0 0
    %624 = vmatpush1.bf16.msra.mxu0 0
    %625 = vmatprep.mubr.bf16.mxu0 0
    %626 = vmatmul.mubr.bf16.gmra.mrb[0].mxu0 %v514
    %v627 = vpop.f32.mrb[0].mxu0
    %v628 = vadd.f32 %v543, %v627
    %v629 = vpop.f32.mrb[0].mxu0
    %v630 = vpop.f32.mrb[0].mxu0
    %v631 = vadd.f32 %v543, %v630
    %v632 = vpop.f32.mrb[0].mxu0
    %633 = vmatprep.mubr.bf16.mxu0 0
    %634 = vmatmul.mubr.bf16.gmra.mrb[0].mxu0 %v515
    %v635 = vpop.f32.mrb[0].mxu0
    %v636 = vadd.f32 %v543, %v635
    %v637 = vpop.f32.mrb[0].mxu0
    %v638 = vpop.f32.mrb[0].mxu0
    %v639 = vadd.f32 %v543, %v638
    %v640 = vpop.f32.mrb[0].mxu0
    %641 = vmatprep.mubr.bf16.mxu0 0
    %642 = vmatmul.mubr.bf16.gmra.mrb[0].mxu0 %v516
    %v643 = vpop.f32.mrb[0].mxu0
    %v644 = vadd.f32 %v543, %v643
    %v645 = vpop.f32.mrb[0].mxu0
    %v646 = vpop.f32.mrb[0].mxu0
    %v647 = vadd.f32 %v543, %v646
    %v648 = vpop.f32.mrb[0].mxu0
    %649 = vmatprep.mubr.bf16.mxu0 0
    %650 = vmatmul.mubr.bf16.gmra.mrb[0].mxu0 %v517
    %v651 = vpop.f32.mrb[0].mxu0
    %v652 = vadd.f32 %v543, %v651
    %v653 = vpop.f32.mrb[0].mxu0
    %v654 = vpop.f32.mrb[0].mxu0
    %v655 = vadd.f32 %v543, %v654
    %v656 = vpop.f32.mrb[0].mxu0
    %657 = vmatprep.mubr.bf16.mxu0 0
    %658 = vmatmul.mubr.bf16.gmra.mrb[0].mxu0 %v518
    %v659 = vpop.f32.mrb[0].mxu0
    %v660 = vadd.f32 %v543, %v659
    %v661 = vpop.f32.mrb[0].mxu0
    %v662 = vpop.f32.mrb[0].mxu0
    %v663 = vadd.f32 %v543, %v662
    %v664 = vpop.f32.mrb[0].mxu0
    %665 = vmatprep.mubr.bf16.mxu0 0
    %666 = vmatmul.mubr.bf16.gmra.mrb[0].mxu0 %v519
    %v667 = vpop.f32.mrb[0].mxu0
    %v668 = vadd.f32 %v543, %v667
    %v669 = vpop.f32.mrb[0].mxu0
    %v670 = vpop.f32.mrb[0].mxu0
    %v671 = vadd.f32 %v543, %v670
    %v672 = vpop.f32.mrb[0].mxu0
    %673 = vmatprep.mubr.bf16.mxu0 0
    %674 = vmatmul.mubr.bf16.gmra.mrb[0].mxu0 %v520
    %v675 = vpop.f32.mrb[0].mxu0
    %v676 = vadd.f32 %v543, %v675
    %v677 = vpop.f32.mrb[0].mxu0
    %v678 = vpop.f32.mrb[0].mxu0
    %v679 = vadd.f32 %v543, %v678
    %v680 = vpop.f32.mrb[0].mxu0
    %681 = vmatprep.mubr.bf16.mxu0 0
    %682 = vmatmul.mubr.bf16.gmra.mrb[0].mxu0 %v521
    %v683 = vpop.f32.mrb[0].mxu0
    %v684 = vadd.f32 %v543, %v683
    %v685 = vpop.f32.mrb[0].mxu0
    %v686 = vpop.f32.mrb[0].mxu0
    %v687 = vadd.f32 %v543, %v686
    %v688 = vpop.f32.mrb[0].mxu0
    %689 = vdwg.mxu0
    %v690 = vld [vmem:[#allocation8] sm:$0xf]
    %v691 = vld [vmem:[#allocation8 + $0x4] sm:$0xf]
    %v692 = vld [vmem:[#allocation8 + $0x8] sm:$0xf]
    %v693 = vld [vmem:[#allocation8 + $0xc] sm:$0xf]
    %v694 = vld [vmem:[#allocation8 + $0x10] sm:$0xf]
    %v695 = vld [vmem:[#allocation8 + $0x14] sm:$0xf]
    %v696 = vld [vmem:[#allocation8 + $0x18] sm:$0xf]
    %v697 = vld [vmem:[#allocation8 + $0x1c] sm:$0xf]
    %v698 = vld [vmem:[#allocation8 + $0x20] sm:$0xf]
    %v699 = vld [vmem:[#allocation8 + $0x24] sm:$0xf]
    %v700 = vld [vmem:[#allocation8 + $0x28] sm:$0xf]
    %v701 = vld [vmem:[#allocation8 + $0x2c] sm:$0xf]
    %v702 = vld [vmem:[#allocation8 + $0x30] sm:$0xf]
    %v703 = vld [vmem:[#allocation8 + $0x34] sm:$0xf]
    %v704 = vld [vmem:[#allocation8 + $0x38] sm:$0xf]
    %v705 = vld [vmem:[#allocation8 + $0x3c] sm:$0xf]
    %v706 = vld [vmem:[#allocation10] sm:$0x1]
    %v708 = vlaneseq
    %v709 = vshrl.u32 %v708, 7
    %v710 = vsub.s32 0, %v709
    %v711 = vrot.slane %v706, %v710
    %v729 = vunpack.c.l.b16 %v690
    %v730 = vunpack.c.l.b16 %v691
    %v731 = vunpack.c.l.b16 %v692
    %v732 = vunpack.c.l.b16 %v693
    %v733 = vunpack.c.l.b16 %v694
    %v734 = vunpack.c.l.b16 %v695
    %v735 = vunpack.c.l.b16 %v696
    %v736 = vunpack.c.l.b16 %v697
    %v737 = vunpack.c.l.b16 %v698
    %v738 = vunpack.c.l.b16 %v699
    %v739 = vunpack.c.l.b16 %v700
    %v740 = vunpack.c.l.b16 %v701
    %v741 = vunpack.c.l.b16 %v702
    %v742 = vunpack.c.l.b16 %v703
    %v743 = vunpack.c.l.b16 %v704
    %v744 = vunpack.c.l.b16 %v705
    %v745 = vpack.c.b16 %v730, %v729
    %v746 = vpack.c.b16 %v732, %v731
    %v747 = vpack.c.b16 %v734, %v733
    %v748 = vpack.c.b16 %v736, %v735
    %v749 = vpack.c.b16 %v738, %v737
    %v750 = vpack.c.b16 %v740, %v739
    %v751 = vpack.c.b16 %v742, %v741
    %v752 = vpack.c.b16 %v744, %v743
    %761 = vmatprep.subr.bf16.mxu0 0
    %762 = vmatpush1.bf16.msra.mxu0 %v745
    %763 = vmatprep.subr.bf16.mxu0 0
    %764 = vmatpush1.bf16.msra.mxu0 %v746
    %765 = vmatprep.subr.bf16.mxu0 0
    %766 = vmatpush1.bf16.msra.mxu0 %v747
    %767 = vmatprep.subr.bf16.mxu0 0
    %768 = vmatpush1.bf16.msra.mxu0 %v748
    %769 = vmatprep.subr.bf16.mxu0 0
    %770 = vmatpush1.bf16.msra.mxu0 %v749
    %771 = vmatprep.subr.bf16.mxu0 0
    %772 = vmatpush1.bf16.msra.mxu0 %v750
    %773 = vmatprep.subr.bf16.mxu0 0
    %774 = vmatpush1.bf16.msra.mxu0 %v751
    %775 = vmatprep.subr.bf16.mxu0 0
    %776 = vmatpush1.bf16.msra.mxu0 %v752
    %777 = vmatprep.subr.bf16.mxu0 0
    %778 = vmatpush1.bf16.msra.mxu0 0
    %779 = vmatprep.subr.bf16.mxu0 0
    %780 = vmatpush1.bf16.msra.mxu0 0
    %781 = vmatprep.subr.bf16.mxu0 0
    %782 = vmatpush1.bf16.msra.mxu0 0
    %783 = vmatprep.subr.bf16.mxu0 0
    %784 = vmatpush1.bf16.msra.mxu0 0
    %785 = vmatprep.subr.bf16.mxu0 0
    %786 = vmatpush1.bf16.msra.mxu0 0
    %787 = vmatprep.subr.bf16.mxu0 0
    %788 = vmatpush1.bf16.msra.mxu0 0
    %789 = vmatprep.subr.bf16.mxu0 0
    %790 = vmatpush1.bf16.msra.mxu0 0
    %791 = vmatprep.subr.bf16.mxu0 0
    %792 = vmatpush1.bf16.msra.mxu0 0
    %793 = vmatprep.mubr.bf16.mxu0 0
    %794 = vmatmul.mubr.bf16.gmra.mrb[0].mxu0 %v514
    %v795 = vpop.f32.mrb[0].mxu0
    %v796 = vadd.f32 %v711, %v795
    %v797 = vpop.f32.mrb[0].mxu0
    %v798 = vpop.f32.mrb[0].mxu0
    %v799 = vadd.f32 %v711, %v798
    %v800 = vpop.f32.mrb[0].mxu0
    %801 = vmatprep.mubr.bf16.mxu0 0
    %802 = vmatmul.mubr.bf16.gmra.mrb[0].mxu0 %v515
    %v803 = vpop.f32.mrb[0].mxu0
    %v804 = vadd.f32 %v711, %v803
    %v805 = vpop.f32.mrb[0].mxu0
    %v806 = vpop.f32.mrb[0].mxu0
    %v807 = vadd.f32 %v711, %v806
    %v808 = vpop.f32.mrb[0].mxu0
    %809 = vmatprep.mubr.bf16.mxu0 0
    %810 = vmatmul.mubr.bf16.gmra.mrb[0].mxu0 %v516
    %v811 = vpop.f32.mrb[0].mxu0
    %v812 = vadd.f32 %v711, %v811
    %v813 = vpop.f32.mrb[0].mxu0
    %v814 = vpop.f32.mrb[0].mxu0
    %v815 = vadd.f32 %v711, %v814
    %v816 = vpop.f32.mrb[0].mxu0
    %817 = vmatprep.mubr.bf16.mxu0 0
    %818 = vmatmul.mubr.bf16.gmra.mrb[0].mxu0 %v517
    %v819 = vpop.f32.mrb[0].mxu0
    %v820 = vadd.f32 %v711, %v819
    %v821 = vpop.f32.mrb[0].mxu0
    %v822 = vpop.f32.mrb[0].mxu0
    %v823 = vadd.f32 %v711, %v822
    %v824 = vpop.f32.mrb[0].mxu0
    %825 = vmatprep.mubr.bf16.mxu0 0
    %826 = vmatmul.mubr.bf16.gmra.mrb[0].mxu0 %v518
    %v827 = vpop.f32.mrb[0].mxu0
    %v828 = vadd.f32 %v711, %v827
    %v829 = vpop.f32.mrb[0].mxu0
    %v830 = vpop.f32.mrb[0].mxu0
    %v831 = vadd.f32 %v711, %v830
    %v832 = vpop.f32.mrb[0].mxu0
    %833 = vmatprep.mubr.bf16.mxu0 0
    %834 = vmatmul.mubr.bf16.gmra.mrb[0].mxu0 %v519
    %v835 = vpop.f32.mrb[0].mxu0
    %v836 = vadd.f32 %v711, %v835
    %v837 = vpop.f32.mrb[0].mxu0
    %v838 = vpop.f32.mrb[0].mxu0
    %v839 = vadd.f32 %v711, %v838
    %v840 = vpop.f32.mrb[0].mxu0
    %841 = vmatprep.mubr.bf16.mxu0 0
    %842 = vmatmul.mubr.bf16.gmra.mrb[0].mxu0 %v520
    %v843 = vpop.f32.mrb[0].mxu0
    %v844 = vadd.f32 %v711, %v843
    %v845 = vpop.f32.mrb[0].mxu0
    %v846 = vpop.f32.mrb[0].mxu0
    %v847 = vadd.f32 %v711, %v846
    %v848 = vpop.f32.mrb[0].mxu0
    %849 = vmatprep.mubr.bf16.mxu0 0
    %850 = vmatmul.mubr.bf16.gmra.mrb[0].mxu0 %v521
    %v851 = vpop.f32.mrb[0].mxu0
    %v852 = vadd.f32 %v711, %v851
    %v853 = vpop.f32.mrb[0].mxu0
    %v854 = vpop.f32.mrb[0].mxu0
    %v855 = vadd.f32 %v711, %v854
    %v856 = vpop.f32.mrb[0].mxu0
    %857 = vdwg.mxu0
    %v858 = vld [vmem:[#allocation11] sm:$0xf]
    %v859 = vld [vmem:[#allocation11 + $0x4] sm:$0xf]
    %v860 = vld [vmem:[#allocation11 + $0x8] sm:$0xf]
    %v861 = vld [vmem:[#allocation11 + $0xc] sm:$0xf]
    %v862 = vld [vmem:[#allocation11 + $0x10] sm:$0xf]
    %v863 = vld [vmem:[#allocation11 + $0x14] sm:$0xf]
    %v864 = vld [vmem:[#allocation11 + $0x18] sm:$0xf]
    %v865 = vld [vmem:[#allocation11 + $0x1c] sm:$0xf]
    %v866 = vld [vmem:[#allocation11 + $0x20] sm:$0xf]
    %v867 = vld [vmem:[#allocation11 + $0x24] sm:$0xf]
    %v868 = vld [vmem:[#allocation11 + $0x28] sm:$0xf]
    %v869 = vld [vmem:[#allocation11 + $0x2c] sm:$0xf]
    %v870 = vld [vmem:[#allocation11 + $0x30] sm:$0xf]
    %v871 = vld [vmem:[#allocation11 + $0x34] sm:$0xf]
    %v872 = vld [vmem:[#allocation11 + $0x38] sm:$0xf]
    %v873 = vld [vmem:[#allocation11 + $0x3c] sm:$0xf]
    %v874 = vld [vmem:[#allocation13] sm:$0x1]
    %v876 = vlaneseq
    %v877 = vshrl.u32 %v876, 7
    %v878 = vsub.s32 0, %v877
    %v879 = vrot.slane %v874, %v878
    %v897 = vunpack.c.l.b16 %v858
    %v898 = vunpack.c.l.b16 %v859
    %v899 = vunpack.c.l.b16 %v860
    %v900 = vunpack.c.l.b16 %v861
    %v901 = vunpack.c.l.b16 %v862
    %v902 = vunpack.c.l.b16 %v863
    %v903 = vunpack.c.l.b16 %v864
    %v904 = vunpack.c.l.b16 %v865
    %v905 = vunpack.c.l.b16 %v866
    %v906 = vunpack.c.l.b16 %v867
    %v907 = vunpack.c.l.b16 %v868
    %v908 = vunpack.c.l.b16 %v869
    %v909 = vunpack.c.l.b16 %v870
    %v910 = vunpack.c.l.b16 %v871
    %v911 = vunpack.c.l.b16 %v872
    %v912 = vunpack.c.l.b16 %v873
    %v913 = vpack.c.b16 %v898, %v897
    %v914 = vpack.c.b16 %v900, %v899
    %v915 = vpack.c.b16 %v902, %v901
    %v916 = vpack.c.b16 %v904, %v903
    %v917 = vpack.c.b16 %v906, %v905
    %v918 = vpack.c.b16 %v908, %v907
    %v919 = vpack.c.b16 %v910, %v909
    %v920 = vpack.c.b16 %v912, %v911
    %929 = vmatprep.subr.bf16.mxu0 0
    %930 = vmatpush1.bf16.msra.mxu0 %v913
    %931 = vmatprep.subr.bf16.mxu0 0
    %932 = vmatpush1.bf16.msra.mxu0 %v914
    %933 = vmatprep.subr.bf16.mxu0 0
    %934 = vmatpush1.bf16.msra.mxu0 %v915
    %935 = vmatprep.subr.bf16.mxu0 0
    %936 = vmatpush1.bf16.msra.mxu0 %v916
    %937 = vmatprep.subr.bf16.mxu0 0
    %938 = vmatpush1.bf16.msra.mxu0 %v917
    %939 = vmatprep.subr.bf16.mxu0 0
    %940 = vmatpush1.bf16.msra.mxu0 %v918
    %941 = vmatprep.subr.bf16.mxu0 0
    %942 = vmatpush1.bf16.msra.mxu0 %v919
    %943 = vmatprep.subr.bf16.mxu0 0
    %944 = vmatpush1.bf16.msra.mxu0 %v920
    %945 = vmatprep.subr.bf16.mxu0 0
    %946 = vmatpush1.bf16.msra.mxu0 0
    %947 = vmatprep.subr.bf16.mxu0 0
    %948 = vmatpush1.bf16.msra.mxu0 0
    %949 = vmatprep.subr.bf16.mxu0 0
    %950 = vmatpush1.bf16.msra.mxu0 0
    %951 = vmatprep.subr.bf16.mxu0 0
    %952 = vmatpush1.bf16.msra.mxu0 0
    %953 = vmatprep.subr.bf16.mxu0 0
    %954 = vmatpush1.bf16.msra.mxu0 0
    %955 = vmatprep.subr.bf16.mxu0 0
    %956 = vmatpush1.bf16.msra.mxu0 0
    %957 = vmatprep.subr.bf16.mxu0 0
    %958 = vmatpush1.bf16.msra.mxu0 0
    %959 = vmatprep.subr.bf16.mxu0 0
    %960 = vmatpush1.bf16.msra.mxu0 0
    %961 = vmatprep.mubr.bf16.mxu0 0
    %962 = vmatmul.mubr.bf16.gmra.mrb[0].mxu0 %v514
    %v963 = vpop.f32.mrb[0].mxu0
    %v964 = vadd.f32 %v879, %v963
    %v965 = vpop.f32.mrb[0].mxu0
    %v966 = vpop.f32.mrb[0].mxu0
    %v967 = vadd.f32 %v879, %v966
    %v968 = vpop.f32.mrb[0].mxu0
    %969 = vmatprep.mubr.bf16.mxu0 0
    %970 = vmatmul.mubr.bf16.gmra.mrb[0].mxu0 %v515
    %v971 = vpop.f32.mrb[0].mxu0
    %v972 = vadd.f32 %v879, %v971
    %v973 = vpop.f32.mrb[0].mxu0
    %v974 = vpop.f32.mrb[0].mxu0
    %v975 = vadd.f32 %v879, %v974
    %v976 = vpop.f32.mrb[0].mxu0
    %977 = vmatprep.mubr.bf16.mxu0 0
    %978 = vmatmul.mubr.bf16.gmra.mrb[0].mxu0 %v516
    %v979 = vpop.f32.mrb[0].mxu0
    %v980 = vadd.f32 %v879, %v979
    %v981 = vpop.f32.mrb[0].mxu0
    %v982 = vpop.f32.mrb[0].mxu0
    %v983 = vadd.f32 %v879, %v982
    %v984 = vpop.f32.mrb[0].mxu0
    %985 = vmatprep.mubr.bf16.mxu0 0
    %986 = vmatmul.mubr.bf16.gmra.mrb[0].mxu0 %v517
    %v987 = vpop.f32.mrb[0].mxu0
    %v988 = vadd.f32 %v879, %v987
    %v989 = vpop.f32.mrb[0].mxu0
    %v990 = vpop.f32.mrb[0].mxu0
    %v991 = vadd.f32 %v879, %v990
    %v992 = vpop.f32.mrb[0].mxu0
    %993 = vmatprep.mubr.bf16.mxu0 0
    %994 = vmatmul.mubr.bf16.gmra.mrb[0].mxu0 %v518
    %v995 = vpop.f32.mrb[0].mxu0
    %v996 = vadd.f32 %v879, %v995
    %v997 = vpop.f32.mrb[0].mxu0
    %v998 = vpop.f32.mrb[0].mxu0
    %v999 = vadd.f32 %v879, %v998
    %v1000 = vpop.f32.mrb[0].mxu0
    %1001 = vmatprep.mubr.bf16.mxu0 0
    %1002 = vmatmul.mubr.bf16.gmra.mrb[0].mxu0 %v519
    %v1003 = vpop.f32.mrb[0].mxu0
    %v1004 = vadd.f32 %v879, %v1003
    %v1005 = vpop.f32.mrb[0].mxu0
    %v1006 = vpop.f32.mrb[0].mxu0
    %v1007 = vadd.f32 %v879, %v1006
    %v1008 = vpop.f32.mrb[0].mxu0
    %1009 = vmatprep.mubr.bf16.mxu0 0
    %1010 = vmatmul.mubr.bf16.gmra.mrb[0].mxu0 %v520
    %v1011 = vpop.f32.mrb[0].mxu0
    %v1012 = vadd.f32 %v879, %v1011
    %v1013 = vpop.f32.mrb[0].mxu0
    %v1014 = vpop.f32.mrb[0].mxu0
    %v1015 = vadd.f32 %v879, %v1014
    %v1016 = vpop.f32.mrb[0].mxu0
    %1017 = vmatprep.mubr.bf16.mxu0 0
    %1018 = vmatmul.mubr.bf16.gmra.mrb[0].mxu0 %v521
    %v1019 = vpop.f32.mrb[0].mxu0
    %v1020 = vadd.f32 %v879, %v1019
    %v1021 = vpop.f32.mrb[0].mxu0
    %v1022 = vpop.f32.mrb[0].mxu0
    %v1023 = vadd.f32 %v879, %v1022
    %v1024 = vpop.f32.mrb[0].mxu0
    %1025 = vdwg.mxu0
    %v1026 = vpack.c.bf16 %v631, %v628
    %v1027 = vpack.c.bf16 %v639, %v636
    %v1028 = vpack.c.bf16 %v647, %v644
    %v1029 = vpack.c.bf16 %v655, %v652
    %v1030 = vpack.c.bf16 %v663, %v660
    %v1031 = vpack.c.bf16 %v671, %v668
    %v1032 = vpack.c.bf16 %v679, %v676
    %v1033 = vpack.c.bf16 %v687, %v684
    %v1034 = vld [vmem:[#allocation14] sm:$0xf]
    %v1035 = vld [vmem:[#allocation14 + $0x4] sm:$0xf]
    %v1036 = vld [vmem:[#allocation14 + $0x8] sm:$0xf]
    %v1037 = vld [vmem:[#allocation14 + $0xc] sm:$0xf]
    %v1038 = vld [vmem:[#allocation14 + $0x10] sm:$0xf]
    %v1039 = vld [vmem:[#allocation14 + $0x14] sm:$0xf]
    %v1040 = vld [vmem:[#allocation14 + $0x18] sm:$0xf]
    %v1041 = vld [vmem:[#allocation14 + $0x1c] sm:$0xf]
    %v1042 = vld [vmem:[#allocation14 + $0x20] sm:$0xf]
    %v1043 = vld [vmem:[#allocation14 + $0x24] sm:$0xf]
    %v1044 = vld [vmem:[#allocation14 + $0x28] sm:$0xf]
    %v1045 = vld [vmem:[#allocation14 + $0x2c] sm:$0xf]
    %v1046 = vld [vmem:[#allocation14 + $0x30] sm:$0xf]
    %v1047 = vld [vmem:[#allocation14 + $0x34] sm:$0xf]
    %v1048 = vld [vmem:[#allocation14 + $0x38] sm:$0xf]
    %v1049 = vld [vmem:[#allocation14 + $0x3c] sm:$0xf]
    %v1050 = vld [vmem:[#allocation16] sm:$0x1]
    %v1052 = vlaneseq
    %v1053 = vshrl.u32 %v1052, 7
    %v1054 = vsub.s32 0, %v1053
    %v1055 = vrot.slane %v1050, %v1054
    %v1073 = vunpack.c.l.b16 %v1034
    %v1074 = vunpack.c.l.b16 %v1035
    %v1075 = vunpack.c.l.b16 %v1036
    %v1076 = vunpack.c.l.b16 %v1037
    %v1077 = vunpack.c.l.b16 %v1038
    %v1078 = vunpack.c.l.b16 %v1039
    %v1079 = vunpack.c.l.b16 %v1040
    %v1080 = vunpack.c.l.b16 %v1041
    %v1081 = vunpack.c.l.b16 %v1042
    %v1082 = vunpack.c.l.b16 %v1043
    %v1083 = vunpack.c.l.b16 %v1044
    %v1084 = vunpack.c.l.b16 %v1045
    %v1085 = vunpack.c.l.b16 %v1046
    %v1086 = vunpack.c.l.b16 %v1047
    %v1087 = vunpack.c.l.b16 %v1048
    %v1088 = vunpack.c.l.b16 %v1049
    %v1089 = vpack.c.b16 %v1074, %v1073
    %v1090 = vpack.c.b16 %v1076, %v1075
    %v1091 = vpack.c.b16 %v1078, %v1077
    %v1092 = vpack.c.b16 %v1080, %v1079
    %v1093 = vpack.c.b16 %v1082, %v1081
    %v1094 = vpack.c.b16 %v1084, %v1083
    %v1095 = vpack.c.b16 %v1086, %v1085
    %v1096 = vpack.c.b16 %v1088, %v1087
    %1105 = vmatprep.subr.bf16.mxu0 0
    %1106 = vmatpush1.bf16.msra.mxu0 %v1089
    %1107 = vmatprep.subr.bf16.mxu0 0
    %1108 = vmatpush1.bf16.msra.mxu0 %v1090
    %1109 = vmatprep.subr.bf16.mxu0 0
    %1110 = vmatpush1.bf16.msra.mxu0 %v1091
    %1111 = vmatprep.subr.bf16.mxu0 0
    %1112 = vmatpush1.bf16.msra.mxu0 %v1092
    %1113 = vmatprep.subr.bf16.mxu0 0
    %1114 = vmatpush1.bf16.msra.mxu0 %v1093
    %1115 = vmatprep.subr.bf16.mxu0 0
    %1116 = vmatpush1.bf16.msra.mxu0 %v1094
    %1117 = vmatprep.subr.bf16.mxu0 0
    %1118 = vmatpush1.bf16.msra.mxu0 %v1095
    %1119 = vmatprep.subr.bf16.mxu0 0
    %1120 = vmatpush1.bf16.msra.mxu0 %v1096
    %1121 = vmatprep.subr.bf16.mxu0 0
    %1122 = vmatpush1.bf16.msra.mxu0 0
    %1123 = vmatprep.subr.bf16.mxu0 0
    %1124 = vmatpush1.bf16.msra.mxu0 0
    %1125 = vmatprep.subr.bf16.mxu0 0
    %1126 = vmatpush1.bf16.msra.mxu0 0
    %1127 = vmatprep.subr.bf16.mxu0 0
    %1128 = vmatpush1.bf16.msra.mxu0 0
    %1129 = vmatprep.subr.bf16.mxu0 0
    %1130 = vmatpush1.bf16.msra.mxu0 0
    %1131 = vmatprep.subr.bf16.mxu0 0
    %1132 = vmatpush1.bf16.msra.mxu0 0
    %1133 = vmatprep.subr.bf16.mxu0 0
    %1134 = vmatpush1.bf16.msra.mxu0 0
    %1135 = vmatprep.subr.bf16.mxu0 0
    %1136 = vmatpush1.bf16.msra.mxu0 0
    %1137 = vmatprep.mubr.bf16.mxu0 0
    %1138 = vmatmul.mubr.bf16.gmra.mrb[0].mxu0 %v1026
    %v1139 = vpop.f32.mrb[0].mxu0
    %v1140 = vadd.f32 %v1055, %v1139
    %v1141 = vpop.f32.mrb[0].mxu0
    %v1142 = vpop.f32.mrb[0].mxu0
    %v1143 = vadd.f32 %v1055, %v1142
    %v1144 = vpop.f32.mrb[0].mxu0
    %1145 = vmatprep.mubr.bf16.mxu0 0
    %1146 = vmatmul.mubr.bf16.gmra.mrb[0].mxu0 %v1027
    %v1147 = vpop.f32.mrb[0].mxu0
    %v1148 = vadd.f32 %v1055, %v1147
    %v1149 = vpop.f32.mrb[0].mxu0
    %v1150 = vpop.f32.mrb[0].mxu0
    %v1151 = vadd.f32 %v1055, %v1150
    %v1152 = vpop.f32.mrb[0].mxu0
    %1153 = vmatprep.mubr.bf16.mxu0 0
    %1154 = vmatmul.mubr.bf16.gmra.mrb[0].mxu0 %v1028
    %v1155 = vpop.f32.mrb[0].mxu0
    %v1156 = vadd.f32 %v1055, %v1155
    %v1157 = vpop.f32.mrb[0].mxu0
    %v1158 = vpop.f32.mrb[0].mxu0
    %v1159 = vadd.f32 %v1055, %v1158
    %v1160 = vpop.f32.mrb[0].mxu0
    %1161 = vmatprep.mubr.bf16.mxu0 0
    %1162 = vmatmul.mubr.bf16.gmra.mrb[0].mxu0 %v1029
    %v1163 = vpop.f32.mrb[0].mxu0
    %v1164 = vadd.f32 %v1055, %v1163
    %v1165 = vpop.f32.mrb[0].mxu0
    %v1166 = vpop.f32.mrb[0].mxu0
    %v1167 = vadd.f32 %v1055, %v1166
    %v1168 = vpop.f32.mrb[0].mxu0
    %1169 = vmatprep.mubr.bf16.mxu0 0
    %1170 = vmatmul.mubr.bf16.gmra.mrb[0].mxu0 %v1030
    %v1171 = vpop.f32.mrb[0].mxu0
    %v1172 = vadd.f32 %v1055, %v1171
    %v1173 = vpop.f32.mrb[0].mxu0
    %v1174 = vpop.f32.mrb[0].mxu0
    %v1175 = vadd.f32 %v1055, %v1174
    %v1176 = vpop.f32.mrb[0].mxu0
    %1177 = vmatprep.mubr.bf16.mxu0 0
    %1178 = vmatmul.mubr.bf16.gmra.mrb[0].mxu0 %v1031
    %v1179 = vpop.f32.mrb[0].mxu0
    %v1180 = vadd.f32 %v1055, %v1179
    %v1181 = vpop.f32.mrb[0].mxu0
    %v1182 = vpop.f32.mrb[0].mxu0
    %v1183 = vadd.f32 %v1055, %v1182
    %v1184 = vpop.f32.mrb[0].mxu0
    %1185 = vmatprep.mubr.bf16.mxu0 0
    %1186 = vmatmul.mubr.bf16.gmra.mrb[0].mxu0 %v1032
    %v1187 = vpop.f32.mrb[0].mxu0
    %v1188 = vadd.f32 %v1055, %v1187
    %v1189 = vpop.f32.mrb[0].mxu0
    %v1190 = vpop.f32.mrb[0].mxu0
    %v1191 = vadd.f32 %v1055, %v1190
    %v1192 = vpop.f32.mrb[0].mxu0
    %1193 = vmatprep.mubr.bf16.mxu0 0
    %1194 = vmatmul.mubr.bf16.gmra.mrb[0].mxu0 %v1033
    %v1195 = vpop.f32.mrb[0].mxu0
    %v1196 = vadd.f32 %v1055, %v1195
    %v1197 = vpop.f32.mrb[0].mxu0
    %v1198 = vpop.f32.mrb[0].mxu0
    %v1199 = vadd.f32 %v1055, %v1198
    %v1200 = vpop.f32.mrb[0].mxu0
    %1201 = vdwg.mxu0
    %v1202 = vmul.f32 %v1140, 0.125
    %v1203 = vmul.f32 %v1143, 0.125
    %v1204 = vmul.f32 %v1148, 0.125
    %v1205 = vmul.f32 %v1151, 0.125
    %v1206 = vmul.f32 %v1156, 0.125
    %v1207 = vmul.f32 %v1159, 0.125
    %v1208 = vmul.f32 %v1164, 0.125
    %v1209 = vmul.f32 %v1167, 0.125
    %v1210 = vmul.f32 %v1172, 0.125
    %v1211 = vmul.f32 %v1175, 0.125
    %v1212 = vmul.f32 %v1180, 0.125
    %v1213 = vmul.f32 %v1183, 0.125
    %v1214 = vmul.f32 %v1188, 0.125
    %v1215 = vmul.f32 %v1191, 0.125
    %v1216 = vmul.f32 %v1196, 0.125
    %v1217 = vmul.f32 %v1199, 0.125
    %v1218 = vmax.f32 %v1202, %v1204
    %v1219 = vmax.f32 %v1203, %v1205
    %v1220 = vmax.f32 %v1218, %v1206
    %v1221 = vmax.f32 %v1219, %v1207
    %v1222 = vmax.f32 %v1220, %v1208
    %v1223 = vmax.f32 %v1221, %v1209
    %v1224 = vmax.f32 %v1222, %v1223
    %v1225 = vrot.slane %v1224, 4
    %v1226 = vmax.f32 %v1224, %v1225
    %v1227 = vrot.slane %v1226, 2
    %v1228 = vmax.f32 %v1226, %v1227
    %v1229 = vrot.slane %v1228, 1
    %v1230 = vmax.f32 %v1228, %v1229
    %v1231 = vmax.f32 %v1210, %v1212
    %v1232 = vmax.f32 %v1211, %v1213
    %v1233 = vmax.f32 %v1231, %v1214
    %v1234 = vmax.f32 %v1232, %v1215
    %v1235 = vmax.f32 %v1233, %v1216
    %v1236 = vmax.f32 %v1234, %v1217
    %v1237 = vmax.f32 %v1235, %v1236
    %v1238 = vrot.slane %v1237, 4
    %v1239 = vmax.f32 %v1237, %v1238
    %v1240 = vrot.slane %v1239, 2
    %v1241 = vmax.f32 %v1239, %v1240
    %v1242 = vrot.slane %v1241, 1
    %v1243 = vmax.f32 %v1241, %v1242
    %v1244 = vsub.f32 %v1202, %v1230
    %v1245 = vsub.f32 %v1203, %v1230
    %v1246 = vsub.f32 %v1204, %v1230
    %v1247 = vsub.f32 %v1205, %v1230
    %v1248 = vsub.f32 %v1206, %v1230
    %v1249 = vsub.f32 %v1207, %v1230
    %v1250 = vsub.f32 %v1208, %v1230
    %v1251 = vsub.f32 %v1209, %v1230
    %v1252 = vsub.f32 %v1210, %v1243
    %v1253 = vsub.f32 %v1211, %v1243
    %v1254 = vsub.f32 %v1212, %v1243
    %v1255 = vsub.f32 %v1213, %v1243
    %v1256 = vsub.f32 %v1214, %v1243
    %v1257 = vsub.f32 %v1215, %v1243
    %v1258 = vsub.f32 %v1216, %v1243
    %v1259 = vsub.f32 %v1217, %v1243
    %v1260 = vmul.f32 %v1244, 1.442695
    %v1261 = vpow.pop %v1260
    %v1262 = vmul.f32 %v1245, 1.442695
    %v1263 = vpow.pop %v1262
    %v1264 = vmul.f32 %v1246, 1.442695
    %v1265 = vpow.pop %v1264
    %v1266 = vmul.f32 %v1247, 1.442695
    %v1267 = vpow.pop %v1266
    %v1268 = vmul.f32 %v1248, 1.442695
    %v1269 = vpow.pop %v1268
    %v1270 = vmul.f32 %v1249, 1.442695
    %v1271 = vpow.pop %v1270
    %v1272 = vmul.f32 %v1250, 1.442695
    %v1273 = vpow.pop %v1272
    %v1274 = vmul.f32 %v1251, 1.442695
    %v1275 = vpow.pop %v1274
    %v1276 = vmul.f32 %v1252, 1.442695
    %v1277 = vpow.pop %v1276
    %v1278 = vmul.f32 %v1253, 1.442695
    %v1279 = vpow.pop %v1278
    %v1280 = vmul.f32 %v1254, 1.442695
    %v1281 = vpow.pop %v1280
    %v1282 = vmul.f32 %v1255, 1.442695
    %v1283 = vpow.pop %v1282
    %v1284 = vmul.f32 %v1256, 1.442695
    %v1285 = vpow.pop %v1284
    %v1286 = vmul.f32 %v1257, 1.442695
    %v1287 = vpow.pop %v1286
    %v1288 = vmul.f32 %v1258, 1.442695
    %v1289 = vpow.pop %v1288
    %v1290 = vmul.f32 %v1259, 1.442695
    %v1291 = vpow.pop %v1290
    %v1292 = vadd.f32 %v1261, %v1263
    %v1293 = vadd.f32 %v1292, %v1265
    %v1294 = vadd.f32 %v1293, %v1267
    %v1295 = vadd.f32 %v1294, %v1269
    %v1296 = vadd.f32 %v1295, %v1271
    %v1297 = vadd.f32 %v1296, %v1273
    %v1298 = vadd.f32 %v1297, %v1275
    %v1299 = vrot.slane %v1298, 4
    %v1300 = vadd.f32 %v1298, %v1299
    %v1301 = vrot.slane %v1300, 2
    %v1302 = vadd.f32 %v1300, %v1301
    %v1303 = vrot.slane %v1302, 1
    %v1304 = vadd.f32 %v1302, %v1303
    %v1305 = vadd.f32 %v1277, %v1279
    %v1306 = vadd.f32 %v1305, %v1281
    %v1307 = vadd.f32 %v1306, %v1283
    %v1308 = vadd.f32 %v1307, %v1285
    %v1309 = vadd.f32 %v1308, %v1287
    %v1310 = vadd.f32 %v1309, %v1289
    %v1311 = vadd.f32 %v1310, %v1291
    %v1312 = vrot.slane %v1311, 4
    %v1313 = vadd.f32 %v1311, %v1312
    %v1314 = vrot.slane %v1313, 2
    %v1315 = vadd.f32 %v1313, %v1314
    %v1316 = vrot.slane %v1315, 1
    %v1317 = vadd.f32 %v1315, %v1316
    %v1318 = vrcp.pop %v1304
    %v1319 = vrcp.pop %v1317
    %v1320 = vmul.f32 %v1261, %v1318
    %v1321 = vmul.f32 %v1263, %v1318
    %v1322 = vmul.f32 %v1265, %v1318
    %v1323 = vmul.f32 %v1267, %v1318
    %v1324 = vmul.f32 %v1269, %v1318
    %v1325 = vmul.f32 %v1271, %v1318
    %v1326 = vmul.f32 %v1273, %v1318
    %v1327 = vmul.f32 %v1275, %v1318
    %v1328 = vmul.f32 %v1277, %v1319
    %v1329 = vmul.f32 %v1279, %v1319
    %v1330 = vmul.f32 %v1281, %v1319
    %v1331 = vmul.f32 %v1283, %v1319
    %v1332 = vmul.f32 %v1285, %v1319
    %v1333 = vmul.f32 %v1287, %v1319
    %v1334 = vmul.f32 %v1289, %v1319
    %v1335 = vmul.f32 %v1291, %v1319
    %v1336 = vpack.c.bf16 %v1321, %v1320
    %v1337 = vpack.c.bf16 %v1323, %v1322
    %v1338 = vpack.c.bf16 %v1325, %v1324
    %v1339 = vpack.c.bf16 %v1327, %v1326
    %v1340 = vpack.c.bf16 %v1329, %v1328
    %v1341 = vpack.c.bf16 %v1331, %v1330
    %v1342 = vpack.c.bf16 %v1333, %v1332
    %v1343 = vpack.c.bf16 %v1335, %v1334
    %v1344 = vld [vmem:[%s19] sm:$0xf]
    %v1345 = vld [vmem:[%s19 + $0x4] sm:$0xf]
    %v1346 = vld [vmem:[%s19 + $0x8] sm:$0xf]
    %v1347 = vld [vmem:[%s19 + $0xc] sm:$0xf]
    %v1348 = vld [vmem:[%s19 + $0x10] sm:$0xf]
    %v1349 = vld [vmem:[%s19 + $0x14] sm:$0xf]
    %v1350 = vld [vmem:[%s19 + $0x18] sm:$0xf]
    %v1351 = vld [vmem:[%s19 + $0x1c] sm:$0xf]
    %v1352 = vld [vmem:[%s19 + $0x20] sm:$0xf]
    %v1353 = vld [vmem:[%s19 + $0x24] sm:$0xf]
    %v1354 = vld [vmem:[%s19 + $0x28] sm:$0xf]
    %v1355 = vld [vmem:[%s19 + $0x2c] sm:$0xf]
    %v1356 = vld [vmem:[%s19 + $0x30] sm:$0xf]
    %v1357 = vld [vmem:[%s19 + $0x34] sm:$0xf]
    %v1358 = vld [vmem:[%s19 + $0x38] sm:$0xf]
    %v1359 = vld [vmem:[%s19 + $0x3c] sm:$0xf]
    %v1376 = vunpack.c.l.b16 %v1344
    %v1377 = vunpack.c.l.b16 %v1345
    %v1378 = vunpack.c.l.b16 %v1346
    %v1379 = vunpack.c.l.b16 %v1347
    %v1380 = vunpack.c.l.b16 %v1348
    %v1381 = vunpack.c.l.b16 %v1349
    %v1382 = vunpack.c.l.b16 %v1350
    %v1383 = vunpack.c.l.b16 %v1351
    %v1384 = vunpack.c.l.b16 %v1352
    %v1385 = vunpack.c.l.b16 %v1353
    %v1386 = vunpack.c.l.b16 %v1354
    %v1387 = vunpack.c.l.b16 %v1355
    %v1388 = vunpack.c.l.b16 %v1356
    %v1389 = vunpack.c.l.b16 %v1357
    %v1390 = vunpack.c.l.b16 %v1358
    %v1391 = vunpack.c.l.b16 %v1359
    %v1392 = vpack.c.b16 %v1377, %v1376
    %v1393 = vpack.c.b16 %v1379, %v1378
    %v1394 = vpack.c.b16 %v1381, %v1380
    %v1395 = vpack.c.b16 %v1383, %v1382
    %v1396 = vpack.c.b16 %v1385, %v1384
    %v1397 = vpack.c.b16 %v1387, %v1386
    %v1398 = vpack.c.b16 %v1389, %v1388
    %v1399 = vpack.c.b16 %v1391, %v1390
    %1408 = vmatprep.subr.bf16.mxu0 0
    %1409 = vmatpush1.bf16.msra.mxu0 %v1392
    %1410 = vmatprep.subr.bf16.mxu0 0
    %1411 = vmatpush1.bf16.msra.mxu0 %v1393
    %1412 = vmatprep.subr.bf16.mxu0 0
    %1413 = vmatpush1.bf16.msra.mxu0 %v1394
    %1414 = vmatprep.subr.bf16.mxu0 0
    %1415 = vmatpush1.bf16.msra.mxu0 %v1395
    %1416 = vmatprep.subr.bf16.mxu0 0
    %1417 = vmatpush1.bf16.msra.mxu0 %v1396
    %1418 = vmatprep.subr.bf16.mxu0 0
    %1419 = vmatpush1.bf16.msra.mxu0 %v1397
    %1420 = vmatprep.subr.bf16.mxu0 0
    %1421 = vmatpush1.bf16.msra.mxu0 %v1398
    %1422 = vmatprep.subr.bf16.mxu0 0
    %1423 = vmatpush1.bf16.msra.mxu0 %v1399
    %1424 = vmatprep.subr.bf16.mxu0 0
    %1425 = vmatpush1.bf16.msra.mxu0 0
    %1426 = vmatprep.subr.bf16.mxu0 0
    %1427 = vmatpush1.bf16.msra.mxu0 0
    %1428 = vmatprep.subr.bf16.mxu0 0
    %1429 = vmatpush1.bf16.msra.mxu0 0
    %1430 = vmatprep.subr.bf16.mxu0 0
    %1431 = vmatpush1.bf16.msra.mxu0 0
    %1432 = vmatprep.subr.bf16.mxu0 0
    %1433 = vmatpush1.bf16.msra.mxu0 0
    %1434 = vmatprep.subr.bf16.mxu0 0
    %1435 = vmatpush1.bf16.msra.mxu0 0
    %1436 = vmatprep.subr.bf16.mxu0 0
    %1437 = vmatpush1.bf16.msra.mxu0 0
    %1438 = vmatprep.subr.bf16.mxu0 0
    %1439 = vmatpush1.bf16.msra.mxu0 0
    %1440 = vmatprep.mubr.bf16.mxu0 0
    %1441 = vmatmul.mubr.bf16.gmra.mrb[0].mxu0 %v1336
    %v1442 = vpop.f32.mrb[0].mxu0
    %v1443 = vadd.f32 0.0, %v1442
    %v1444 = vpop.f32.mrb[0].mxu0
    %v1445 = vpop.f32.mrb[0].mxu0
    %v1446 = vadd.f32 0.0, %v1445
    %v1447 = vpop.f32.mrb[0].mxu0
    %1448 = vmatprep.mubr.bf16.mxu0 0
    %1449 = vmatmul.mubr.bf16.gmra.mrb[0].mxu0 %v1337
    %v1450 = vpop.f32.mrb[0].mxu0
    %v1451 = vadd.f32 0.0, %v1450
    %v1452 = vpop.f32.mrb[0].mxu0
    %v1453 = vpop.f32.mrb[0].mxu0
    %v1454 = vadd.f32 0.0, %v1453
    %v1455 = vpop.f32.mrb[0].mxu0
    %1456 = vmatprep.mubr.bf16.mxu0 0
    %1457 = vmatmul.mubr.bf16.gmra.mrb[0].mxu0 %v1338
    %v1458 = vpop.f32.mrb[0].mxu0
    %v1459 = vadd.f32 0.0, %v1458
    %v1460 = vpop.f32.mrb[0].mxu0
    %v1461 = vpop.f32.mrb[0].mxu0
    %v1462 = vadd.f32 0.0, %v1461
    %v1463 = vpop.f32.mrb[0].mxu0
    %1464 = vmatprep.mubr.bf16.mxu0 0
    %1465 = vmatmul.mubr.bf16.gmra.mrb[0].mxu0 %v1339
    %v1466 = vpop.f32.mrb[0].mxu0
    %v1467 = vadd.f32 0.0, %v1466
    %v1468 = vpop.f32.mrb[0].mxu0
    %v1469 = vpop.f32.mrb[0].mxu0
    %v1470 = vadd.f32 0.0, %v1469
    %v1471 = vpop.f32.mrb[0].mxu0
    %1472 = vmatprep.mubr.bf16.mxu0 0
    %1473 = vmatmul.mubr.bf16.gmra.mrb[0].mxu0 %v1340
    %v1474 = vpop.f32.mrb[0].mxu0
    %v1475 = vadd.f32 0.0, %v1474
    %v1476 = vpop.f32.mrb[0].mxu0
    %v1477 = vpop.f32.mrb[0].mxu0
    %v1478 = vadd.f32 0.0, %v1477
    %v1479 = vpop.f32.mrb[0].mxu0
    %1480 = vmatprep.mubr.bf16.mxu0 0
    %1481 = vmatmul.mubr.bf16.gmra.mrb[0].mxu0 %v1341
    %v1482 = vpop.f32.mrb[0].mxu0
    %v1483 = vadd.f32 0.0, %v1482
    %v1484 = vpop.f32.mrb[0].mxu0
    %v1485 = vpop.f32.mrb[0].mxu0
    %v1486 = vadd.f32 0.0, %v1485
    %v1487 = vpop.f32.mrb[0].mxu0
    %1488 = vmatprep.mubr.bf16.mxu0 0
    %1489 = vmatmul.mubr.bf16.gmra.mrb[0].mxu0 %v1342
    %v1490 = vpop.f32.mrb[0].mxu0
    %v1491 = vadd.f32 0.0, %v1490
    %v1492 = vpop.f32.mrb[0].mxu0
    %v1493 = vpop.f32.mrb[0].mxu0
    %v1494 = vadd.f32 0.0, %v1493
    %v1495 = vpop.f32.mrb[0].mxu0
    %1496 = vmatprep.mubr.bf16.mxu0 0
    %1497 = vmatmul.mubr.bf16.gmra.mrb[0].mxu0 %v1343
    %v1498 = vpop.f32.mrb[0].mxu0
    %v1499 = vadd.f32 0.0, %v1498
    %v1500 = vpop.f32.mrb[0].mxu0
    %v1501 = vpop.f32.mrb[0].mxu0
    %v1502 = vadd.f32 0.0, %v1501
    %v1503 = vpop.f32.mrb[0].mxu0
    %1504 = vdwg.mxu0
    %v1505 = vmul.f32 %v1443, %v628
    %v1506 = vmul.f32 %v1446, %v631
    %v1507 = vmul.f32 %v1451, %v636
    %v1508 = vmul.f32 %v1454, %v639
    %v1509 = vmul.f32 %v1459, %v644
    %v1510 = vmul.f32 %v1462, %v647
    %v1511 = vmul.f32 %v1467, %v652
    %v1512 = vmul.f32 %v1470, %v655
    %v1513 = vmul.f32 %v1475, %v660
    %v1514 = vmul.f32 %v1478, %v663
    %v1515 = vmul.f32 %v1483, %v668
    %v1516 = vmul.f32 %v1486, %v671
    %v1517 = vmul.f32 %v1491, %v676
    %v1518 = vmul.f32 %v1494, %v679
    %v1519 = vmul.f32 %v1499, %v684
    %v1520 = vmul.f32 %v1502, %v687
    %v1521 = vadd.f32 %v1505, %v1506
    %v1522 = vadd.f32 %v1521, %v1507
    %v1523 = vadd.f32 %v1522, %v1508
    %v1524 = vadd.f32 %v1523, %v1509
    %v1525 = vadd.f32 %v1524, %v1510
    %v1526 = vadd.f32 %v1525, %v1511
    %v1527 = vadd.f32 %v1526, %v1512
    %v1528 = vrot.slane %v1527, 4
    %v1529 = vadd.f32 %v1527, %v1528
    %v1530 = vrot.slane %v1529, 2
    %v1531 = vadd.f32 %v1529, %v1530
    %v1532 = vrot.slane %v1531, 1
    %v1533 = vadd.f32 %v1531, %v1532
    %v1534 = vadd.f32 %v1513, %v1514
    %v1535 = vadd.f32 %v1534, %v1515
    %v1536 = vadd.f32 %v1535, %v1516
    %v1537 = vadd.f32 %v1536, %v1517
    %v1538 = vadd.f32 %v1537, %v1518
    %v1539 = vadd.f32 %v1538, %v1519
    %v1540 = vadd.f32 %v1539, %v1520
    %v1541 = vrot.slane %v1540, 4
    %v1542 = vadd.f32 %v1540, %v1541
    %v1543 = vrot.slane %v1542, 2
    %v1544 = vadd.f32 %v1542, %v1543
    %v1545 = vrot.slane %v1544, 1
    %v1546 = vadd.f32 %v1544, %v1545
    %v1547 = vmul.f32 %v1533, %v796
    %v1548 = vmul.f32 %v1533, %v799
    %v1549 = vmul.f32 %v1533, %v804
    %v1550 = vmul.f32 %v1533, %v807
    %v1551 = vmul.f32 %v1533, %v812
    %v1552 = vmul.f32 %v1533, %v815
    %v1553 = vmul.f32 %v1533, %v820
    %v1554 = vmul.f32 %v1533, %v823
    %v1555 = vmul.f32 %v1546, %v828
    %v1556 = vmul.f32 %v1546, %v831
    %v1557 = vmul.f32 %v1546, %v836
    %v1558 = vmul.f32 %v1546, %v839
    %v1559 = vmul.f32 %v1546, %v844
    %v1560 = vmul.f32 %v1546, %v847
    %v1561 = vmul.f32 %v1546, %v852
    %v1562 = vmul.f32 %v1546, %v855
    %v1563 = vmul.f32 %v1547, %v964
    %v1564 = vmul.f32 %v1548, %v967
    %v1565 = vmul.f32 %v1549, %v972
    %v1566 = vmul.f32 %v1550, %v975
    %v1567 = vmul.f32 %v1551, %v980
    %v1568 = vmul.f32 %v1552, %v983
    %v1569 = vmul.f32 %v1553, %v988
    %v1570 = vmul.f32 %v1554, %v991
    %v1571 = vmul.f32 %v1555, %v996
    %v1572 = vmul.f32 %v1556, %v999
    %v1573 = vmul.f32 %v1557, %v1004
    %v1574 = vmul.f32 %v1558, %v1007
    %v1575 = vmul.f32 %v1559, %v1012
    %v1576 = vmul.f32 %v1560, %v1015
    %v1577 = vmul.f32 %v1561, %v1020
    %v1578 = vmul.f32 %v1562, %v1023
    %v1579 = vpack.c.bf16 %v1564, %v1563
    %v1580 = vpack.c.bf16 %v1566, %v1565
    %v1581 = vpack.c.bf16 %v1568, %v1567
    %v1582 = vpack.c.bf16 %v1570, %v1569
    %v1583 = vpack.c.bf16 %v1572, %v1571
    %v1584 = vpack.c.bf16 %v1574, %v1573
    %v1585 = vpack.c.bf16 %v1576, %v1575
    %v1586 = vpack.c.bf16 %v1578, %v1577
    %v1587 = vld [vmem:[#allocation17] sm:$0xf]
    %v1588 = vld [vmem:[#allocation17 + $0x4] sm:$0xf]
    %v1589 = vld [vmem:[#allocation17 + $0x8] sm:$0xf]
    %v1590 = vld [vmem:[#allocation17 + $0xc] sm:$0xf]
    %v1591 = vld [vmem:[#allocation17 + $0x10] sm:$0xf]
    %v1592 = vld [vmem:[#allocation17 + $0x14] sm:$0xf]
    %v1593 = vld [vmem:[#allocation17 + $0x18] sm:$0xf]
    %v1594 = vld [vmem:[#allocation17 + $0x1c] sm:$0xf]
    %v1595 = vld [vmem:[#allocation17 + $0x20] sm:$0xf]
    %v1596 = vld [vmem:[#allocation17 + $0x24] sm:$0xf]
    %v1597 = vld [vmem:[#allocation17 + $0x28] sm:$0xf]
    %v1598 = vld [vmem:[#allocation17 + $0x2c] sm:$0xf]
    %v1599 = vld [vmem:[#allocation17 + $0x30] sm:$0xf]
    %v1600 = vld [vmem:[#allocation17 + $0x34] sm:$0xf]
    %v1601 = vld [vmem:[#allocation17 + $0x38] sm:$0xf]
    %v1602 = vld [vmem:[#allocation17 + $0x3c] sm:$0xf]
    %v1603 = vld [vmem:[#allocation19] sm:$0x1]
    %v1605 = vlaneseq
    %v1606 = vshrl.u32 %v1605, 7
    %v1607 = vsub.s32 0, %v1606
    %v1608 = vrot.slane %v1603, %v1607
    %v1626 = vunpack.c.l.b16 %v1587
    %v1627 = vunpack.c.l.b16 %v1588
    %v1628 = vunpack.c.l.b16 %v1589
    %v1629 = vunpack.c.l.b16 %v1590
    %v1630 = vunpack.c.l.b16 %v1591
    %v1631 = vunpack.c.l.b16 %v1592
    %v1632 = vunpack.c.l.b16 %v1593
    %v1633 = vunpack.c.l.b16 %v1594
    %v1634 = vunpack.c.l.b16 %v1595
    %v1635 = vunpack.c.l.b16 %v1596
    %v1636 = vunpack.c.l.b16 %v1597
    %v1637 = vunpack.c.l.b16 %v1598
    %v1638 = vunpack.c.l.b16 %v1599
    %v1639 = vunpack.c.l.b16 %v1600
    %v1640 = vunpack.c.l.b16 %v1601
    %v1641 = vunpack.c.l.b16 %v1602
    %v1642 = vpack.c.b16 %v1627, %v1626
    %v1643 = vpack.c.b16 %v1629, %v1628
    %v1644 = vpack.c.b16 %v1631, %v1630
    %v1645 = vpack.c.b16 %v1633, %v1632
    %v1646 = vpack.c.b16 %v1635, %v1634
    %v1647 = vpack.c.b16 %v1637, %v1636
    %v1648 = vpack.c.b16 %v1639, %v1638
    %v1649 = vpack.c.b16 %v1641, %v1640
    %1658 = vmatprep.subr.bf16.mxu0 0
    %1659 = vmatpush1.bf16.msra.mxu0 %v1642
    %1660 = vmatprep.subr.bf16.mxu0 0
    %1661 = vmatpush1.bf16.msra.mxu0 %v1643
    %1662 = vmatprep.subr.bf16.mxu0 0
    %1663 = vmatpush1.bf16.msra.mxu0 %v1644
    %1664 = vmatprep.subr.bf16.mxu0 0
    %1665 = vmatpush1.bf16.msra.mxu0 %v1645
    %1666 = vmatprep.subr.bf16.mxu0 0
    %1667 = vmatpush1.bf16.msra.mxu0 %v1646
    %1668 = vmatprep.subr.bf16.mxu0 0
    %1669 = vmatpush1.bf16.msra.mxu0 %v1647
    %1670 = vmatprep.subr.bf16.mxu0 0
    %1671 = vmatpush1.bf16.msra.mxu0 %v1648
    %1672 = vmatprep.subr.bf16.mxu0 0
    %1673 = vmatpush1.bf16.msra.mxu0 %v1649
    %1674 = vmatprep.subr.bf16.mxu0 0
    %1675 = vmatpush1.bf16.msra.mxu0 0
    %1676 = vmatprep.subr.bf16.mxu0 0
    %1677 = vmatpush1.bf16.msra.mxu0 0
    %1678 = vmatprep.subr.bf16.mxu0 0
    %1679 = vmatpush1.bf16.msra.mxu0 0
    %1680 = vmatprep.subr.bf16.mxu0 0
    %1681 = vmatpush1.bf16.msra.mxu0 0
    %1682 = vmatprep.subr.bf16.mxu0 0
    %1683 = vmatpush1.bf16.msra.mxu0 0
    %1684 = vmatprep.subr.bf16.mxu0 0
    %1685 = vmatpush1.bf16.msra.mxu0 0
    %1686 = vmatprep.subr.bf16.mxu0 0
    %1687 = vmatpush1.bf16.msra.mxu0 0
    %1688 = vmatprep.subr.bf16.mxu0 0
    %1689 = vmatpush1.bf16.msra.mxu0 0
    %1690 = vmatprep.mubr.bf16.mxu0 0
    %1691 = vmatmul.mubr.bf16.gmra.mrb[0].mxu0 %v1579
    %v1692 = vpop.f32.mrb[0].mxu0
    %v1693 = vadd.f32 %v1608, %v1692
    %v1694 = vpop.f32.mrb[0].mxu0
    %v1695 = vpop.f32.mrb[0].mxu0
    %v1696 = vadd.f32 %v1608, %v1695
    %v1697 = vpop.f32.mrb[0].mxu0
    %1698 = vmatprep.mubr.bf16.mxu0 0
    %1699 = vmatmul.mubr.bf16.gmra.mrb[0].mxu0 %v1580
    %v1700 = vpop.f32.mrb[0].mxu0
    %v1701 = vadd.f32 %v1608, %v1700
    %v1702 = vpop.f32.mrb[0].mxu0
    %v1703 = vpop.f32.mrb[0].mxu0
    %v1704 = vadd.f32 %v1608, %v1703
    %v1705 = vpop.f32.mrb[0].mxu0
    %1706 = vmatprep.mubr.bf16.mxu0 0
    %1707 = vmatmul.mubr.bf16.gmra.mrb[0].mxu0 %v1581
    %v1708 = vpop.f32.mrb[0].mxu0
    %v1709 = vadd.f32 %v1608, %v1708
    %v1710 = vpop.f32.mrb[0].mxu0
    %v1711 = vpop.f32.mrb[0].mxu0
    %v1712 = vadd.f32 %v1608, %v1711
    %v1713 = vpop.f32.mrb[0].mxu0
    %1714 = vmatprep.mubr.bf16.mxu0 0
    %1715 = vmatmul.mubr.bf16.gmra.mrb[0].mxu0 %v1582
    %v1716 = vpop.f32.mrb[0].mxu0
    %v1717 = vadd.f32 %v1608, %v1716
    %v1718 = vpop.f32.mrb[0].mxu0
    %v1719 = vpop.f32.mrb[0].mxu0
    %v1720 = vadd.f32 %v1608, %v1719
    %v1721 = vpop.f32.mrb[0].mxu0
    %1722 = vmatprep.mubr.bf16.mxu0 0
    %1723 = vmatmul.mubr.bf16.gmra.mrb[0].mxu0 %v1583
    %v1724 = vpop.f32.mrb[0].mxu0
    %v1725 = vadd.f32 %v1608, %v1724
    %v1726 = vpop.f32.mrb[0].mxu0
    %v1727 = vpop.f32.mrb[0].mxu0
    %v1728 = vadd.f32 %v1608, %v1727
    %v1729 = vpop.f32.mrb[0].mxu0
    %1730 = vmatprep.mubr.bf16.mxu0 0
    %1731 = vmatmul.mubr.bf16.gmra.mrb[0].mxu0 %v1584
    %v1732 = vpop.f32.mrb[0].mxu0
    %v1733 = vadd.f32 %v1608, %v1732
    %v1734 = vpop.f32.mrb[0].mxu0
    %v1735 = vpop.f32.mrb[0].mxu0
    %v1736 = vadd.f32 %v1608, %v1735
    %v1737 = vpop.f32.mrb[0].mxu0
    %1738 = vmatprep.mubr.bf16.mxu0 0
    %1739 = vmatmul.mubr.bf16.gmra.mrb[0].mxu0 %v1585
    %v1740 = vpop.f32.mrb[0].mxu0
    %v1741 = vadd.f32 %v1608, %v1740
    %v1742 = vpop.f32.mrb[0].mxu0
    %v1743 = vpop.f32.mrb[0].mxu0
    %v1744 = vadd.f32 %v1608, %v1743
    %v1745 = vpop.f32.mrb[0].mxu0
    %1746 = vmatprep.mubr.bf16.mxu0 0
    %1747 = vmatmul.mubr.bf16.gmra.mrb[0].mxu0 %v1586
    %v1748 = vpop.f32.mrb[0].mxu0
    %v1749 = vadd.f32 %v1608, %v1748
    %v1750 = vpop.f32.mrb[0].mxu0
    %v1751 = vpop.f32.mrb[0].mxu0
    %v1752 = vadd.f32 %v1608, %v1751
    %v1753 = vpop.f32.mrb[0].mxu0
    %1754 = vdwg.mxu0
    %v1755 = vadd.f32 %v261, %v1693
    %v1756 = vadd.f32 %v262, %v1696
    %v1757 = vadd.f32 %v263, %v1701
    %v1758 = vadd.f32 %v264, %v1704
    %v1759 = vadd.f32 %v265, %v1709
    %v1760 = vadd.f32 %v266, %v1712
    %v1761 = vadd.f32 %v267, %v1717
    %v1762 = vadd.f32 %v268, %v1720
    %v1763 = vadd.f32 %v269, %v1725
    %v1764 = vadd.f32 %v270, %v1728
    %v1765 = vadd.f32 %v271, %v1733
    %v1766 = vadd.f32 %v272, %v1736
    %v1767 = vadd.f32 %v273, %v1741
    %v1768 = vadd.f32 %v274, %v1744
    %v1769 = vadd.f32 %v275, %v1749
    %v1770 = vadd.f32 %v276, %v1752
    %1771 = vadd.xlane.f32.xlu0 %v1755
    %v1772 = vpop.xlane.xlu0 %1771
    %1773 = vadd.xlane.f32.xlu0 %v1756
    %v1774 = vpop.xlane.xlu0 %1773
    %1775 = vadd.xlane.f32.xlu0 %v1757
    %v1776 = vpop.xlane.xlu0 %1775
    %1777 = vadd.xlane.f32.xlu0 %v1758
    %v1778 = vpop.xlane.xlu0 %1777
    %1779 = vadd.xlane.f32.xlu0 %v1759
    %v1780 = vpop.xlane.xlu0 %1779
    %1781 = vadd.xlane.f32.xlu0 %v1760
    %v1782 = vpop.xlane.xlu0 %1781
    %1783 = vadd.xlane.f32.xlu0 %v1761
    %v1784 = vpop.xlane.xlu0 %1783
    %1785 = vadd.xlane.f32.xlu0 %v1762
    %v1786 = vpop.xlane.xlu0 %1785
    %1787 = vadd.xlane.f32.xlu0 %v1763
    %v1788 = vpop.xlane.xlu0 %1787
    %1789 = vadd.xlane.f32.xlu0 %v1764
    %v1790 = vpop.xlane.xlu0 %1789
    %1791 = vadd.xlane.f32.xlu0 %v1765
    %v1792 = vpop.xlane.xlu0 %1791
    %1793 = vadd.xlane.f32.xlu0 %v1766
    %v1794 = vpop.xlane.xlu0 %1793
    %1795 = vadd.xlane.f32.xlu0 %v1767
    %v1796 = vpop.xlane.xlu0 %1795
    %1797 = vadd.xlane.f32.xlu0 %v1768
    %v1798 = vpop.xlane.xlu0 %1797
    %1799 = vadd.xlane.f32.xlu0 %v1769
    %v1800 = vpop.xlane.xlu0 %1799
    %1801 = vadd.xlane.f32.xlu0 %v1770
    %v1802 = vpop.xlane.xlu0 %1801
    %v1803 = vmul.f32 %v1772, %v309
    %v1804 = vmul.f32 %v1774, %v309
    %v1805 = vmul.f32 %v1776, %v309
    %v1806 = vmul.f32 %v1778, %v309
    %v1807 = vmul.f32 %v1780, %v309
    %v1808 = vmul.f32 %v1782, %v309
    %v1809 = vmul.f32 %v1784, %v309
    %v1810 = vmul.f32 %v1786, %v309
    %v1811 = vmul.f32 %v1788, %v309
    %v1812 = vmul.f32 %v1790, %v309
    %v1813 = vmul.f32 %v1792, %v309
    %v1814 = vmul.f32 %v1794, %v309
    %v1815 = vmul.f32 %v1796, %v309
    %v1816 = vmul.f32 %v1798, %v309
    %v1817 = vmul.f32 %v1800, %v309
    %v1818 = vmul.f32 %v1802, %v309
    %v1819 = vsub.f32 %v1755, %v1803
    %v1820 = vsub.f32 %v1756, %v1804
    %v1821 = vsub.f32 %v1757, %v1805
    %v1822 = vsub.f32 %v1758, %v1806
    %v1823 = vsub.f32 %v1759, %v1807
    %v1824 = vsub.f32 %v1760, %v1808
    %v1825 = vsub.f32 %v1761, %v1809
    %v1826 = vsub.f32 %v1762, %v1810
    %v1827 = vsub.f32 %v1763, %v1811
    %v1828 = vsub.f32 %v1764, %v1812
    %v1829 = vsub.f32 %v1765, %v1813
    %v1830 = vsub.f32 %v1766, %v1814
    %v1831 = vsub.f32 %v1767, %v1815
    %v1832 = vsub.f32 %v1768, %v1816
    %v1833 = vsub.f32 %v1769, %v1817
    %v1834 = vsub.f32 %v1770, %v1818
    %v1835 = vmul.f32 %v1819, %v1819
    %v1836 = vmul.f32 %v1820, %v1820
    %v1837 = vmul.f32 %v1821, %v1821
    %v1838 = vmul.f32 %v1822, %v1822
    %v1839 = vmul.f32 %v1823, %v1823
    %v1840 = vmul.f32 %v1824, %v1824
    %v1841 = vmul.f32 %v1825, %v1825
    %v1842 = vmul.f32 %v1826, %v1826
    %v1843 = vmul.f32 %v1827, %v1827
    %v1844 = vmul.f32 %v1828, %v1828
    %v1845 = vmul.f32 %v1829, %v1829
    %v1846 = vmul.f32 %v1830, %v1830
    %v1847 = vmul.f32 %v1831, %v1831
    %v1848 = vmul.f32 %v1832, %v1832
    %v1849 = vmul.f32 %v1833, %v1833
    %v1850 = vmul.f32 %v1834, %v1834
    %1851 = vadd.xlane.f32.xlu0 %v1835
    %v1852 = vpop.xlane.xlu0 %1851
    %1853 = vadd.xlane.f32.xlu0 %v1836
    %v1854 = vpop.xlane.xlu0 %1853
    %1855 = vadd.xlane.f32.xlu0 %v1837
    %v1856 = vpop.xlane.xlu0 %1855
    %1857 = vadd.xlane.f32.xlu0 %v1838
    %v1858 = vpop.xlane.xlu0 %1857
    %1859 = vadd.xlane.f32.xlu0 %v1839
    %v1860 = vpop.xlane.xlu0 %1859
    %1861 = vadd.xlane.f32.xlu0 %v1840
    %v1862 = vpop.xlane.xlu0 %1861
    %1863 = vadd.xlane.f32.xlu0 %v1841
    %v1864 = vpop.xlane.xlu0 %1863
    %1865 = vadd.xlane.f32.xlu0 %v1842
    %v1866 = vpop.xlane.xlu0 %1865
    %1867 = vadd.xlane.f32.xlu0 %v1843
    %v1868 = vpop.xlane.xlu0 %1867
    %1869 = vadd.xlane.f32.xlu0 %v1844
    %v1870 = vpop.xlane.xlu0 %1869
    %1871 = vadd.xlane.f32.xlu0 %v1845
    %v1872 = vpop.xlane.xlu0 %1871
    %1873 = vadd.xlane.f32.xlu0 %v1846
    %v1874 = vpop.xlane.xlu0 %1873
    %1875 = vadd.xlane.f32.xlu0 %v1847
    %v1876 = vpop.xlane.xlu0 %1875
    %1877 = vadd.xlane.f32.xlu0 %v1848
    %v1878 = vpop.xlane.xlu0 %1877
    %1879 = vadd.xlane.f32.xlu0 %v1849
    %v1880 = vpop.xlane.xlu0 %1879
    %1881 = vadd.xlane.f32.xlu0 %v1850
    %v1882 = vpop.xlane.xlu0 %1881
    %v1883 = vmul.f32 %v1852, %v309
    %v1884 = vmul.f32 %v1854, %v309
    %v1885 = vmul.f32 %v1856, %v309
    %v1886 = vmul.f32 %v1858, %v309
    %v1887 = vmul.f32 %v1860, %v309
    %v1888 = vmul.f32 %v1862, %v309
    %v1889 = vmul.f32 %v1864, %v309
    %v1890 = vmul.f32 %v1866, %v309
    %v1891 = vmul.f32 %v1868, %v309
    %v1892 = vmul.f32 %v1870, %v309
    %v1893 = vmul.f32 %v1872, %v309
    %v1894 = vmul.f32 %v1874, %v309
    %v1895 = vmul.f32 %v1876, %v309
    %v1896 = vmul.f32 %v1878, %v309
    %v1897 = vmul.f32 %v1880, %v309
    %v1898 = vmul.f32 %v1882, %v309
    %v1899 = vadd.f32 %v1883, 1e-06
    %v1900 = vadd.f32 %v1884, 1e-06
    %v1901 = vadd.f32 %v1885, 1e-06
    %v1902 = vadd.f32 %v1886, 1e-06
    %v1903 = vadd.f32 %v1887, 1e-06
    %v1904 = vadd.f32 %v1888, 1e-06
    %v1905 = vadd.f32 %v1889, 1e-06
    %v1906 = vadd.f32 %v1890, 1e-06
    %v1907 = vadd.f32 %v1891, 1e-06
    %v1908 = vadd.f32 %v1892, 1e-06
    %v1909 = vadd.f32 %v1893, 1e-06
    %v1910 = vadd.f32 %v1894, 1e-06
    %v1911 = vadd.f32 %v1895, 1e-06
    %v1912 = vadd.f32 %v1896, 1e-06
    %v1913 = vadd.f32 %v1897, 1e-06
    %v1914 = vadd.f32 %v1898, 1e-06
    %v1915 = vrsqrt.pop %v1899
    %v1916 = vrsqrt.pop %v1900
    %v1917 = vrsqrt.pop %v1901
    %v1918 = vrsqrt.pop %v1902
    %v1919 = vrsqrt.pop %v1903
    %v1920 = vrsqrt.pop %v1904
    %v1921 = vrsqrt.pop %v1905
    %v1922 = vrsqrt.pop %v1906
    %v1923 = vrsqrt.pop %v1907
    %v1924 = vrsqrt.pop %v1908
    %v1925 = vrsqrt.pop %v1909
    %v1926 = vrsqrt.pop %v1910
    %v1927 = vrsqrt.pop %v1911
    %v1928 = vrsqrt.pop %v1912
    %v1929 = vrsqrt.pop %v1913
    %v1930 = vrsqrt.pop %v1914
    %v1931 = vmul.f32 %v1819, %v1915
    %v1932 = vmul.f32 %v1820, %v1916
    %v1933 = vmul.f32 %v1821, %v1917
    %v1934 = vmul.f32 %v1822, %v1918
    %v1935 = vmul.f32 %v1823, %v1919
    %v1936 = vmul.f32 %v1824, %v1920
    %v1937 = vmul.f32 %v1825, %v1921
    %v1938 = vmul.f32 %v1826, %v1922
    %v1939 = vmul.f32 %v1827, %v1923
    %v1940 = vmul.f32 %v1828, %v1924
    %v1941 = vmul.f32 %v1829, %v1925
    %v1942 = vmul.f32 %v1830, %v1926
    %v1943 = vmul.f32 %v1831, %v1927
    %v1944 = vmul.f32 %v1832, %v1928
    %v1945 = vmul.f32 %v1833, %v1929
    %v1946 = vmul.f32 %v1834, %v1930
    %v1947 = vld [vmem:[%s3] sm:$0x1]
    %v1948 = vld [vmem:[%s3 + $0x1] sm:$0x1]
    %v1951 = vlaneseq
    %v1952 = vshrl.u32 %v1951, 7
    %v1953 = vsub.s32 0, %v1952
    %v1954 = vrot.slane %v1947, %v1953
    %v1955 = vlaneseq
    %v1956 = vshrl.u32 %v1955, 7
    %v1957 = vsub.s32 0, %v1956
    %v1958 = vrot.slane %v1948, %v1957
    %v1961 = vmul.f32 %v1931, %v1954
    %v1962 = vmul.f32 %v1932, %v1954
    %v1963 = vmul.f32 %v1933, %v1954
    %v1964 = vmul.f32 %v1934, %v1954
    %v1965 = vmul.f32 %v1935, %v1954
    %v1966 = vmul.f32 %v1936, %v1954
    %v1967 = vmul.f32 %v1937, %v1954
    %v1968 = vmul.f32 %v1938, %v1954
    %v1969 = vmul.f32 %v1939, %v1958
    %v1970 = vmul.f32 %v1940, %v1958
    %v1971 = vmul.f32 %v1941, %v1958
    %v1972 = vmul.f32 %v1942, %v1958
    %v1973 = vmul.f32 %v1943, %v1958
    %v1974 = vmul.f32 %v1944, %v1958
    %v1975 = vmul.f32 %v1945, %v1958
    %v1976 = vmul.f32 %v1946, %v1958
    %v1977 = vld [vmem:[#allocation5] sm:$0x1]
    %v1978 = vld [vmem:[#allocation5 + $0x1] sm:$0x1]
    %v1981 = vlaneseq
    %v1982 = vshrl.u32 %v1981, 7
    %v1983 = vsub.s32 0, %v1982
    %v1984 = vrot.slane %v1977, %v1983
    %v1985 = vlaneseq
    %v1986 = vshrl.u32 %v1985, 7
    %v1987 = vsub.s32 0, %v1986
    %v1988 = vrot.slane %v1978, %v1987
    %v1991 = vadd.f32 %v1961, %v1984
    %v1992 = vadd.f32 %v1962, %v1984
    %v1993 = vadd.f32 %v1963, %v1984
    %v1994 = vadd.f32 %v1964, %v1984
    %v1995 = vadd.f32 %v1965, %v1984
    %v1996 = vadd.f32 %v1966, %v1984
    %v1997 = vadd.f32 %v1967, %v1984
    %v1998 = vadd.f32 %v1968, %v1984
    %v1999 = vadd.f32 %v1969, %v1988
    %v2000 = vadd.f32 %v1970, %v1988
    %v2001 = vadd.f32 %v1971, %v1988
    %v2002 = vadd.f32 %v1972, %v1988
    %v2003 = vadd.f32 %v1973, %v1988
    %v2004 = vadd.f32 %v1974, %v1988
    %v2005 = vadd.f32 %v1975, %v1988
    %v2006 = vadd.f32 %v1976, %v1988
    %v2007 = vpack.c.bf16 %v1992, %v1991
    %v2008 = vpack.c.bf16 %v1994, %v1993
    %v2009 = vpack.c.bf16 %v1996, %v1995
    %v2010 = vpack.c.bf16 %v1998, %v1997
    %v2011 = vpack.c.bf16 %v2000, %v1999
    %v2012 = vpack.c.bf16 %v2002, %v2001
    %v2013 = vpack.c.bf16 %v2004, %v2003
    %v2014 = vpack.c.bf16 %v2006, %v2005
    %v2015 = vld [vmem:[#allocation20] sm:$0xff]
    %v2016 = vld [vmem:[#allocation20 + $0x8] sm:$0xff]
    %v2017 = vld [vmem:[#allocation20 + $0x10] sm:$0xff]
    %v2018 = vld [vmem:[#allocation20 + $0x18] sm:$0xff]
    %v2019 = vld [vmem:[#allocation20 + $0x20] sm:$0xff]
    %v2020 = vld [vmem:[#allocation20 + $0x28] sm:$0xff]
    %v2021 = vld [vmem:[#allocation20 + $0x30] sm:$0xff]
    %v2022 = vld [vmem:[#allocation20 + $0x38] sm:$0xff]
    %v2023 = vld [vmem:[#allocation20 + $0x40] sm:$0xff]
    %v2024 = vld [vmem:[#allocation20 + $0x48] sm:$0xff]
    %v2025 = vld [vmem:[#allocation20 + $0x50] sm:$0xff]
    %v2026 = vld [vmem:[#allocation20 + $0x58] sm:$0xff]
    %v2027 = vld [vmem:[#allocation20 + $0x60] sm:$0xff]
    %v2028 = vld [vmem:[#allocation20 + $0x68] sm:$0xff]
    %v2029 = vld [vmem:[#allocation20 + $0x70] sm:$0xff]
    %v2030 = vld [vmem:[#allocation20 + $0x78] sm:$0xff]
    %v2031 = vld [vmem:[#allocation22] sm:$0x3]
    %v2033 = vlaneseq
    %v2034 = vshrl.u32 %v2033, 7
    %v2035 = vsub.s32 0, %v2034
    %v2036 = vrot.slane %v2031, %v2035
    %v2037 = vlaneseq
    %v2038 = vshrl.u32 %v2037, 7
    %v2039 = vsub.s32 1, %v2038
    %v2040 = vrot.slane %v2031, %v2039
    %v2059 = vunpack.c.l.b16 %v2015
    %v2060 = vunpack.c.h.b16 %v2015
    %v2061 = vunpack.c.l.b16 %v2016
    %v2062 = vunpack.c.h.b16 %v2016
    %v2063 = vunpack.c.l.b16 %v2017
    %v2064 = vunpack.c.h.b16 %v2017
    %v2065 = vunpack.c.l.b16 %v2018
    %v2066 = vunpack.c.h.b16 %v2018
    %v2067 = vunpack.c.l.b16 %v2019
    %v2068 = vunpack.c.h.b16 %v2019
    %v2069 = vunpack.c.l.b16 %v2020
    %v2070 = vunpack.c.h.b16 %v2020
    %v2071 = vunpack.c.l.b16 %v2021
    %v2072 = vunpack.c.h.b16 %v2021
    %v2073 = vunpack.c.l.b16 %v2022
    %v2074 = vunpack.c.h.b16 %v2022
    %v2075 = vunpack.c.l.b16 %v2023
    %v2076 = vunpack.c.h.b16 %v2023
    %v2077 = vunpack.c.l.b16 %v2024
    %v2078 = vunpack.c.h.b16 %v2024
    %v2079 = vunpack.c.l.b16 %v2025
    %v2080 = vunpack.c.h.b16 %v2025
    %v2081 = vunpack.c.l.b16 %v2026
    %v2082 = vunpack.c.h.b16 %v2026
    %v2083 = vunpack.c.l.b16 %v2027
    %v2084 = vunpack.c.h.b16 %v2027
    %v2085 = vunpack.c.l.b16 %v2028
    %v2086 = vunpack.c.h.b16 %v2028
    %v2087 = vunpack.c.l.b16 %v2029
    %v2088 = vunpack.c.h.b16 %v2029
    %v2089 = vunpack.c.l.b16 %v2030
    %v2090 = vunpack.c.h.b16 %v2030
    %v2091 = vpack.c.b16 %v2061, %v2059
    %v2092 = vpack.c.b16 %v2062, %v2060
    %v2093 = vpack.c.b16 %v2065, %v2063
    %v2094 = vpack.c.b16 %v2066, %v2064
    %v2095 = vpack.c.b16 %v2069, %v2067
    %v2096 = vpack.c.b16 %v2070, %v2068
    %v2097 = vpack.c.b16 %v2073, %v2071
    %v2098 = vpack.c.b16 %v2074, %v2072
    %v2099 = vpack.c.b16 %v2077, %v2075
    %v2100 = vpack.c.b16 %v2078, %v2076
    %v2101 = vpack.c.b16 %v2081, %v2079
    %v2102 = vpack.c.b16 %v2082, %v2080
    %v2103 = vpack.c.b16 %v2085, %v2083
    %v2104 = vpack.c.b16 %v2086, %v2084
    %v2105 = vpack.c.b16 %v2089, %v2087
    %v2106 = vpack.c.b16 %v2090, %v2088
    %2123 = vmatprep.subr.bf16.mxu0 %v2092
    %2124 = vmatpush1.bf16.msra.mxu0 %v2091
    %2125 = vmatprep.subr.bf16.mxu0 %v2094
    %2126 = vmatpush1.bf16.msra.mxu0 %v2093
    %2127 = vmatprep.subr.bf16.mxu0 %v2096
    %2128 = vmatpush1.bf16.msra.mxu0 %v2095
    %2129 = vmatprep.subr.bf16.mxu0 %v2098
    %2130 = vmatpush1.bf16.msra.mxu0 %v2097
    %2131 = vmatprep.subr.bf16.mxu0 %v2100
    %2132 = vmatpush1.bf16.msra.mxu0 %v2099
    %2133 = vmatprep.subr.bf16.mxu0 %v2102
    %2134 = vmatpush1.bf16.msra.mxu0 %v2101
    %2135 = vmatprep.subr.bf16.mxu0 %v2104
    %2136 = vmatpush1.bf16.msra.mxu0 %v2103
    %2137 = vmatprep.subr.bf16.mxu0 %v2106
    %2138 = vmatpush1.bf16.msra.mxu0 %v2105
    %2139 = vmatprep.subr.bf16.mxu0 0
    %2140 = vmatpush1.bf16.msra.mxu0 0
    %2141 = vmatprep.subr.bf16.mxu0 0
    %2142 = vmatpush1.bf16.msra.mxu0 0
    %2143 = vmatprep.subr.bf16.mxu0 0
    %2144 = vmatpush1.bf16.msra.mxu0 0
    %2145 = vmatprep.subr.bf16.mxu0 0
    %2146 = vmatpush1.bf16.msra.mxu0 0
    %2147 = vmatprep.subr.bf16.mxu0 0
    %2148 = vmatpush1.bf16.msra.mxu0 0
    %2149 = vmatprep.subr.bf16.mxu0 0
    %2150 = vmatpush1.bf16.msra.mxu0 0
    %2151 = vmatprep.subr.bf16.mxu0 0
    %2152 = vmatpush1.bf16.msra.mxu0 0
    %2153 = vmatprep.subr.bf16.mxu0 0
    %2154 = vmatpush1.bf16.msra.mxu0 0
    %2155 = vmatprep.mubr.bf16.mxu0 0
    %2156 = vmatmul.mubr.bf16.gmra.mrb[0].mxu0 %v2007
    %v2157 = vpop.f32.mrb[0].mxu0
    %v2158 = vadd.f32 %v2036, %v2157
    %v2159 = vpop.f32.mrb[0].mxu0
    %v2160 = vadd.f32 %v2040, %v2159
    %v2161 = vpop.f32.mrb[0].mxu0
    %v2162 = vadd.f32 %v2036, %v2161
    %v2163 = vpop.f32.mrb[0].mxu0
    %v2164 = vadd.f32 %v2040, %v2163
    %2165 = vmatprep.mubr.bf16.mxu0 0
    %2166 = vmatmul.mubr.bf16.gmra.mrb[0].mxu0 %v2008
    %v2167 = vpop.f32.mrb[0].mxu0
    %v2168 = vadd.f32 %v2036, %v2167
    %v2169 = vpop.f32.mrb[0].mxu0
    %v2170 = vadd.f32 %v2040, %v2169
    %v2171 = vpop.f32.mrb[0].mxu0
    %v2172 = vadd.f32 %v2036, %v2171
    %v2173 = vpop.f32.mrb[0].mxu0
    %v2174 = vadd.f32 %v2040, %v2173
    %2175 = vmatprep.mubr.bf16.mxu0 0
    %2176 = vmatmul.mubr.bf16.gmra.mrb[0].mxu0 %v2009
    %v2177 = vpop.f32.mrb[0].mxu0
    %v2178 = vadd.f32 %v2036, %v2177
    %v2179 = vpop.f32.mrb[0].mxu0
    %v2180 = vadd.f32 %v2040, %v2179
    %v2181 = vpop.f32.mrb[0].mxu0
    %v2182 = vadd.f32 %v2036, %v2181
    %v2183 = vpop.f32.mrb[0].mxu0
    %v2184 = vadd.f32 %v2040, %v2183
    %2185 = vmatprep.mubr.bf16.mxu0 0
    %2186 = vmatmul.mubr.bf16.gmra.mrb[0].mxu0 %v2010
    %v2187 = vpop.f32.mrb[0].mxu0
    %v2188 = vadd.f32 %v2036, %v2187
    %v2189 = vpop.f32.mrb[0].mxu0
    %v2190 = vadd.f32 %v2040, %v2189
    %v2191 = vpop.f32.mrb[0].mxu0
    %v2192 = vadd.f32 %v2036, %v2191
    %v2193 = vpop.f32.mrb[0].mxu0
    %v2194 = vadd.f32 %v2040, %v2193
    %2195 = vmatprep.mubr.bf16.mxu0 0
    %2196 = vmatmul.mubr.bf16.gmra.mrb[0].mxu0 %v2011
    %v2197 = vpop.f32.mrb[0].mxu0
    %v2198 = vadd.f32 %v2036, %v2197
    %v2199 = vpop.f32.mrb[0].mxu0
    %v2200 = vadd.f32 %v2040, %v2199
    %v2201 = vpop.f32.mrb[0].mxu0
    %v2202 = vadd.f32 %v2036, %v2201
    %v2203 = vpop.f32.mrb[0].mxu0
    %v2204 = vadd.f32 %v2040, %v2203
    %2205 = vmatprep.mubr.bf16.mxu0 0
    %2206 = vmatmul.mubr.bf16.gmra.mrb[0].mxu0 %v2012
    %v2207 = vpop.f32.mrb[0].mxu0
    %v2208 = vadd.f32 %v2036, %v2207
    %v2209 = vpop.f32.mrb[0].mxu0
    %v2210 = vadd.f32 %v2040, %v2209
    %v2211 = vpop.f32.mrb[0].mxu0
    %v2212 = vadd.f32 %v2036, %v2211
    %v2213 = vpop.f32.mrb[0].mxu0
    %v2214 = vadd.f32 %v2040, %v2213
    %2215 = vmatprep.mubr.bf16.mxu0 0
    %2216 = vmatmul.mubr.bf16.gmra.mrb[0].mxu0 %v2013
    %v2217 = vpop.f32.mrb[0].mxu0
    %v2218 = vadd.f32 %v2036, %v2217
    %v2219 = vpop.f32.mrb[0].mxu0
    %v2220 = vadd.f32 %v2040, %v2219
    %v2221 = vpop.f32.mrb[0].mxu0
    %v2222 = vadd.f32 %v2036, %v2221
    %v2223 = vpop.f32.mrb[0].mxu0
    %v2224 = vadd.f32 %v2040, %v2223
    %2225 = vmatprep.mubr.bf16.mxu0 0
    %2226 = vmatmul.mubr.bf16.gmra.mrb[0].mxu0 %v2014
    %v2227 = vpop.f32.mrb[0].mxu0
    %v2228 = vadd.f32 %v2036, %v2227
    %v2229 = vpop.f32.mrb[0].mxu0
    %v2230 = vadd.f32 %v2040, %v2229
    %v2231 = vpop.f32.mrb[0].mxu0
    %v2232 = vadd.f32 %v2036, %v2231
    %v2233 = vpop.f32.mrb[0].mxu0
    %v2234 = vadd.f32 %v2040, %v2233
    %2235 = vdwg.mxu0
    %v2236 = vmul.f32 %v2158, 0.5
    %v2237 = vmul.f32 %v2160, 0.5
    %v2238 = vmul.f32 %v2162, 0.5
    %v2239 = vmul.f32 %v2164, 0.5
    %v2240 = vmul.f32 %v2168, 0.5
    %v2241 = vmul.f32 %v2170, 0.5
    %v2242 = vmul.f32 %v2172, 0.5
    %v2243 = vmul.f32 %v2174, 0.5
    %v2244 = vmul.f32 %v2178, 0.5
    %v2245 = vmul.f32 %v2180, 0.5
    %v2246 = vmul.f32 %v2182, 0.5
    %v2247 = vmul.f32 %v2184, 0.5
    %v2248 = vmul.f32 %v2188, 0.5
    %v2249 = vmul.f32 %v2190, 0.5
    %v2250 = vmul.f32 %v2192, 0.5
    %v2251 = vmul.f32 %v2194, 0.5
    %v2252 = vmul.f32 %v2198, 0.5
    %v2253 = vmul.f32 %v2200, 0.5
    %v2254 = vmul.f32 %v2202, 0.5
    %v2255 = vmul.f32 %v2204, 0.5
    %v2256 = vmul.f32 %v2208, 0.5
    %v2257 = vmul.f32 %v2210, 0.5
    %v2258 = vmul.f32 %v2212, 0.5
    %v2259 = vmul.f32 %v2214, 0.5
    %v2260 = vmul.f32 %v2218, 0.5
    %v2261 = vmul.f32 %v2220, 0.5
    %v2262 = vmul.f32 %v2222, 0.5
    %v2263 = vmul.f32 %v2224, 0.5
    %v2264 = vmul.f32 %v2228, 0.5
    %v2265 = vmul.f32 %v2230, 0.5
    %v2266 = vmul.f32 %v2232, 0.5
    %v2267 = vmul.f32 %v2234, 0.5
    %v2268 = vmul.f32 %v2158, 0.044715
    %v2269 = vmul.f32 %v2160, 0.044715
    %v2270 = vmul.f32 %v2162, 0.044715
    %v2271 = vmul.f32 %v2164, 0.044715
    %v2272 = vmul.f32 %v2168, 0.044715
    %v2273 = vmul.f32 %v2170, 0.044715
    %v2274 = vmul.f32 %v2172, 0.044715
    %v2275 = vmul.f32 %v2174, 0.044715
    %v2276 = vmul.f32 %v2178, 0.044715
    %v2277 = vmul.f32 %v2180, 0.044715
    %v2278 = vmul.f32 %v2182, 0.044715
    %v2279 = vmul.f32 %v2184, 0.044715
    %v2280 = vmul.f32 %v2188, 0.044715
    %v2281 = vmul.f32 %v2190, 0.044715
    %v2282 = vmul.f32 %v2192, 0.044715
    %v2283 = vmul.f32 %v2194, 0.044715
    %v2284 = vmul.f32 %v2198, 0.044715
    %v2285 = vmul.f32 %v2200, 0.044715
    %v2286 = vmul.f32 %v2202, 0.044715
    %v2287 = vmul.f32 %v2204, 0.044715
    %v2288 = vmul.f32 %v2208, 0.044715
    %v2289 = vmul.f32 %v2210, 0.044715
    %v2290 = vmul.f32 %v2212, 0.044715
    %v2291 = vmul.f32 %v2214, 0.044715
    %v2292 = vmul.f32 %v2218, 0.044715
    %v2293 = vmul.f32 %v2220, 0.044715
    %v2294 = vmul.f32 %v2222, 0.044715
    %v2295 = vmul.f32 %v2224, 0.044715
    %v2296 = vmul.f32 %v2228, 0.044715
    %v2297 = vmul.f32 %v2230, 0.044715
    %v2298 = vmul.f32 %v2232, 0.044715
    %v2299 = vmul.f32 %v2234, 0.044715
    %v2300 = vmul.f32 %v2268, %v2158
    %v2301 = vmul.f32 %v2269, %v2160
    %v2302 = vmul.f32 %v2270, %v2162
    %v2303 = vmul.f32 %v2271, %v2164
    %v2304 = vmul.f32 %v2272, %v2168
    %v2305 = vmul.f32 %v2273, %v2170
    %v2306 = vmul.f32 %v2274, %v2172
    %v2307 = vmul.f32 %v2275, %v2174
    %v2308 = vmul.f32 %v2276, %v2178
    %v2309 = vmul.f32 %v2277, %v2180
    %v2310 = vmul.f32 %v2278, %v2182
    %v2311 = vmul.f32 %v2279, %v2184
    %v2312 = vmul.f32 %v2280, %v2188
    %v2313 = vmul.f32 %v2281, %v2190
    %v2314 = vmul.f32 %v2282, %v2192
    %v2315 = vmul.f32 %v2283, %v2194
    %v2316 = vmul.f32 %v2284, %v2198
    %v2317 = vmul.f32 %v2285, %v2200
    %v2318 = vmul.f32 %v2286, %v2202
    %v2319 = vmul.f32 %v2287, %v2204
    %v2320 = vmul.f32 %v2288, %v2208
    %v2321 = vmul.f32 %v2289, %v2210
    %v2322 = vmul.f32 %v2290, %v2212
    %v2323 = vmul.f32 %v2291, %v2214
    %v2324 = vmul.f32 %v2292, %v2218
    %v2325 = vmul.f32 %v2293, %v2220
    %v2326 = vmul.f32 %v2294, %v2222
    %v2327 = vmul.f32 %v2295, %v2224
    %v2328 = vmul.f32 %v2296, %v2228
    %v2329 = vmul.f32 %v2297, %v2230
    %v2330 = vmul.f32 %v2298, %v2232
    %v2331 = vmul.f32 %v2299, %v2234
    %v2332 = vmul.f32 %v2300, %v2158
    %v2333 = vmul.f32 %v2301, %v2160
    %v2334 = vmul.f32 %v2302, %v2162
    %v2335 = vmul.f32 %v2303, %v2164
    %v2336 = vmul.f32 %v2304, %v2168
    %v2337 = vmul.f32 %v2305, %v2170
    %v2338 = vmul.f32 %v2306, %v2172
    %v2339 = vmul.f32 %v2307, %v2174
    %v2340 = vmul.f32 %v2308, %v2178
    %v2341 = vmul.f32 %v2309, %v2180
    %v2342 = vmul.f32 %v2310, %v2182
    %v2343 = vmul.f32 %v2311, %v2184
    %v2344 = vmul.f32 %v2312, %v2188
    %v2345 = vmul.f32 %v2313, %v2190
    %v2346 = vmul.f32 %v2314, %v2192
    %v2347 = vmul.f32 %v2315, %v2194
    %v2348 = vmul.f32 %v2316, %v2198
    %v2349 = vmul.f32 %v2317, %v2200
    %v2350 = vmul.f32 %v2318, %v2202
    %v2351 = vmul.f32 %v2319, %v2204
    %v2352 = vmul.f32 %v2320, %v2208
    %v2353 = vmul.f32 %v2321, %v2210
    %v2354 = vmul.f32 %v2322, %v2212
    %v2355 = vmul.f32 %v2323, %v2214
    %v2356 = vmul.f32 %v2324, %v2218
    %v2357 = vmul.f32 %v2325, %v2220
    %v2358 = vmul.f32 %v2326, %v2222
    %v2359 = vmul.f32 %v2327, %v2224
    %v2360 = vmul.f32 %v2328, %v2228
    %v2361 = vmul.f32 %v2329, %v2230
    %v2362 = vmul.f32 %v2330, %v2232
    %v2363 = vmul.f32 %v2331, %v2234
    %v2364 = vadd.f32 %v2158, %v2332
    %v2365 = vadd.f32 %v2160, %v2333
    %v2366 = vadd.f32 %v2162, %v2334
    %v2367 = vadd.f32 %v2164, %v2335
    %v2368 = vadd.f32 %v2168, %v2336
    %v2369 = vadd.f32 %v2170, %v2337
    %v2370 = vadd.f32 %v2172, %v2338
    %v2371 = vadd.f32 %v2174, %v2339
    %v2372 = vadd.f32 %v2178, %v2340
    %v2373 = vadd.f32 %v2180, %v2341
    %v2374 = vadd.f32 %v2182, %v2342
    %v2375 = vadd.f32 %v2184, %v2343
    %v2376 = vadd.f32 %v2188, %v2344
    %v2377 = vadd.f32 %v2190, %v2345
    %v2378 = vadd.f32 %v2192, %v2346
    %v2379 = vadd.f32 %v2194, %v2347
    %v2380 = vadd.f32 %v2198, %v2348
    %v2381 = vadd.f32 %v2200, %v2349
    %v2382 = vadd.f32 %v2202, %v2350
    %v2383 = vadd.f32 %v2204, %v2351
    %v2384 = vadd.f32 %v2208, %v2352
    %v2385 = vadd.f32 %v2210, %v2353
    %v2386 = vadd.f32 %v2212, %v2354
    %v2387 = vadd.f32 %v2214, %v2355
    %v2388 = vadd.f32 %v2218, %v2356
    %v2389 = vadd.f32 %v2220, %v2357
    %v2390 = vadd.f32 %v2222, %v2358
    %v2391 = vadd.f32 %v2224, %v2359
    %v2392 = vadd.f32 %v2228, %v2360
    %v2393 = vadd.f32 %v2230, %v2361
    %v2394 = vadd.f32 %v2232, %v2362
    %v2395 = vadd.f32 %v2234, %v2363
    %v2396 = vmul.f32 %v2364, 0.7978846
    %v2397 = vmul.f32 %v2365, 0.7978846
    %v2398 = vmul.f32 %v2366, 0.7978846
    %v2399 = vmul.f32 %v2367, 0.7978846
    %v2400 = vmul.f32 %v2368, 0.7978846
    %v2401 = vmul.f32 %v2369, 0.7978846
    %v2402 = vmul.f32 %v2370, 0.7978846
    %v2403 = vmul.f32 %v2371, 0.7978846
    %v2404 = vmul.f32 %v2372, 0.7978846
    %v2405 = vmul.f32 %v2373, 0.7978846
    %v2406 = vmul.f32 %v2374, 0.7978846
    %v2407 = vmul.f32 %v2375, 0.7978846
    %v2408 = vmul.f32 %v2376, 0.7978846
    %v2409 = vmul.f32 %v2377, 0.7978846
    %v2410 = vmul.f32 %v2378, 0.7978846
    %v2411 = vmul.f32 %v2379, 0.7978846
    %v2412 = vmul.f32 %v2380, 0.7978846
    %v2413 = vmul.f32 %v2381, 0.7978846
    %v2414 = vmul.f32 %v2382, 0.7978846
    %v2415 = vmul.f32 %v2383, 0.7978846
    %v2416 = vmul.f32 %v2384, 0.7978846
    %v2417 = vmul.f32 %v2385, 0.7978846
    %v2418 = vmul.f32 %v2386, 0.7978846
    %v2419 = vmul.f32 %v2387, 0.7978846
    %v2420 = vmul.f32 %v2388, 0.7978846
    %v2421 = vmul.f32 %v2389, 0.7978846
    %v2422 = vmul.f32 %v2390, 0.7978846
    %v2423 = vmul.f32 %v2391, 0.7978846
    %v2424 = vmul.f32 %v2392, 0.7978846
    %v2425 = vmul.f32 %v2393, 0.7978846
    %v2426 = vmul.f32 %v2394, 0.7978846
    %v2427 = vmul.f32 %v2395, 0.7978846
    %v2428 = vtanh.pop %v2396
    %v2429 = vtanh.pop %v2397
    %v2430 = vtanh.pop %v2398
    %v2431 = vtanh.pop %v2399
    %v2432 = vtanh.pop %v2400
    %v2433 = vtanh.pop %v2401
    %v2434 = vtanh.pop %v2402
    %v2435 = vtanh.pop %v2403
    %v2436 = vtanh.pop %v2404
    %v2437 = vtanh.pop %v2405
    %v2438 = vtanh.pop %v2406
    %v2439 = vtanh.pop %v2407
    %v2440 = vtanh.pop %v2408
    %v2441 = vtanh.pop %v2409
    %v2442 = vtanh.pop %v2410
    %v2443 = vtanh.pop %v2411
    %v2444 = vtanh.pop %v2412
    %v2445 = vtanh.pop %v2413
    %v2446 = vtanh.pop %v2414
    %v2447 = vtanh.pop %v2415
    %v2448 = vtanh.pop %v2416
    %v2449 = vtanh.pop %v2417
    %v2450 = vtanh.pop %v2418
    %v2451 = vtanh.pop %v2419
    %v2452 = vtanh.pop %v2420
    %v2453 = vtanh.pop %v2421
    %v2454 = vtanh.pop %v2422
    %v2455 = vtanh.pop %v2423
    %v2456 = vtanh.pop %v2424
    %v2457 = vtanh.pop %v2425
    %v2458 = vtanh.pop %v2426
    %v2459 = vtanh.pop %v2427
    %v2460 = vadd.f32 %v2428, 1.0
    %v2461 = vadd.f32 %v2429, 1.0
    %v2462 = vadd.f32 %v2430, 1.0
    %v2463 = vadd.f32 %v2431, 1.0
    %v2464 = vadd.f32 %v2432, 1.0
    %v2465 = vadd.f32 %v2433, 1.0
    %v2466 = vadd.f32 %v2434, 1.0
    %v2467 = vadd.f32 %v2435, 1.0
    %v2468 = vadd.f32 %v2436, 1.0
    %v2469 = vadd.f32 %v2437, 1.0
    %v2470 = vadd.f32 %v2438, 1.0
    %v2471 = vadd.f32 %v2439, 1.0
    %v2472 = vadd.f32 %v2440, 1.0
    %v2473 = vadd.f32 %v2441, 1.0
    %v2474 = vadd.f32 %v2442, 1.0
    %v2475 = vadd.f32 %v2443, 1.0
    %v2476 = vadd.f32 %v2444, 1.0
    %v2477 = vadd.f32 %v2445, 1.0
    %v2478 = vadd.f32 %v2446, 1.0
    %v2479 = vadd.f32 %v2447, 1.0
    %v2480 = vadd.f32 %v2448, 1.0
    %v2481 = vadd.f32 %v2449, 1.0
    %v2482 = vadd.f32 %v2450, 1.0
    %v2483 = vadd.f32 %v2451, 1.0
    %v2484 = vadd.f32 %v2452, 1.0
    %v2485 = vadd.f32 %v2453, 1.0
    %v2486 = vadd.f32 %v2454, 1.0
    %v2487 = vadd.f32 %v2455, 1.0
    %v2488 = vadd.f32 %v2456, 1.0
    %v2489 = vadd.f32 %v2457, 1.0
    %v2490 = vadd.f32 %v2458, 1.0
    %v2491 = vadd.f32 %v2459, 1.0
    %v2492 = vmul.f32 %v2236, %v2460
    %v2493 = vmul.f32 %v2237, %v2461
    %v2494 = vmul.f32 %v2238, %v2462
    %v2495 = vmul.f32 %v2239, %v2463
    %v2496 = vmul.f32 %v2240, %v2464
    %v2497 = vmul.f32 %v2241, %v2465
    %v2498 = vmul.f32 %v2242, %v2466
    %v2499 = vmul.f32 %v2243, %v2467
    %v2500 = vmul.f32 %v2244, %v2468
    %v2501 = vmul.f32 %v2245, %v2469
    %v2502 = vmul.f32 %v2246, %v2470
    %v2503 = vmul.f32 %v2247, %v2471
    %v2504 = vmul.f32 %v2248, %v2472
    %v2505 = vmul.f32 %v2249, %v2473
    %v2506 = vmul.f32 %v2250, %v2474
    %v2507 = vmul.f32 %v2251, %v2475
    %v2508 = vmul.f32 %v2252, %v2476
    %v2509 = vmul.f32 %v2253, %v2477
    %v2510 = vmul.f32 %v2254, %v2478
    %v2511 = vmul.f32 %v2255, %v2479
    %v2512 = vmul.f32 %v2256, %v2480
    %v2513 = vmul.f32 %v2257, %v2481
    %v2514 = vmul.f32 %v2258, %v2482
    %v2515 = vmul.f32 %v2259, %v2483
    %v2516 = vmul.f32 %v2260, %v2484
    %v2517 = vmul.f32 %v2261, %v2485
    %v2518 = vmul.f32 %v2262, %v2486
    %v2519 = vmul.f32 %v2263, %v2487
    %v2520 = vmul.f32 %v2264, %v2488
    %v2521 = vmul.f32 %v2265, %v2489
    %v2522 = vmul.f32 %v2266, %v2490
    %v2523 = vmul.f32 %v2267, %v2491
    %v2524 = vpack.c.bf16 %v2494, %v2492
    %v2525 = vpack.c.bf16 %v2495, %v2493
    %v2526 = vpack.c.bf16 %v2498, %v2496
    %v2527 = vpack.c.bf16 %v2499, %v2497
    %v2528 = vpack.c.bf16 %v2502, %v2500
    %v2529 = vpack.c.bf16 %v2503, %v2501
    %v2530 = vpack.c.bf16 %v2506, %v2504
    %v2531 = vpack.c.bf16 %v2507, %v2505
    %v2532 = vpack.c.bf16 %v2510, %v2508
    %v2533 = vpack.c.bf16 %v2511, %v2509
    %v2534 = vpack.c.bf16 %v2514, %v2512
    %v2535 = vpack.c.bf16 %v2515, %v2513
    %v2536 = vpack.c.bf16 %v2518, %v2516
    %v2537 = vpack.c.bf16 %v2519, %v2517
    %v2538 = vpack.c.bf16 %v2522, %v2520
    %v2539 = vpack.c.bf16 %v2523, %v2521
    %v2540 = vld [vmem:[#allocation23] sm:$0xf]
    %v2541 = vld [vmem:[#allocation23 + $0x4] sm:$0xf]
    %v2542 = vld [vmem:[#allocation23 + $0x8] sm:$0xf]
    %v2543 = vld [vmem:[#allocation23 + $0xc] sm:$0xf]
    %v2544 = vld [vmem:[#allocation23 + $0x10] sm:$0xf]
    %v2545 = vld [vmem:[#allocation23 + $0x14] sm:$0xf]
    %v2546 = vld [vmem:[#allocation23 + $0x18] sm:$0xf]
    %v2547 = vld [vmem:[#allocation23 + $0x1c] sm:$0xf]
    %v2548 = vld [vmem:[#allocation23 + $0x20] sm:$0xf]
    %v2549 = vld [vmem:[#allocation23 + $0x24] sm:$0xf]
    %v2550 = vld [vmem:[#allocation23 + $0x28] sm:$0xf]
    %v2551 = vld [vmem:[#allocation23 + $0x2c] sm:$0xf]
    %v2552 = vld [vmem:[#allocation23 + $0x30] sm:$0xf]
    %v2553 = vld [vmem:[#allocation23 + $0x34] sm:$0xf]
    %v2554 = vld [vmem:[#allocation23 + $0x38] sm:$0xf]
    %v2555 = vld [vmem:[#allocation23 + $0x3c] sm:$0xf]
    %v2556 = vld [vmem:[#allocation23 + $0x40] sm:$0xf]
    %v2557 = vld [vmem:[#allocation23 + $0x44] sm:$0xf]
    %v2558 = vld [vmem:[#allocation23 + $0x48] sm:$0xf]
    %v2559 = vld [vmem:[#allocation23 + $0x4c] sm:$0xf]
    %v2560 = vld [vmem:[#allocation23 + $0x50] sm:$0xf]
    %v2561 = vld [vmem:[#allocation23 + $0x54] sm:$0xf]
    %v2562 = vld [vmem:[#allocation23 + $0x58] sm:$0xf]
    %v2563 = vld [vmem:[#allocation23 + $0x5c] sm:$0xf]
    %v2564 = vld [vmem:[#allocation23 + $0x60] sm:$0xf]
    %v2565 = vld [vmem:[#allocation23 + $0x64] sm:$0xf]
    %v2566 = vld [vmem:[#allocation23 + $0x68] sm:$0xf]
    %v2567 = vld [vmem:[#allocation23 + $0x6c] sm:$0xf]
    %v2568 = vld [vmem:[#allocation23 + $0x70] sm:$0xf]
    %v2569 = vld [vmem:[#allocation23 + $0x74] sm:$0xf]
    %v2570 = vld [vmem:[#allocation23 + $0x78] sm:$0xf]
    %v2571 = vld [vmem:[#allocation23 + $0x7c] sm:$0xf]
    %v2572 = vld [vmem:[#allocation25] sm:$0x1]
    %v2574 = vlaneseq
    %v2575 = vshrl.u32 %v2574, 7
    %v2576 = vsub.s32 0, %v2575
    %v2577 = vrot.slane %v2572, %v2576
    %v2611 = vunpack.c.l.b16 %v2540
    %v2612 = vunpack.c.l.b16 %v2541
    %v2613 = vunpack.c.l.b16 %v2542
    %v2614 = vunpack.c.l.b16 %v2543
    %v2615 = vunpack.c.l.b16 %v2544
    %v2616 = vunpack.c.l.b16 %v2545
    %v2617 = vunpack.c.l.b16 %v2546
    %v2618 = vunpack.c.l.b16 %v2547
    %v2619 = vunpack.c.l.b16 %v2548
    %v2620 = vunpack.c.l.b16 %v2549
    %v2621 = vunpack.c.l.b16 %v2550
    %v2622 = vunpack.c.l.b16 %v2551
    %v2623 = vunpack.c.l.b16 %v2552
    %v2624 = vunpack.c.l.b16 %v2553
    %v2625 = vunpack.c.l.b16 %v2554
    %v2626 = vunpack.c.l.b16 %v2555
    %v2627 = vunpack.c.l.b16 %v2556
    %v2628 = vunpack.c.l.b16 %v2557
    %v2629 = vunpack.c.l.b16 %v2558
    %v2630 = vunpack.c.l.b16 %v2559
    %v2631 = vunpack.c.l.b16 %v2560
    %v2632 = vunpack.c.l.b16 %v2561
    %v2633 = vunpack.c.l.b16 %v2562
    %v2634 = vunpack.c.l.b16 %v2563
    %v2635 = vunpack.c.l.b16 %v2564
    %v2636 = vunpack.c.l.b16 %v2565
    %v2637 = vunpack.c.l.b16 %v2566
    %v2638 = vunpack.c.l.b16 %v2567
    %v2639 = vunpack.c.l.b16 %v2568
    %v2640 = vunpack.c.l.b16 %v2569
    %v2641 = vunpack.c.l.b16 %v2570
    %v2642 = vunpack.c.l.b16 %v2571
    %v2643 = vpack.c.b16 %v2612, %v2611
    %v2644 = vpack.c.b16 %v2614, %v2613
    %v2645 = vpack.c.b16 %v2616, %v2615
    %v2646 = vpack.c.b16 %v2618, %v2617
    %v2647 = vpack.c.b16 %v2620, %v2619
    %v2648 = vpack.c.b16 %v2622, %v2621
    %v2649 = vpack.c.b16 %v2624, %v2623
    %v2650 = vpack.c.b16 %v2626, %v2625
    %v2651 = vpack.c.b16 %v2628, %v2627
    %v2652 = vpack.c.b16 %v2630, %v2629
    %v2653 = vpack.c.b16 %v2632, %v2631
    %v2654 = vpack.c.b16 %v2634, %v2633
    %v2655 = vpack.c.b16 %v2636, %v2635
    %v2656 = vpack.c.b16 %v2638, %v2637
    %v2657 = vpack.c.b16 %v2640, %v2639
    %v2658 = vpack.c.b16 %v2642, %v2641
    %2675 = vmatprep.subr.bf16.mxu0 0
    %2676 = vmatpush1.bf16.msra.mxu0 %v2643
    %2677 = vmatprep.subr.bf16.mxu0 0
    %2678 = vmatpush1.bf16.msra.mxu0 %v2644
    %2679 = vmatprep.subr.bf16.mxu0 0
    %2680 = vmatpush1.bf16.msra.mxu0 %v2645
    %2681 = vmatprep.subr.bf16.mxu0 0
    %2682 = vmatpush1.bf16.msra.mxu0 %v2646
    %2683 = vmatprep.subr.bf16.mxu0 0
    %2684 = vmatpush1.bf16.msra.mxu0 %v2647
    %2685 = vmatprep.subr.bf16.mxu0 0
    %2686 = vmatpush1.bf16.msra.mxu0 %v2648
    %2687 = vmatprep.subr.bf16.mxu0 0
    %2688 = vmatpush1.bf16.msra.mxu0 %v2649
    %2689 = vmatprep.subr.bf16.mxu0 0
    %2690 = vmatpush1.bf16.msra.mxu0 %v2650
    %2691 = vmatprep.subr.bf16.mxu0 0
    %2692 = vmatpush1.bf16.msra.mxu0 %v2651
    %2693 = vmatprep.subr.bf16.mxu0 0
    %2694 = vmatpush1.bf16.msra.mxu0 %v2652
    %2695 = vmatprep.subr.bf16.mxu0 0
    %2696 = vmatpush1.bf16.msra.mxu0 %v2653
    %2697 = vmatprep.subr.bf16.mxu0 0
    %2698 = vmatpush1.bf16.msra.mxu0 %v2654
    %2699 = vmatprep.subr.bf16.mxu0 0
    %2700 = vmatpush1.bf16.msra.mxu0 %v2655
    %2701 = vmatprep.subr.bf16.mxu0 0
    %2702 = vmatpush1.bf16.msra.mxu0 %v2656
    %2703 = vmatprep.subr.bf16.mxu0 0
    %2704 = vmatpush1.bf16.msra.mxu0 %v2657
    %2705 = vmatprep.subr.bf16.mxu0 0
    %2706 = vmatpush1.bf16.msra.mxu0 %v2658
    %2707 = vmatprep.mubr.bf16.mxu0 %v2525
    %2708 = vmatmul.mubr.bf16.gmra.mrb[0].mxu0 %v2524
    %v2709 = vpop.f32.mrb[0].mxu0
    %v2710 = vadd.f32 %v2577, %v2709
    %v2711 = vpop.f32.mrb[0].mxu0
    %v2712 = vpop.f32.mrb[0].mxu0
    %v2713 = vadd.f32 %v2577, %v2712
    %v2714 = vpop.f32.mrb[0].mxu0
    %2715 = vmatprep.mubr.bf16.mxu0 %v2527
    %2716 = vmatmul.mubr.bf16.gmra.mrb[0].mxu0 %v2526
    %v2717 = vpop.f32.mrb[0].mxu0
    %v2718 = vadd.f32 %v2577, %v2717
    %v2719 = vpop.f32.mrb[0].mxu0
    %v2720 = vpop.f32.mrb[0].mxu0
    %v2721 = vadd.f32 %v2577, %v2720
    %v2722 = vpop.f32.mrb[0].mxu0
    %2723 = vmatprep.mubr.bf16.mxu0 %v2529
    %2724 = vmatmul.mubr.bf16.gmra.mrb[0].mxu0 %v2528
    %v2725 = vpop.f32.mrb[0].mxu0
    %v2726 = vadd.f32 %v2577, %v2725
    %v2727 = vpop.f32.mrb[0].mxu0
    %v2728 = vpop.f32.mrb[0].mxu0
    %v2729 = vadd.f32 %v2577, %v2728
    %v2730 = vpop.f32.mrb[0].mxu0
    %2731 = vmatprep.mubr.bf16.mxu0 %v2531
    %2732 = vmatmul.mubr.bf16.gmra.mrb[0].mxu0 %v2530
    %v2733 = vpop.f32.mrb[0].mxu0
    %v2734 = vadd.f32 %v2577, %v2733
    %v2735 = vpop.f32.mrb[0].mxu0
    %v2736 = vpop.f32.mrb[0].mxu0
    %v2737 = vadd.f32 %v2577, %v2736
    %v2738 = vpop.f32.mrb[0].mxu0
    %2739 = vmatprep.mubr.bf16.mxu0 %v2533
    %2740 = vmatmul.mubr.bf16.gmra.mrb[0].mxu0 %v2532
    %v2741 = vpop.f32.mrb[0].mxu0
    %v2742 = vadd.f32 %v2577, %v2741
    %v2743 = vpop.f32.mrb[0].mxu0
    %v2744 = vpop.f32.mrb[0].mxu0
    %v2745 = vadd.f32 %v2577, %v2744
    %v2746 = vpop.f32.mrb[0].mxu0
    %2747 = vmatprep.mubr.bf16.mxu0 %v2535
    %2748 = vmatmul.mubr.bf16.gmra.mrb[0].mxu0 %v2534
    %v2749 = vpop.f32.mrb[0].mxu0
    %v2750 = vadd.f32 %v2577, %v2749
    %v2751 = vpop.f32.mrb[0].mxu0
    %v2752 = vpop.f32.mrb[0].mxu0
    %v2753 = vadd.f32 %v2577, %v2752
    %v2754 = vpop.f32.mrb[0].mxu0
    %2755 = vmatprep.mubr.bf16.mxu0 %v2537
    %2756 = vmatmul.mubr.bf16.gmra.mrb[0].mxu0 %v2536
    %v2757 = vpop.f32.mrb[0].mxu0
    %v2758 = vadd.f32 %v2577, %v2757
    %v2759 = vpop.f32.mrb[0].mxu0
    %v2760 = vpop.f32.mrb[0].mxu0
    %v2761 = vadd.f32 %v2577, %v2760
    %v2762 = vpop.f32.mrb[0].mxu0
    %2763 = vmatprep.mubr.bf16.mxu0 %v2539
    %2764 = vmatmul.mubr.bf16.gmra.mrb[0].mxu0 %v2538
    %v2765 = vpop.f32.mrb[0].mxu0
    %v2766 = vadd.f32 %v2577, %v2765
    %v2767 = vpop.f32.mrb[0].mxu0
    %v2768 = vpop.f32.mrb[0].mxu0
    %v2769 = vadd.f32 %v2577, %v2768
    %v2770 = vpop.f32.mrb[0].mxu0
    %2771 = vdwg.mxu0
    %v2772 = vadd.f32 %v1755, %v2710
    %v2773 = vadd.f32 %v1756, %v2713
    %v2774 = vadd.f32 %v1757, %v2718
    %v2775 = vadd.f32 %v1758, %v2721
    %v2776 = vadd.f32 %v1759, %v2726
    %v2777 = vadd.f32 %v1760, %v2729
    %v2778 = vadd.f32 %v1761, %v2734
    %v2779 = vadd.f32 %v1762, %v2737
    %v2780 = vadd.f32 %v1763, %v2742
    %v2781 = vadd.f32 %v1764, %v2745
    %v2782 = vadd.f32 %v1765, %v2750
    %v2783 = vadd.f32 %v1766, %v2753
    %v2784 = vadd.f32 %v1767, %v2758
    %v2785 = vadd.f32 %v1768, %v2761
    %v2786 = vadd.f32 %v1769, %v2766
    %v2787 = vadd.f32 %v1770, %v2769
    %2788 = vst [vmem:[#allocation26] sm:$0xff] %v2772
    %2789 = vst [vmem:[#allocation26 + $0x8] sm:$0xff] %v2773
    %2790 = vst [vmem:[#allocation26 + $0x10] sm:$0xff] %v2774
    %2791 = vst [vmem:[#allocation26 + $0x18] sm:$0xff] %v2775
    %2792 = vst [vmem:[#allocation26 + $0x20] sm:$0xff] %v2776
    %2793 = vst [vmem:[#allocation26 + $0x28] sm:$0xff] %v2777
    %2794 = vst [vmem:[#allocation26 + $0x30] sm:$0xff] %v2778
    %2795 = vst [vmem:[#allocation26 + $0x38] sm:$0xff] %v2779
    %2796 = vst [vmem:[#allocation26 + $0x40] sm:$0xff] %v2780
    %2797 = vst [vmem:[#allocation26 + $0x48] sm:$0xff] %v2781
    %2798 = vst [vmem:[#allocation26 + $0x50] sm:$0xff] %v2782
    %2799 = vst [vmem:[#allocation26 + $0x58] sm:$0xff] %v2783
    %2800 = vst [vmem:[#allocation26 + $0x60] sm:$0xff] %v2784
    %2801 = vst [vmem:[#allocation26 + $0x68] sm:$0xff] %v2785
    %2802 = vst [vmem:[#allocation26 + $0x70] sm:$0xff] %v2786
    %2803 = vst [vmem:[#allocation26 + $0x78] sm:$0xff] %v2787
    %2804 = vst [vmem:[#allocation27] sm:$0xff] %v1320
    %2805 = vst [vmem:[#allocation27 + $0x8] sm:$0xff] %v1321
    %2806 = vst [vmem:[#allocation27 + $0x10] sm:$0xff] %v1322
    %2807 = vst [vmem:[#allocation27 + $0x18] sm:$0xff] %v1323
    %2808 = vst [vmem:[#allocation27 + $0x20] sm:$0xff] %v1324
    %2809 = vst [vmem:[#allocation27 + $0x28] sm:$0xff] %v1325
    %2810 = vst [vmem:[#allocation27 + $0x30] sm:$0xff] %v1326
    %2811 = vst [vmem:[#allocation27 + $0x38] sm:$0xff] %v1327
    %2812 = vst [vmem:[#allocation27 + $0x40] sm:$0xff] %v1328
    %2813 = vst [vmem:[#allocation27 + $0x48] sm:$0xff] %v1329
    %2814 = vst [vmem:[#allocation27 + $0x50] sm:$0xff] %v1330
    %2815 = vst [vmem:[#allocation27 + $0x58] sm:$0xff] %v1331
    %2816 = vst [vmem:[#allocation27 + $0x60] sm:$0xff] %v1332
    %2817 = vst [vmem:[#allocation27 + $0x68] sm:$0xff] %v1333
    %2818 = vst [vmem:[#allocation27 + $0x70] sm:$0xff] %v1334
    %2819 = vst [vmem:[#allocation27 + $0x78] sm:$0xff] %v1335
    // Predicated region
    $region142: #{tpu_custom_call.1} parent=1 // pred_check
      _
    $region143: #{tpu_custom_call.1} parent=1 // pred_check_branch
      %2821 = sbr.rel (0) target = $region145
    $region144: #{tpu_custom_call.1} parent=1 // pred_region
      %s2823 = ssub.s32 2048, 2048
      %2824 = vsyncadd [#allocation4], %s2823
      %s2825 = sshll.u32 [#allocation26], 4
      %s2826 = int_to_ptr.vmem [resolvable:$true] %s2825
      %2831 = dma.vmem_to_hbm [thread:$0]  %s2826, 2048, %s20, [#allocation4], 128, 128, 8
    $region145: #{tpu_custom_call.1} parent=1 // pred_fallthru
      _
    // Predicated region
    $region146: #{tpu_custom_call.1} parent=1 // pred_check
      _
    $region147: #{tpu_custom_call.1} parent=1 // pred_check_branch
      %2833 = sbr.rel (0) target = $region149
    $region148: #{tpu_custom_call.1} parent=1 // pred_region
      %s2835 = ssub.s32 2048, 2048
      %2836 = vsyncadd [#allocation28], %s2835
      %s2837 = sshll.u32 [#allocation27], 4
      %s2838 = int_to_ptr.vmem [resolvable:$true] %s2837
      %2843 = dma.vmem_to_hbm [thread:$0]  %s2838, 2048, %s21, [#allocation28], 128, 128, 8
    $region149: #{tpu_custom_call.1} parent=1 // pred_fallthru
      _
    // Predicated region
    $region150: #{tpu_custom_call.1} parent=1 // pred_check
      _
    $region151: #{tpu_custom_call.1} parent=1 // pred_check_branch
      %2845 = sbr.rel (0) target = $region153
    $region152: #{tpu_custom_call.1} parent=1 // pred_region
      %2846 = dma.done [#allocation4], 2048
    $region153: #{tpu_custom_call.1} parent=1 // pred_fallthru
      _
    // Predicated region
    $region154: #{tpu_custom_call.1} parent=1 // pred_check
      _
    $region155: #{tpu_custom_call.1} parent=1 // pred_check_branch
      %2848 = sbr.rel (0) target = $region157
    $region156: #{tpu_custom_call.1} parent=1 // pred_region
      %2849 = dma.done [#allocation28], 2048
    $region157: #{tpu_custom_call.1} parent=1 // pred_fallthru
      _
    %2850 = vsyncpa [#allocation3], 1
    %2851 = vsyncpa [#allocation6], 1
    %2852 = vsyncpa [#allocation9], 1
    %2853 = vsyncpa [#allocation12], 1
    %2854 = vsyncpa [#allocation15], 1
    %2855 = vsyncpa [#allocation18], 1
    %2856 = vsyncpa [#allocation21], 1
    %2857 = vsyncpa [#allocation24], 1
    %2858 = vsyncpa [#allocation4], 1
    %2859 = vsyncpa [#allocation28], 1

</llo_original>
